<compile_context>
chip_gen: v5e
topology: v5e:2x2
jax: 0.10.0
libtpu: 0.0.40
codegen_flags: <defaults>
</compile_context>

<pallas_src>
import functools

import jax
import jax.numpy as jnp
import numpy as np
from jax.experimental import pallas as pl
from jax.experimental.pallas import tpu as pltpu

EPS = 1e-5
NLAYERS = 12
LANE = 128
SUB = 8


def _round_up(x, m):
    return (x + m - 1) // m * m


# ----------------------------- fused Pallas kernel -----------------------------
def _make_fused_kernel(C, Mp, M, MARG, deltas):
    """Fused 12-layer conv3x3 + BN + ReLU chain for fixed (static) geometry.

    Layout: channels on sublanes (padded to C), flattened spatial index on lanes
    (padded to Mp).  `deltas[k]` is the flat-index shift of tap k; out-of-image /
    row-wrapping / pad-lane contributions are zeroed by the per-tap masks.
    """
    inv_M = 1.0 / float(M)

    def bn_relu(acc, g_ref, b_ref, l):
        # Training-mode BatchNorm2d (biased batch variance) folded to scale/shift.
        # Pad lanes and pad channels of `acc` are exactly zero, and gamma/beta are
        # zero-padded, so no mask is needed and padded entries stay exactly zero.
        s = jnp.sum(acc, axis=1, keepdims=True)               # (C, 1)
        ss = jnp.sum(acc * acc, axis=1, keepdims=True)        # (C, 1)
        mean = s * inv_M
        var = jnp.maximum(ss * inv_M - mean * mean, 0.0)      # clamp one-pass var
        gamma = g_ref[:, l:l + 1]                             # (C, 1)
        beta = b_ref[:, l:l + 1]
        scale = gamma * jax.lax.rsqrt(var + EPS)
        shift = beta - mean * scale
        return jnp.maximum(acc * scale + shift, 0.0)

    def kernel(p0_ref, w0_ref, wr_ref, g_ref, b_ref, tm_ref, o_ref,
               act_ref, pat_ref):
        # Zero once so the shift margins read as zeros (their values are masked
        # anyway, but uninitialized VMEM could hold NaNs and NaN*0 = NaN).
        act_ref[...] = jnp.zeros_like(act_ref)

        # ---- layer 0: stride-2 conv from pre-built patches -> (C, Mp) ----
        acc = jnp.dot(w0_ref[...], p0_ref[...],
                      preferred_element_type=jnp.float32)
        act = bn_relu(acc, g_ref, b_ref, 0)

        # ---- layers 1..11: 'same' conv as one (C, 9C) x (9C, Mp) matmul ----
        for l in range(1, NLAYERS):
            # Lane-aligned store of the activation into the margin buffer.
            act_ref[:, MARG:MARG + Mp] = act
            # Build the (9C, Mp) patch block: 9 aligned 8-sublane slab stores,
            # each a statically lane-shifted read times its boundary mask.
            for k in range(9):
                off = MARG + deltas[k]
                pat_ref[k * C:(k + 1) * C, :] = (
                    act_ref[:, off:off + Mp] * tm_ref[k * C:(k + 1) * C, :])
            acc = jnp.dot(wr_ref[l - 1], pat_ref[...],
                          preferred_element_type=jnp.float32)
            act = bn_relu(acc, g_ref, b_ref, l)

        # Lane-dense output store; no round trip through act_ref.
        o_ref[...] = act

    return kernel


# ------------------------------- JAX glue --------------------------------------
def _layer0_patches_t(x_nhwc, Mp, Kp):
    """3x3 / stride 2 / pad 1 patches of the raw input, transposed to (Kp, Mp)."""
    N, H, W, Cin = x_nhwc.shape
    xp = jnp.pad(x_nhwc, ((0, 0), (1, 1), (1, 1), (0, 0)))
    Ho = (H + 2 - 3) // 2 + 1
    Wo = (W + 2 - 3) // 2 + 1
    cols = []
    for dy in range(3):
        for dx in range(3):
            cols.append(xp[:, dy:dy + 2 * (Ho - 1) + 1:2,
                            dx:dx + 2 * (Wo - 1) + 1:2, :])
    p = jnp.stack(cols, axis=0)                    # (9, N, Ho, Wo, Cin)
    p = jnp.moveaxis(p, -1, 1)                     # (9, Cin, N, Ho, Wo)
    p = p.reshape(9 * Cin, N * Ho * Wo)            # rows: k*Cin + c
    return jnp.pad(p, ((0, Kp - 9 * Cin), (0, Mp - N * Ho * Wo)))


def _tap_masks(N, Ho, Wo, C, Mp):
    """(9*C, Mp) 0/1 masks: zero where tap (dy,dx) falls outside the image or on
    pad lanes (m >= M).  Pre-broadcast over channels so in-kernel reads are aligned."""
    M = N * Ho * Wo
    _, h, w = np.meshgrid(np.arange(N), np.arange(Ho), np.arange(Wo), indexing="ij")
    h = h.reshape(-1)
    w = w.reshape(-1)
    masks = np.zeros((9, C, Mp), np.float32)
    for dy in range(3):
        for dx in range(3):
            k = dy * 3 + dx
            valid = ((h + dy - 1 >= 0) & (h + dy - 1 < Ho) &
                     (w + dx - 1 >= 0) & (w + dx - 1 < Wo))
            masks[k, :, :M] = valid.astype(np.float32)[None, :]
    return masks.reshape(9 * C, Mp)


def init_params(key, in_chans, out_chans):
    """Deterministic parameter init mirroring Boosted_Conv3x3.__init__ shapes."""
    ch_list = [in_chans] + [out_chans // 2] * (NLAYERS - 1) + [out_chans]
    strides = [2] + [1] * (NLAYERS - 1)
    params = []
    for i in range(NLAYERS):
        cin, cout = ch_list[i], ch_list[i + 1]
        key, kw, kg, kb = jax.random.split(key, 4)
        w = jax.random.normal(kw, (cout, cin, 3, 3), jnp.float32) * jnp.sqrt(2.0 / (9 * cin))
        gamma = 1.0 + 0.1 * jax.random.normal(kg, (cout,), jnp.float32)
        beta = 0.1 * jax.random.normal(kb, (cout,), jnp.float32)
        params.append(dict(w=w, gamma=gamma, beta=beta, stride=strides[i]))
    return params


def pack_params(params):
    """One-time packing into the transposed (channels-on-sublanes) kernel layout."""
    couts = [int(p["w"].shape[0]) for p in params]
    cins = [int(p["w"].shape[1]) for p in params]
    C = _round_up(max(couts), SUB)
    assert params[0]["stride"] == 2 and all(p["stride"] == 1 for p in params[1:])

    # layer 0: (O,I,3,3) -> (O, 9*I) with columns ordered (dy*3+dx)*I + i; pad K to 8.
    Kp0 = _round_up(9 * cins[0], SUB)
    w0t = jnp.transpose(params[0]["w"], (0, 2, 3, 1)).reshape(couts[0], 9 * cins[0])
    w0t = jnp.pad(w0t, ((0, C - couts[0]), (0, Kp0 - 9 * cins[0])))

    # layers 1..11: zero-padded (C, 9*C) matrices, columns ordered (dy*3+dx)*C + ci.
    wrt = []
    for l in range(1, len(params)):
        w = params[l]["w"]
        cout, cin = int(w.shape[0]), int(w.shape[1])
        wt = jnp.transpose(w, (0, 2, 3, 1))                    # (cout,3,3,cin)
        wpad = jnp.zeros((C, 3, 3, C), jnp.float32).at[:cout, :, :, :cin].set(wt)
        wrt.append(wpad.reshape(C, 9 * C))
    wrt = jnp.stack(wrt, axis=0)                               # (NLAYERS-1, C, 9*C)

    # gamma/beta padded with ZEROS so padded channels are forced to exactly zero.
    gamma = jnp.stack([jnp.pad(p["gamma"], (0, C - int(p["gamma"].shape[0])))
                       for p in params], axis=1)               # (C, NLAYERS)
    beta = jnp.stack([jnp.pad(p["beta"], (0, C - int(p["beta"].shape[0])))
                      for p in params], axis=1)                # (C, NLAYERS)
    return dict(w0t=w0t, wrt=wrt, gamma=gamma.astype(jnp.float32),
                beta=beta.astype(jnp.float32))


@functools.partial(jax.jit, static_argnames=("out_chans",))
def boosted_conv3x3_forward(x_nchw, packed, *, out_chans):
    """Forward of Boosted_Conv3x3.  Input/output NCHW (PyTorch convention)."""
    C = packed["w0t"].shape[0]
    Kp0 = packed["w0t"].shape[1]
    x = jnp.transpose(x_nchw, (0, 2, 3, 1)).astype(jnp.float32)   # NHWC
    N, H, W, _ = x.shape
    Ho = (H + 2 - 3) // 2 + 1
    Wo = (W + 2 - 3) // 2 + 1
    M = N * Ho * Wo
    Mp = _round_up(M, LANE)                    # lane-padded spatial width
    MARG = _round_up(Wo + 1, LANE)             # lane-aligned center of shift buffer

    p0t = _layer0_patches_t(x, Mp, Kp0)                           # (Kp0, Mp)
    tapmask = jnp.asarray(_tap_masks(N, Ho, Wo, C, Mp))           # (9*C, Mp)
    deltas = tuple((dy - 1) * Wo + (dx - 1) for dy in range(3) for dx in range(3))

    kernel = _make_fused_kernel(C, Mp, M, MARG, deltas)
    out_cm = pl.pallas_call(
        kernel,
        out_shape=jax.ShapeDtypeStruct((C, Mp), jnp.float32),      # lane-dense output
        in_specs=[pl.BlockSpec(memory_space=pltpu.MemorySpace.VMEM)] * 6,
        out_specs=pl.BlockSpec(memory_space=pltpu.MemorySpace.VMEM),
        scratch_shapes=[
            pltpu.VMEM((C, Mp + 2 * MARG), jnp.float32),   # shift-margin activations
            pltpu.VMEM((9 * C, Mp), jnp.float32),          # in-VMEM im2col patches
        ],
        # TODO(synk): for real Detail_Capture feature-map sizes, add a row-tiled
        # "parallel" grid (v7x megacore) with a two-phase BN-stats reduction and a
        # vmem_limit_bytes budget; unnecessary at this toy size.
    )(p0t, packed["w0t"], packed["wrt"], packed["gamma"], packed["beta"], tapmask)

    out = out_cm[:out_chans, :M].reshape(out_chans, N, Ho, Wo)
    return jnp.transpose(out, (1, 0, 2, 3))                        # NCHW


# ---------------------------- pure-JAX reference -------------------------------
def boosted_conv3x3_reference(x_nchw, params):
    x = x_nchw
    for p in params:
        w, gamma, beta, stride = p["w"], p["gamma"], p["beta"], p["stride"]
        y = jax.lax.conv_general_dilated(
            x, w, window_strides=(stride, stride), padding=((1, 1), (1, 1)),
            dimension_numbers=("NCHW", "OIHW", "NCHW"))
        mean = jnp.mean(y, axis=(0, 2, 3), keepdims=True)
        var = jnp.mean((y - mean) ** 2, axis=(0, 2, 3), keepdims=True)
        y = (y - mean) * jax.lax.rsqrt(var + EPS) * gamma[None, :, None, None] \
            + beta[None, :, None, None]
        x = jnp.maximum(y, 0.0)
    return x


# ----------------------------------- main --------------------------------------
if __name__ == "__main__":
    key = jax.random.PRNGKey(0)
    k_x, k_p = jax.random.split(key)

    in_chans, out_chans = 4, 8
    x = jax.random.normal(k_x, (2, in_chans, 16, 16), jnp.float32)  # NCHW
    params = init_params(k_p, in_chans, out_chans)
    packed = pack_params(params)

    out = jax.block_until_ready(boosted_conv3x3_forward(x, packed, out_chans=out_chans))
    assert out.shape == (2, out_chans, 8, 8), out.shape

    ref = jax.block_until_ready(boosted_conv3x3_reference(x, params))
    np.testing.assert_allclose(np.asarray(out), np.asarray(ref), rtol=5e-3, atol=5e-3)

    # TODO(synk): the surrounding Detail_Capture stages (ConvStream's other blocks,
    # Fusion_Block bilinear resize + concat, Matting_Head) are outside this kernel.
    print("KERNEL_OK")
</pallas_src>

<mosaic_0001>
module attributes {stable_mosaic.version = 11 : i64} {
  func.func @kernel(%arg0: memref<40x128xf32, #tpu.memory_space<vmem>>, %arg1: memref<8x40xf32, #tpu.memory_space<vmem>>, %arg2: memref<11x8x72xf32, #tpu.memory_space<vmem>>, %arg3: memref<8x12xf32, #tpu.memory_space<vmem>>, %arg4: memref<8x12xf32, #tpu.memory_space<vmem>>, %arg5: memref<72x128xf32, #tpu.memory_space<vmem>>, %arg6: memref<8x128xf32, #tpu.memory_space<vmem>>, %arg7: memref<8x384xf32, #tpu.memory_space<vmem>>, %arg8: memref<72x128xf32, #tpu.memory_space<vmem>>) attributes {dimension_semantics = [], scalar_prefetch = 0 : i64, scratch_operands = 2 : i64, tpu.core_type = #tpu.core_type<tc>} {
    %cst = arith.constant 0.000000e+00 : f32
    %0 = vector.broadcast %cst : f32 to vector<8x384xf32>
    %c0 = arith.constant 0 : index
    %c0_0 = arith.constant 0 : index
    %1 = vector.load %arg7[%c0, %c0_0] : memref<8x384xf32, #tpu.memory_space<vmem>>, vector<8x384xf32>
    tpu.vector_store %arg7[%c0, %c0_0], %0 {strides = array<i32>} : memref<8x384xf32, #tpu.memory_space<vmem>>, vector<8x384xf32>,
    %c0_1 = arith.constant 0 : index
    %c0_2 = arith.constant 0 : index
    %2 = vector.load %arg1[%c0_1, %c0_2] : memref<8x40xf32, #tpu.memory_space<vmem>>, vector<8x40xf32>
    %c0_3 = arith.constant 0 : index
    %c0_4 = arith.constant 0 : index
    %3 = vector.load %arg0[%c0_3, %c0_4] : memref<40x128xf32, #tpu.memory_space<vmem>>, vector<40x128xf32>
    %cst_5 = arith.constant dense<0.000000e+00> : vector<8x128xf32>
    %4 = tpu.matmul %2, %3, %cst_5 {dimension_numbers = #tpu.dot_dimension_numbers<[1], [0], [0], [1], [0, 0, 1, 1], [], []>} : vector<8x40xf32>, vector<40x128xf32>, vector<8x128xf32> -> vector<8x128xf32>
    %cst_6 = arith.constant dense<0.000000e+00> : vector<8xf32>
    %5 = vector.multi_reduction <add>, %4, %cst_6 [1] : vector<8x128xf32> to vector<8xf32>
    %6 = vector.shape_cast %5 : vector<8xf32> to vector<8x1xf32>
    %7 = arith.mulf %4, %4 : vector<8x128xf32>
    %cst_7 = arith.constant dense<0.000000e+00> : vector<8xf32>
    %8 = vector.multi_reduction <add>, %7, %cst_7 [1] : vector<8x128xf32> to vector<8xf32>
    %9 = vector.shape_cast %8 : vector<8xf32> to vector<8x1xf32>
    %cst_8 = arith.constant 7.812500e-03 : f32
    %10 = vector.broadcast %cst_8 : f32 to vector<8x1xf32>
    %11 = arith.mulf %6, %10 : vector<8x1xf32>
    %cst_9 = arith.constant 7.812500e-03 : f32
    %12 = vector.broadcast %cst_9 : f32 to vector<8x1xf32>
    %13 = arith.mulf %9, %12 : vector<8x1xf32>
    %14 = arith.mulf %11, %11 : vector<8x1xf32>
    %15 = arith.subf %13, %14 : vector<8x1xf32>
    %cst_10 = arith.constant 0.000000e+00 : f32
    %16 = vector.broadcast %cst_10 : f32 to vector<8x1xf32>
    %17 = arith.maximumf %15, %16 : vector<8x1xf32>
    %c0_11 = arith.constant 0 : index
    %c0_12 = arith.constant 0 : index
    %18 = vector.load %arg3[%c0_11, %c0_12] : memref<8x12xf32, #tpu.memory_space<vmem>>, vector<8x1xf32>
    %c0_13 = arith.constant 0 : index
    %c0_14 = arith.constant 0 : index
    %19 = vector.load %arg4[%c0_13, %c0_14] : memref<8x12xf32, #tpu.memory_space<vmem>>, vector<8x1xf32>
    %cst_15 = arith.constant 9.99999974E-6 : f32
    %20 = vector.broadcast %cst_15 : f32 to vector<8x1xf32>
    %21 = arith.addf %17, %20 : vector<8x1xf32>
    %22 = math.rsqrt %21 : vector<8x1xf32>
    %23 = arith.mulf %18, %22 : vector<8x1xf32>
    %24 = arith.mulf %11, %23 : vector<8x1xf32>
    %25 = arith.subf %19, %24 : vector<8x1xf32>
    %26 = vector.broadcast %23 : vector<8x1xf32> to vector<8x128xf32>
    %27 = arith.mulf %4, %26 : vector<8x128xf32>
    %28 = vector.broadcast %25 : vector<8x1xf32> to vector<8x128xf32>
    %29 = arith.addf %27, %28 : vector<8x128xf32>
    %cst_16 = arith.constant 0.000000e+00 : f32
    %30 = vector.broadcast %cst_16 : f32 to vector<8x128xf32>
    %31 = arith.maximumf %29, %30 : vector<8x128xf32>
    %c0_17 = arith.constant 0 : index
    %c128 = arith.constant 128 : index
    %32 = vector.load %arg7[%c0_17, %c128] : memref<8x384xf32, #tpu.memory_space<vmem>>, vector<8x128xf32>
    tpu.vector_store %arg7[%c0_17, %c128], %31 {strides = array<i32>} : memref<8x384xf32, #tpu.memory_space<vmem>>, vector<8x128xf32>,
    %c0_18 = arith.constant 0 : index
    %c119 = arith.constant 119 : index
    %33 = vector.load %arg7[%c0_18, %c119] : memref<8x384xf32, #tpu.memory_space<vmem>>, vector<8x128xf32>
    %c0_19 = arith.constant 0 : index
    %c0_20 = arith.constant 0 : index
    %34 = vector.load %arg5[%c0_19, %c0_20] : memref<72x128xf32, #tpu.memory_space<vmem>>, vector<8x128xf32>
    %35 = arith.mulf %33, %34 : vector<8x128xf32>
    %c0_21 = arith.constant 0 : index
    %c0_22 = arith.constant 0 : index
    %36 = vector.load %arg8[%c0_21, %c0_22] : memref<72x128xf32, #tpu.memory_space<vmem>>, vector<8x128xf32>
    tpu.vector_store %arg8[%c0_21, %c0_22], %35 {strides = array<i32>} : memref<72x128xf32, #tpu.memory_space<vmem>>, vector<8x128xf32>,
    %c0_23 = arith.constant 0 : index
    %c120 = arith.constant 120 : index
    %37 = vector.load %arg7[%c0_23, %c120] : memref<8x384xf32, #tpu.memory_space<vmem>>, vector<8x128xf32>
    %c8 = arith.constant 8 : index
    %c0_24 = arith.constant 0 : index
    %38 = vector.load %arg5[%c8, %c0_24] : memref<72x128xf32, #tpu.memory_space<vmem>>, vector<8x128xf32>
    %39 = arith.mulf %37, %38 : vector<8x128xf32>
    %c8_25 = arith.constant 8 : index
    %c0_26 = arith.constant 0 : index
    %40 = vector.load %arg8[%c8_25, %c0_26] : memref<72x128xf32, #tpu.memory_space<vmem>>, vector<8x128xf32>
    tpu.vector_store %arg8[%c8_25, %c0_26], %39 {strides = array<i32>} : memref<72x128xf32, #tpu.memory_space<vmem>>, vector<8x128xf32>,
    %c0_27 = arith.constant 0 : index
    %c121 = arith.constant 121 : index
    %41 = vector.load %arg7[%c0_27, %c121] : memref<8x384xf32, #tpu.memory_space<vmem>>, vector<8x128xf32>
    %c16 = arith.constant 16 : index
    %c0_28 = arith.constant 0 : index
    %42 = vector.load %arg5[%c16, %c0_28] : memref<72x128xf32, #tpu.memory_space<vmem>>, vector<8x128xf32>
    %43 = arith.mulf %41, %42 : vector<8x128xf32>
    %c16_29 = arith.constant 16 : index
    %c0_30 = arith.constant 0 : index
    %44 = vector.load %arg8[%c16_29, %c0_30] : memref<72x128xf32, #tpu.memory_space<vmem>>, vector<8x128xf32>
    tpu.vector_store %arg8[%c16_29, %c0_30], %43 {strides = array<i32>} : memref<72x128xf32, #tpu.memory_space<vmem>>, vector<8x128xf32>,
    %c0_31 = arith.constant 0 : index
    %c127 = arith.constant 127 : index
    %45 = vector.load %arg7[%c0_31, %c127] : memref<8x384xf32, #tpu.memory_space<vmem>>, vector<8x128xf32>
    %c24 = arith.constant 24 : index
    %c0_32 = arith.constant 0 : index
    %46 = vector.load %arg5[%c24, %c0_32] : memref<72x128xf32, #tpu.memory_space<vmem>>, vector<8x128xf32>
    %47 = arith.mulf %45, %46 : vector<8x128xf32>
    %c24_33 = arith.constant 24 : index
    %c0_34 = arith.constant 0 : index
    %48 = vector.load %arg8[%c24_33, %c0_34] : memref<72x128xf32, #tpu.memory_space<vmem>>, vector<8x128xf32>
    tpu.vector_store %arg8[%c24_33, %c0_34], %47 {strides = array<i32>} : memref<72x128xf32, #tpu.memory_space<vmem>>, vector<8x128xf32>,
    %c0_35 = arith.constant 0 : index
    %c128_36 = arith.constant 128 : index
    %49 = vector.load %arg7[%c0_35, %c128_36] : memref<8x384xf32, #tpu.memory_space<vmem>>, vector<8x128xf32>
    %c32 = arith.constant 32 : index
    %c0_37 = arith.constant 0 : index
    %50 = vector.load %arg5[%c32, %c0_37] : memref<72x128xf32, #tpu.memory_space<vmem>>, vector<8x128xf32>
    %51 = arith.mulf %49, %50 : vector<8x128xf32>
    %c32_38 = arith.constant 32 : index
    %c0_39 = arith.constant 0 : index
    %52 = vector.load %arg8[%c32_38, %c0_39] : memref<72x128xf32, #tpu.memory_space<vmem>>, vector<8x128xf32>
    tpu.vector_store %arg8[%c32_38, %c0_39], %51 {strides = array<i32>} : memref<72x128xf32, #tpu.memory_space<vmem>>, vector<8x128xf32>,
    %c0_40 = arith.constant 0 : index
    %c129 = arith.constant 129 : index
    %53 = vector.load %arg7[%c0_40, %c129] : memref<8x384xf32, #tpu.memory_space<vmem>>, vector<8x128xf32>
    %c40 = arith.constant 40 : index
    %c0_41 = arith.constant 0 : index
    %54 = vector.load %arg5[%c40, %c0_41] : memref<72x128xf32, #tpu.memory_space<vmem>>, vector<8x128xf32>
    %55 = arith.mulf %53, %54 : vector<8x128xf32>
    %c40_42 = arith.constant 40 : index
    %c0_43 = arith.constant 0 : index
    %56 = vector.load %arg8[%c40_42, %c0_43] : memref<72x128xf32, #tpu.memory_space<vmem>>, vector<8x128xf32>
    tpu.vector_store %arg8[%c40_42, %c0_43], %55 {strides = array<i32>} : memref<72x128xf32, #tpu.memory_space<vmem>>, vector<8x128xf32>,
    %c0_44 = arith.constant 0 : index
    %c135 = arith.constant 135 : index
    %57 = vector.load %arg7[%c0_44, %c135] : memref<8x384xf32, #tpu.memory_space<vmem>>, vector<8x128xf32>
    %c48 = arith.constant 48 : index
    %c0_45 = arith.constant 0 : index
    %58 = vector.load %arg5[%c48, %c0_45] : memref<72x128xf32, #tpu.memory_space<vmem>>, vector<8x128xf32>
    %59 = arith.mulf %57, %58 : vector<8x128xf32>
    %c48_46 = arith.constant 48 : index
    %c0_47 = arith.constant 0 : index
    %60 = vector.load %arg8[%c48_46, %c0_47] : memref<72x128xf32, #tpu.memory_space<vmem>>, vector<8x128xf32>
    tpu.vector_store %arg8[%c48_46, %c0_47], %59 {strides = array<i32>} : memref<72x128xf32, #tpu.memory_space<vmem>>, vector<8x128xf32>,
    %c0_48 = arith.constant 0 : index
    %c136 = arith.constant 136 : index
    %61 = vector.load %arg7[%c0_48, %c136] : memref<8x384xf32, #tpu.memory_space<vmem>>, vector<8x128xf32>
    %c56 = arith.constant 56 : index
    %c0_49 = arith.constant 0 : index
    %62 = vector.load %arg5[%c56, %c0_49] : memref<72x128xf32, #tpu.memory_space<vmem>>, vector<8x128xf32>
    %63 = arith.mulf %61, %62 : vector<8x128xf32>
    %c56_50 = arith.constant 56 : index
    %c0_51 = arith.constant 0 : index
    %64 = vector.load %arg8[%c56_50, %c0_51] : memref<72x128xf32, #tpu.memory_space<vmem>>, vector<8x128xf32>
    tpu.vector_store %arg8[%c56_50, %c0_51], %63 {strides = array<i32>} : memref<72x128xf32, #tpu.memory_space<vmem>>, vector<8x128xf32>,
    %c0_52 = arith.constant 0 : index
    %c137 = arith.constant 137 : index
    %65 = vector.load %arg7[%c0_52, %c137] : memref<8x384xf32, #tpu.memory_space<vmem>>, vector<8x128xf32>
    %c64 = arith.constant 64 : index
    %c0_53 = arith.constant 0 : index
    %66 = vector.load %arg5[%c64, %c0_53] : memref<72x128xf32, #tpu.memory_space<vmem>>, vector<8x128xf32>
    %67 = arith.mulf %65, %66 : vector<8x128xf32>
    %c64_54 = arith.constant 64 : index
    %c0_55 = arith.constant 0 : index
    %68 = vector.load %arg8[%c64_54, %c0_55] : memref<72x128xf32, #tpu.memory_space<vmem>>, vector<8x128xf32>
    tpu.vector_store %arg8[%c64_54, %c0_55], %67 {strides = array<i32>} : memref<72x128xf32, #tpu.memory_space<vmem>>, vector<8x128xf32>,
    %c0_56 = arith.constant 0 : index
    %c0_57 = arith.constant 0 : index
    %c0_58 = arith.constant 0 : index
    %69 = vector.load %arg2[%c0_56, %c0_57, %c0_58] : memref<11x8x72xf32, #tpu.memory_space<vmem>>, vector<1x8x72xf32>
    %70 = vector.shape_cast %69 : vector<1x8x72xf32> to vector<8x72xf32>
    %c0_59 = arith.constant 0 : index
    %c0_60 = arith.constant 0 : index
    %71 = vector.load %arg8[%c0_59, %c0_60] : memref<72x128xf32, #tpu.memory_space<vmem>>, vector<72x128xf32>
    %cst_61 = arith.constant dense<0.000000e+00> : vector<8x128xf32>
    %72 = tpu.matmul %70, %71, %cst_61 {dimension_numbers = #tpu.dot_dimension_numbers<[1], [0], [0], [1], [0, 0, 1, 1], [], []>} : vector<8x72xf32>, vector<72x128xf32>, vector<8x128xf32> -> vector<8x128xf32>
    %cst_62 = arith.constant dense<0.000000e+00> : vector<8xf32>
    %73 = vector.multi_reduction <add>, %72, %cst_62 [1] : vector<8x128xf32> to vector<8xf32>
    %74 = vector.shape_cast %73 : vector<8xf32> to vector<8x1xf32>
    %75 = arith.mulf %72, %72 : vector<8x128xf32>
    %cst_63 = arith.constant dense<0.000000e+00> : vector<8xf32>
    %76 = vector.multi_reduction <add>, %75, %cst_63 [1] : vector<8x128xf32> to vector<8xf32>
    %77 = vector.shape_cast %76 : vector<8xf32> to vector<8x1xf32>
    %cst_64 = arith.constant 7.812500e-03 : f32
    %78 = vector.broadcast %cst_64 : f32 to vector<8x1xf32>
    %79 = arith.mulf %74, %78 : vector<8x1xf32>
    %cst_65 = arith.constant 7.812500e-03 : f32
    %80 = vector.broadcast %cst_65 : f32 to vector<8x1xf32>
    %81 = arith.mulf %77, %80 : vector<8x1xf32>
    %82 = arith.mulf %79, %79 : vector<8x1xf32>
    %83 = arith.subf %81, %82 : vector<8x1xf32>
    %cst_66 = arith.constant 0.000000e+00 : f32
    %84 = vector.broadcast %cst_66 : f32 to vector<8x1xf32>
    %85 = arith.maximumf %83, %84 : vector<8x1xf32>
    %c0_67 = arith.constant 0 : index
    %c1 = arith.constant 1 : index
    %86 = vector.load %arg3[%c0_67, %c1] : memref<8x12xf32, #tpu.memory_space<vmem>>, vector<8x1xf32>
    %c0_68 = arith.constant 0 : index
    %c1_69 = arith.constant 1 : index
    %87 = vector.load %arg4[%c0_68, %c1_69] : memref<8x12xf32, #tpu.memory_space<vmem>>, vector<8x1xf32>
    %cst_70 = arith.constant 9.99999974E-6 : f32
    %88 = vector.broadcast %cst_70 : f32 to vector<8x1xf32>
    %89 = arith.addf %85, %88 : vector<8x1xf32>
    %90 = math.rsqrt %89 : vector<8x1xf32>
    %91 = arith.mulf %86, %90 : vector<8x1xf32>
    %92 = arith.mulf %79, %91 : vector<8x1xf32>
    %93 = arith.subf %87, %92 : vector<8x1xf32>
    %94 = vector.broadcast %91 : vector<8x1xf32> to vector<8x128xf32>
    %95 = arith.mulf %72, %94 : vector<8x128xf32>
    %96 = vector.broadcast %93 : vector<8x1xf32> to vector<8x128xf32>
    %97 = arith.addf %95, %96 : vector<8x128xf32>
    %cst_71 = arith.constant 0.000000e+00 : f32
    %98 = vector.broadcast %cst_71 : f32 to vector<8x128xf32>
    %99 = arith.maximumf %97, %98 : vector<8x128xf32>
    %c0_72 = arith.constant 0 : index
    %c128_73 = arith.constant 128 : index
    %100 = vector.load %arg7[%c0_72, %c128_73] : memref<8x384xf32, #tpu.memory_space<vmem>>, vector<8x128xf32>
    tpu.vector_store %arg7[%c0_72, %c128_73], %99 {strides = array<i32>} : memref<8x384xf32, #tpu.memory_space<vmem>>, vector<8x128xf32>,
    %c0_74 = arith.constant 0 : index
    %c119_75 = arith.constant 119 : index
    %101 = vector.load %arg7[%c0_74, %c119_75] : memref<8x384xf32, #tpu.memory_space<vmem>>, vector<8x128xf32>
    %c0_76 = arith.constant 0 : index
    %c0_77 = arith.constant 0 : index
    %102 = vector.load %arg5[%c0_76, %c0_77] : memref<72x128xf32, #tpu.memory_space<vmem>>, vector<8x128xf32>
    %103 = arith.mulf %101, %102 : vector<8x128xf32>
    %c0_78 = arith.constant 0 : index
    %c0_79 = arith.constant 0 : index
    %104 = vector.load %arg8[%c0_78, %c0_79] : memref<72x128xf32, #tpu.memory_space<vmem>>, vector<8x128xf32>
    tpu.vector_store %arg8[%c0_78, %c0_79], %103 {strides = array<i32>} : memref<72x128xf32, #tpu.memory_space<vmem>>, vector<8x128xf32>,
    %c0_80 = arith.constant 0 : index
    %c120_81 = arith.constant 120 : index
    %105 = vector.load %arg7[%c0_80, %c120_81] : memref<8x384xf32, #tpu.memory_space<vmem>>, vector<8x128xf32>
    %c8_82 = arith.constant 8 : index
    %c0_83 = arith.constant 0 : index
    %106 = vector.load %arg5[%c8_82, %c0_83] : memref<72x128xf32, #tpu.memory_space<vmem>>, vector<8x128xf32>
    %107 = arith.mulf %105, %106 : vector<8x128xf32>
    %c8_84 = arith.constant 8 : index
    %c0_85 = arith.constant 0 : index
    %108 = vector.load %arg8[%c8_84, %c0_85] : memref<72x128xf32, #tpu.memory_space<vmem>>, vector<8x128xf32>
    tpu.vector_store %arg8[%c8_84, %c0_85], %107 {strides = array<i32>} : memref<72x128xf32, #tpu.memory_space<vmem>>, vector<8x128xf32>,
    %c0_86 = arith.constant 0 : index
    %c121_87 = arith.constant 121 : index
    %109 = vector.load %arg7[%c0_86, %c121_87] : memref<8x384xf32, #tpu.memory_space<vmem>>, vector<8x128xf32>
    %c16_88 = arith.constant 16 : index
    %c0_89 = arith.constant 0 : index
    %110 = vector.load %arg5[%c16_88, %c0_89] : memref<72x128xf32, #tpu.memory_space<vmem>>, vector<8x128xf32>
    %111 = arith.mulf %109, %110 : vector<8x128xf32>
    %c16_90 = arith.constant 16 : index
    %c0_91 = arith.constant 0 : index
    %112 = vector.load %arg8[%c16_90, %c0_91] : memref<72x128xf32, #tpu.memory_space<vmem>>, vector<8x128xf32>
    tpu.vector_store %arg8[%c16_90, %c0_91], %111 {strides = array<i32>} : memref<72x128xf32, #tpu.memory_space<vmem>>, vector<8x128xf32>,
    %c0_92 = arith.constant 0 : index
    %c127_93 = arith.constant 127 : index
    %113 = vector.load %arg7[%c0_92, %c127_93] : memref<8x384xf32, #tpu.memory_space<vmem>>, vector<8x128xf32>
    %c24_94 = arith.constant 24 : index
    %c0_95 = arith.constant 0 : index
    %114 = vector.load %arg5[%c24_94, %c0_95] : memref<72x128xf32, #tpu.memory_space<vmem>>, vector<8x128xf32>
    %115 = arith.mulf %113, %114 : vector<8x128xf32>
    %c24_96 = arith.constant 24 : index
    %c0_97 = arith.constant 0 : index
    %116 = vector.load %arg8[%c24_96, %c0_97] : memref<72x128xf32, #tpu.memory_space<vmem>>, vector<8x128xf32>
    tpu.vector_store %arg8[%c24_96, %c0_97], %115 {strides = array<i32>} : memref<72x128xf32, #tpu.memory_space<vmem>>, vector<8x128xf32>,
    %c0_98 = arith.constant 0 : index
    %c128_99 = arith.constant 128 : index
    %117 = vector.load %arg7[%c0_98, %c128_99] : memref<8x384xf32, #tpu.memory_space<vmem>>, vector<8x128xf32>
    %c32_100 = arith.constant 32 : index
    %c0_101 = arith.constant 0 : index
    %118 = vector.load %arg5[%c32_100, %c0_101] : memref<72x128xf32, #tpu.memory_space<vmem>>, vector<8x128xf32>
    %119 = arith.mulf %117, %118 : vector<8x128xf32>
    %c32_102 = arith.constant 32 : index
    %c0_103 = arith.constant 0 : index
    %120 = vector.load %arg8[%c32_102, %c0_103] : memref<72x128xf32, #tpu.memory_space<vmem>>, vector<8x128xf32>
    tpu.vector_store %arg8[%c32_102, %c0_103], %119 {strides = array<i32>} : memref<72x128xf32, #tpu.memory_space<vmem>>, vector<8x128xf32>,
    %c0_104 = arith.constant 0 : index
    %c129_105 = arith.constant 129 : index
    %121 = vector.load %arg7[%c0_104, %c129_105] : memref<8x384xf32, #tpu.memory_space<vmem>>, vector<8x128xf32>
    %c40_106 = arith.constant 40 : index
    %c0_107 = arith.constant 0 : index
    %122 = vector.load %arg5[%c40_106, %c0_107] : memref<72x128xf32, #tpu.memory_space<vmem>>, vector<8x128xf32>
    %123 = arith.mulf %121, %122 : vector<8x128xf32>
    %c40_108 = arith.constant 40 : index
    %c0_109 = arith.constant 0 : index
    %124 = vector.load %arg8[%c40_108, %c0_109] : memref<72x128xf32, #tpu.memory_space<vmem>>, vector<8x128xf32>
    tpu.vector_store %arg8[%c40_108, %c0_109], %123 {strides = array<i32>} : memref<72x128xf32, #tpu.memory_space<vmem>>, vector<8x128xf32>,
    %c0_110 = arith.constant 0 : index
    %c135_111 = arith.constant 135 : index
    %125 = vector.load %arg7[%c0_110, %c135_111] : memref<8x384xf32, #tpu.memory_space<vmem>>, vector<8x128xf32>
    %c48_112 = arith.constant 48 : index
    %c0_113 = arith.constant 0 : index
    %126 = vector.load %arg5[%c48_112, %c0_113] : memref<72x128xf32, #tpu.memory_space<vmem>>, vector<8x128xf32>
    %127 = arith.mulf %125, %126 : vector<8x128xf32>
    %c48_114 = arith.constant 48 : index
    %c0_115 = arith.constant 0 : index
    %128 = vector.load %arg8[%c48_114, %c0_115] : memref<72x128xf32, #tpu.memory_space<vmem>>, vector<8x128xf32>
    tpu.vector_store %arg8[%c48_114, %c0_115], %127 {strides = array<i32>} : memref<72x128xf32, #tpu.memory_space<vmem>>, vector<8x128xf32>,
    %c0_116 = arith.constant 0 : index
    %c136_117 = arith.constant 136 : index
    %129 = vector.load %arg7[%c0_116, %c136_117] : memref<8x384xf32, #tpu.memory_space<vmem>>, vector<8x128xf32>
    %c56_118 = arith.constant 56 : index
    %c0_119 = arith.constant 0 : index
    %130 = vector.load %arg5[%c56_118, %c0_119] : memref<72x128xf32, #tpu.memory_space<vmem>>, vector<8x128xf32>
    %131 = arith.mulf %129, %130 : vector<8x128xf32>
    %c56_120 = arith.constant 56 : index
    %c0_121 = arith.constant 0 : index
    %132 = vector.load %arg8[%c56_120, %c0_121] : memref<72x128xf32, #tpu.memory_space<vmem>>, vector<8x128xf32>
    tpu.vector_store %arg8[%c56_120, %c0_121], %131 {strides = array<i32>} : memref<72x128xf32, #tpu.memory_space<vmem>>, vector<8x128xf32>,
    %c0_122 = arith.constant 0 : index
    %c137_123 = arith.constant 137 : index
    %133 = vector.load %arg7[%c0_122, %c137_123] : memref<8x384xf32, #tpu.memory_space<vmem>>, vector<8x128xf32>
    %c64_124 = arith.constant 64 : index
    %c0_125 = arith.constant 0 : index
    %134 = vector.load %arg5[%c64_124, %c0_125] : memref<72x128xf32, #tpu.memory_space<vmem>>, vector<8x128xf32>
    %135 = arith.mulf %133, %134 : vector<8x128xf32>
    %c64_126 = arith.constant 64 : index
    %c0_127 = arith.constant 0 : index
    %136 = vector.load %arg8[%c64_126, %c0_127] : memref<72x128xf32, #tpu.memory_space<vmem>>, vector<8x128xf32>
    tpu.vector_store %arg8[%c64_126, %c0_127], %135 {strides = array<i32>} : memref<72x128xf32, #tpu.memory_space<vmem>>, vector<8x128xf32>,
    %c1_128 = arith.constant 1 : index
    %c0_129 = arith.constant 0 : index
    %c0_130 = arith.constant 0 : index
    %137 = vector.load %arg2[%c1_128, %c0_129, %c0_130] : memref<11x8x72xf32, #tpu.memory_space<vmem>>, vector<1x8x72xf32>
    %138 = vector.shape_cast %137 : vector<1x8x72xf32> to vector<8x72xf32>
    %c0_131 = arith.constant 0 : index
    %c0_132 = arith.constant 0 : index
    %139 = vector.load %arg8[%c0_131, %c0_132] : memref<72x128xf32, #tpu.memory_space<vmem>>, vector<72x128xf32>
    %cst_133 = arith.constant dense<0.000000e+00> : vector<8x128xf32>
    %140 = tpu.matmul %138, %139, %cst_133 {dimension_numbers = #tpu.dot_dimension_numbers<[1], [0], [0], [1], [0, 0, 1, 1], [], []>} : vector<8x72xf32>, vector<72x128xf32>, vector<8x128xf32> -> vector<8x128xf32>
    %cst_134 = arith.constant dense<0.000000e+00> : vector<8xf32>
    %141 = vector.multi_reduction <add>, %140, %cst_134 [1] : vector<8x128xf32> to vector<8xf32>
    %142 = vector.shape_cast %141 : vector<8xf32> to vector<8x1xf32>
    %143 = arith.mulf %140, %140 : vector<8x128xf32>
    %cst_135 = arith.constant dense<0.000000e+00> : vector<8xf32>
    %144 = vector.multi_reduction <add>, %143, %cst_135 [1] : vector<8x128xf32> to vector<8xf32>
    %145 = vector.shape_cast %144 : vector<8xf32> to vector<8x1xf32>
    %cst_136 = arith.constant 7.812500e-03 : f32
    %146 = vector.broadcast %cst_136 : f32 to vector<8x1xf32>
    %147 = arith.mulf %142, %146 : vector<8x1xf32>
    %cst_137 = arith.constant 7.812500e-03 : f32
    %148 = vector.broadcast %cst_137 : f32 to vector<8x1xf32>
    %149 = arith.mulf %145, %148 : vector<8x1xf32>
    %150 = arith.mulf %147, %147 : vector<8x1xf32>
    %151 = arith.subf %149, %150 : vector<8x1xf32>
    %cst_138 = arith.constant 0.000000e+00 : f32
    %152 = vector.broadcast %cst_138 : f32 to vector<8x1xf32>
    %153 = arith.maximumf %151, %152 : vector<8x1xf32>
    %c0_139 = arith.constant 0 : index
    %c2 = arith.constant 2 : index
    %154 = vector.load %arg3[%c0_139, %c2] : memref<8x12xf32, #tpu.memory_space<vmem>>, vector<8x1xf32>
    %c0_140 = arith.constant 0 : index
    %c2_141 = arith.constant 2 : index
    %155 = vector.load %arg4[%c0_140, %c2_141] : memref<8x12xf32, #tpu.memory_space<vmem>>, vector<8x1xf32>
    %cst_142 = arith.constant 9.99999974E-6 : f32
    %156 = vector.broadcast %cst_142 : f32 to vector<8x1xf32>
    %157 = arith.addf %153, %156 : vector<8x1xf32>
    %158 = math.rsqrt %157 : vector<8x1xf32>
    %159 = arith.mulf %154, %158 : vector<8x1xf32>
    %160 = arith.mulf %147, %159 : vector<8x1xf32>
    %161 = arith.subf %155, %160 : vector<8x1xf32>
    %162 = vector.broadcast %159 : vector<8x1xf32> to vector<8x128xf32>
    %163 = arith.mulf %140, %162 : vector<8x128xf32>
    %164 = vector.broadcast %161 : vector<8x1xf32> to vector<8x128xf32>
    %165 = arith.addf %163, %164 : vector<8x128xf32>
    %cst_143 = arith.constant 0.000000e+00 : f32
    %166 = vector.broadcast %cst_143 : f32 to vector<8x128xf32>
    %167 = arith.maximumf %165, %166 : vector<8x128xf32>
    %c0_144 = arith.constant 0 : index
    %c128_145 = arith.constant 128 : index
    %168 = vector.load %arg7[%c0_144, %c128_145] : memref<8x384xf32, #tpu.memory_space<vmem>>, vector<8x128xf32>
    tpu.vector_store %arg7[%c0_144, %c128_145], %167 {strides = array<i32>} : memref<8x384xf32, #tpu.memory_space<vmem>>, vector<8x128xf32>,
    %c0_146 = arith.constant 0 : index
    %c119_147 = arith.constant 119 : index
    %169 = vector.load %arg7[%c0_146, %c119_147] : memref<8x384xf32, #tpu.memory_space<vmem>>, vector<8x128xf32>
    %c0_148 = arith.constant 0 : index
    %c0_149 = arith.constant 0 : index
    %170 = vector.load %arg5[%c0_148, %c0_149] : memref<72x128xf32, #tpu.memory_space<vmem>>, vector<8x128xf32>
    %171 = arith.mulf %169, %170 : vector<8x128xf32>
    %c0_150 = arith.constant 0 : index
    %c0_151 = arith.constant 0 : index
    %172 = vector.load %arg8[%c0_150, %c0_151] : memref<72x128xf32, #tpu.memory_space<vmem>>, vector<8x128xf32>
    tpu.vector_store %arg8[%c0_150, %c0_151], %171 {strides = array<i32>} : memref<72x128xf32, #tpu.memory_space<vmem>>, vector<8x128xf32>,
    %c0_152 = arith.constant 0 : index
    %c120_153 = arith.constant 120 : index
    %173 = vector.load %arg7[%c0_152, %c120_153] : memref<8x384xf32, #tpu.memory_space<vmem>>, vector<8x128xf32>
    %c8_154 = arith.constant 8 : index
    %c0_155 = arith.constant 0 : index
    %174 = vector.load %arg5[%c8_154, %c0_155] : memref<72x128xf32, #tpu.memory_space<vmem>>, vector<8x128xf32>
    %175 = arith.mulf %173, %174 : vector<8x128xf32>
    %c8_156 = arith.constant 8 : index
    %c0_157 = arith.constant 0 : index
    %176 = vector.load %arg8[%c8_156, %c0_157] : memref<72x128xf32, #tpu.memory_space<vmem>>, vector<8x128xf32>
    tpu.vector_store %arg8[%c8_156, %c0_157], %175 {strides = array<i32>} : memref<72x128xf32, #tpu.memory_space<vmem>>, vector<8x128xf32>,
    %c0_158 = arith.constant 0 : index
    %c121_159 = arith.constant 121 : index
    %177 = vector.load %arg7[%c0_158, %c121_159] : memref<8x384xf32, #tpu.memory_space<vmem>>, vector<8x128xf32>
    %c16_160 = arith.constant 16 : index
    %c0_161 = arith.constant 0 : index
    %178 = vector.load %arg5[%c16_160, %c0_161] : memref<72x128xf32, #tpu.memory_space<vmem>>, vector<8x128xf32>
    %179 = arith.mulf %177, %178 : vector<8x128xf32>
    %c16_162 = arith.constant 16 : index
    %c0_163 = arith.constant 0 : index
    %180 = vector.load %arg8[%c16_162, %c0_163] : memref<72x128xf32, #tpu.memory_space<vmem>>, vector<8x128xf32>
    tpu.vector_store %arg8[%c16_162, %c0_163], %179 {strides = array<i32>} : memref<72x128xf32, #tpu.memory_space<vmem>>, vector<8x128xf32>,
    %c0_164 = arith.constant 0 : index
    %c127_165 = arith.constant 127 : index
    %181 = vector.load %arg7[%c0_164, %c127_165] : memref<8x384xf32, #tpu.memory_space<vmem>>, vector<8x128xf32>
    %c24_166 = arith.constant 24 : index
    %c0_167 = arith.constant 0 : index
    %182 = vector.load %arg5[%c24_166, %c0_167] : memref<72x128xf32, #tpu.memory_space<vmem>>, vector<8x128xf32>
    %183 = arith.mulf %181, %182 : vector<8x128xf32>
    %c24_168 = arith.constant 24 : index
    %c0_169 = arith.constant 0 : index
    %184 = vector.load %arg8[%c24_168, %c0_169] : memref<72x128xf32, #tpu.memory_space<vmem>>, vector<8x128xf32>
    tpu.vector_store %arg8[%c24_168, %c0_169], %183 {strides = array<i32>} : memref<72x128xf32, #tpu.memory_space<vmem>>, vector<8x128xf32>,
    %c0_170 = arith.constant 0 : index
    %c128_171 = arith.constant 128 : index
    %185 = vector.load %arg7[%c0_170, %c128_171] : memref<8x384xf32, #tpu.memory_space<vmem>>, vector<8x128xf32>
    %c32_172 = arith.constant 32 : index
    %c0_173 = arith.constant 0 : index
    %186 = vector.load %arg5[%c32_172, %c0_173] : memref<72x128xf32, #tpu.memory_space<vmem>>, vector<8x128xf32>
    %187 = arith.mulf %185, %186 : vector<8x128xf32>
    %c32_174 = arith.constant 32 : index
    %c0_175 = arith.constant 0 : index
    %188 = vector.load %arg8[%c32_174, %c0_175] : memref<72x128xf32, #tpu.memory_space<vmem>>, vector<8x128xf32>
    tpu.vector_store %arg8[%c32_174, %c0_175], %187 {strides = array<i32>} : memref<72x128xf32, #tpu.memory_space<vmem>>, vector<8x128xf32>,
    %c0_176 = arith.constant 0 : index
    %c129_177 = arith.constant 129 : index
    %189 = vector.load %arg7[%c0_176, %c129_177] : memref<8x384xf32, #tpu.memory_space<vmem>>, vector<8x128xf32>
    %c40_178 = arith.constant 40 : index
    %c0_179 = arith.constant 0 : index
    %190 = vector.load %arg5[%c40_178, %c0_179] : memref<72x128xf32, #tpu.memory_space<vmem>>, vector<8x128xf32>
    %191 = arith.mulf %189, %190 : vector<8x128xf32>
    %c40_180 = arith.constant 40 : index
    %c0_181 = arith.constant 0 : index
    %192 = vector.load %arg8[%c40_180, %c0_181] : memref<72x128xf32, #tpu.memory_space<vmem>>, vector<8x128xf32>
    tpu.vector_store %arg8[%c40_180, %c0_181], %191 {strides = array<i32>} : memref<72x128xf32, #tpu.memory_space<vmem>>, vector<8x128xf32>,
    %c0_182 = arith.constant 0 : index
    %c135_183 = arith.constant 135 : index
    %193 = vector.load %arg7[%c0_182, %c135_183] : memref<8x384xf32, #tpu.memory_space<vmem>>, vector<8x128xf32>
    %c48_184 = arith.constant 48 : index
    %c0_185 = arith.constant 0 : index
    %194 = vector.load %arg5[%c48_184, %c0_185] : memref<72x128xf32, #tpu.memory_space<vmem>>, vector<8x128xf32>
    %195 = arith.mulf %193, %194 : vector<8x128xf32>
    %c48_186 = arith.constant 48 : index
    %c0_187 = arith.constant 0 : index
    %196 = vector.load %arg8[%c48_186, %c0_187] : memref<72x128xf32, #tpu.memory_space<vmem>>, vector<8x128xf32>
    tpu.vector_store %arg8[%c48_186, %c0_187], %195 {strides = array<i32>} : memref<72x128xf32, #tpu.memory_space<vmem>>, vector<8x128xf32>,
    %c0_188 = arith.constant 0 : index
    %c136_189 = arith.constant 136 : index
    %197 = vector.load %arg7[%c0_188, %c136_189] : memref<8x384xf32, #tpu.memory_space<vmem>>, vector<8x128xf32>
    %c56_190 = arith.constant 56 : index
    %c0_191 = arith.constant 0 : index
    %198 = vector.load %arg5[%c56_190, %c0_191] : memref<72x128xf32, #tpu.memory_space<vmem>>, vector<8x128xf32>
    %199 = arith.mulf %197, %198 : vector<8x128xf32>
    %c56_192 = arith.constant 56 : index
    %c0_193 = arith.constant 0 : index
    %200 = vector.load %arg8[%c56_192, %c0_193] : memref<72x128xf32, #tpu.memory_space<vmem>>, vector<8x128xf32>
    tpu.vector_store %arg8[%c56_192, %c0_193], %199 {strides = array<i32>} : memref<72x128xf32, #tpu.memory_space<vmem>>, vector<8x128xf32>,
    %c0_194 = arith.constant 0 : index
    %c137_195 = arith.constant 137 : index
    %201 = vector.load %arg7[%c0_194, %c137_195] : memref<8x384xf32, #tpu.memory_space<vmem>>, vector<8x128xf32>
    %c64_196 = arith.constant 64 : index
    %c0_197 = arith.constant 0 : index
    %202 = vector.load %arg5[%c64_196, %c0_197] : memref<72x128xf32, #tpu.memory_space<vmem>>, vector<8x128xf32>
    %203 = arith.mulf %201, %202 : vector<8x128xf32>
    %c64_198 = arith.constant 64 : index
    %c0_199 = arith.constant 0 : index
    %204 = vector.load %arg8[%c64_198, %c0_199] : memref<72x128xf32, #tpu.memory_space<vmem>>, vector<8x128xf32>
    tpu.vector_store %arg8[%c64_198, %c0_199], %203 {strides = array<i32>} : memref<72x128xf32, #tpu.memory_space<vmem>>, vector<8x128xf32>,
    %c2_200 = arith.constant 2 : index
    %c0_201 = arith.constant 0 : index
    %c0_202 = arith.constant 0 : index
    %205 = vector.load %arg2[%c2_200, %c0_201, %c0_202] : memref<11x8x72xf32, #tpu.memory_space<vmem>>, vector<1x8x72xf32>
    %206 = vector.shape_cast %205 : vector<1x8x72xf32> to vector<8x72xf32>
    %c0_203 = arith.constant 0 : index
    %c0_204 = arith.constant 0 : index
    %207 = vector.load %arg8[%c0_203, %c0_204] : memref<72x128xf32, #tpu.memory_space<vmem>>, vector<72x128xf32>
    %cst_205 = arith.constant dense<0.000000e+00> : vector<8x128xf32>
    %208 = tpu.matmul %206, %207, %cst_205 {dimension_numbers = #tpu.dot_dimension_numbers<[1], [0], [0], [1], [0, 0, 1, 1], [], []>} : vector<8x72xf32>, vector<72x128xf32>, vector<8x128xf32> -> vector<8x128xf32>
    %cst_206 = arith.constant dense<0.000000e+00> : vector<8xf32>
    %209 = vector.multi_reduction <add>, %208, %cst_206 [1] : vector<8x128xf32> to vector<8xf32>
    %210 = vector.shape_cast %209 : vector<8xf32> to vector<8x1xf32>
    %211 = arith.mulf %208, %208 : vector<8x128xf32>
    %cst_207 = arith.constant dense<0.000000e+00> : vector<8xf32>
    %212 = vector.multi_reduction <add>, %211, %cst_207 [1] : vector<8x128xf32> to vector<8xf32>
    %213 = vector.shape_cast %212 : vector<8xf32> to vector<8x1xf32>
    %cst_208 = arith.constant 7.812500e-03 : f32
    %214 = vector.broadcast %cst_208 : f32 to vector<8x1xf32>
    %215 = arith.mulf %210, %214 : vector<8x1xf32>
    %cst_209 = arith.constant 7.812500e-03 : f32
    %216 = vector.broadcast %cst_209 : f32 to vector<8x1xf32>
    %217 = arith.mulf %213, %216 : vector<8x1xf32>
    %218 = arith.mulf %215, %215 : vector<8x1xf32>
    %219 = arith.subf %217, %218 : vector<8x1xf32>
    %cst_210 = arith.constant 0.000000e+00 : f32
    %220 = vector.broadcast %cst_210 : f32 to vector<8x1xf32>
    %221 = arith.maximumf %219, %220 : vector<8x1xf32>
    %c0_211 = arith.constant 0 : index
    %c3 = arith.constant 3 : index
    %222 = vector.load %arg3[%c0_211, %c3] : memref<8x12xf32, #tpu.memory_space<vmem>>, vector<8x1xf32>
    %c0_212 = arith.constant 0 : index
    %c3_213 = arith.constant 3 : index
    %223 = vector.load %arg4[%c0_212, %c3_213] : memref<8x12xf32, #tpu.memory_space<vmem>>, vector<8x1xf32>
    %cst_214 = arith.constant 9.99999974E-6 : f32
    %224 = vector.broadcast %cst_214 : f32 to vector<8x1xf32>
    %225 = arith.addf %221, %224 : vector<8x1xf32>
    %226 = math.rsqrt %225 : vector<8x1xf32>
    %227 = arith.mulf %222, %226 : vector<8x1xf32>
    %228 = arith.mulf %215, %227 : vector<8x1xf32>
    %229 = arith.subf %223, %228 : vector<8x1xf32>
    %230 = vector.broadcast %227 : vector<8x1xf32> to vector<8x128xf32>
    %231 = arith.mulf %208, %230 : vector<8x128xf32>
    %232 = vector.broadcast %229 : vector<8x1xf32> to vector<8x128xf32>
    %233 = arith.addf %231, %232 : vector<8x128xf32>
    %cst_215 = arith.constant 0.000000e+00 : f32
    %234 = vector.broadcast %cst_215 : f32 to vector<8x128xf32>
    %235 = arith.maximumf %233, %234 : vector<8x128xf32>
    %c0_216 = arith.constant 0 : index
    %c128_217 = arith.constant 128 : index
    %236 = vector.load %arg7[%c0_216, %c128_217] : memref<8x384xf32, #tpu.memory_space<vmem>>, vector<8x128xf32>
    tpu.vector_store %arg7[%c0_216, %c128_217], %235 {strides = array<i32>} : memref<8x384xf32, #tpu.memory_space<vmem>>, vector<8x128xf32>,
    %c0_218 = arith.constant 0 : index
    %c119_219 = arith.constant 119 : index
    %237 = vector.load %arg7[%c0_218, %c119_219] : memref<8x384xf32, #tpu.memory_space<vmem>>, vector<8x128xf32>
    %c0_220 = arith.constant 0 : index
    %c0_221 = arith.constant 0 : index
    %238 = vector.load %arg5[%c0_220, %c0_221] : memref<72x128xf32, #tpu.memory_space<vmem>>, vector<8x128xf32>
    %239 = arith.mulf %237, %238 : vector<8x128xf32>
    %c0_222 = arith.constant 0 : index
    %c0_223 = arith.constant 0 : index
    %240 = vector.load %arg8[%c0_222, %c0_223] : memref<72x128xf32, #tpu.memory_space<vmem>>, vector<8x128xf32>
    tpu.vector_store %arg8[%c0_222, %c0_223], %239 {strides = array<i32>} : memref<72x128xf32, #tpu.memory_space<vmem>>, vector<8x128xf32>,
    %c0_224 = arith.constant 0 : index
    %c120_225 = arith.constant 120 : index
    %241 = vector.load %arg7[%c0_224, %c120_225] : memref<8x384xf32, #tpu.memory_space<vmem>>, vector<8x128xf32>
    %c8_226 = arith.constant 8 : index
    %c0_227 = arith.constant 0 : index
    %242 = vector.load %arg5[%c8_226, %c0_227] : memref<72x128xf32, #tpu.memory_space<vmem>>, vector<8x128xf32>
    %243 = arith.mulf %241, %242 : vector<8x128xf32>
    %c8_228 = arith.constant 8 : index
    %c0_229 = arith.constant 0 : index
    %244 = vector.load %arg8[%c8_228, %c0_229] : memref<72x128xf32, #tpu.memory_space<vmem>>, vector<8x128xf32>
    tpu.vector_store %arg8[%c8_228, %c0_229], %243 {strides = array<i32>} : memref<72x128xf32, #tpu.memory_space<vmem>>, vector<8x128xf32>,
    %c0_230 = arith.constant 0 : index
    %c121_231 = arith.constant 121 : index
    %245 = vector.load %arg7[%c0_230, %c121_231] : memref<8x384xf32, #tpu.memory_space<vmem>>, vector<8x128xf32>
    %c16_232 = arith.constant 16 : index
    %c0_233 = arith.constant 0 : index
    %246 = vector.load %arg5[%c16_232, %c0_233] : memref<72x128xf32, #tpu.memory_space<vmem>>, vector<8x128xf32>
    %247 = arith.mulf %245, %246 : vector<8x128xf32>
    %c16_234 = arith.constant 16 : index
    %c0_235 = arith.constant 0 : index
    %248 = vector.load %arg8[%c16_234, %c0_235] : memref<72x128xf32, #tpu.memory_space<vmem>>, vector<8x128xf32>
    tpu.vector_store %arg8[%c16_234, %c0_235], %247 {strides = array<i32>} : memref<72x128xf32, #tpu.memory_space<vmem>>, vector<8x128xf32>,
    %c0_236 = arith.constant 0 : index
    %c127_237 = arith.constant 127 : index
    %249 = vector.load %arg7[%c0_236, %c127_237] : memref<8x384xf32, #tpu.memory_space<vmem>>, vector<8x128xf32>
    %c24_238 = arith.constant 24 : index
    %c0_239 = arith.constant 0 : index
    %250 = vector.load %arg5[%c24_238, %c0_239] : memref<72x128xf32, #tpu.memory_space<vmem>>, vector<8x128xf32>
    %251 = arith.mulf %249, %250 : vector<8x128xf32>
    %c24_240 = arith.constant 24 : index
    %c0_241 = arith.constant 0 : index
    %252 = vector.load %arg8[%c24_240, %c0_241] : memref<72x128xf32, #tpu.memory_space<vmem>>, vector<8x128xf32>
    tpu.vector_store %arg8[%c24_240, %c0_241], %251 {strides = array<i32>} : memref<72x128xf32, #tpu.memory_space<vmem>>, vector<8x128xf32>,
    %c0_242 = arith.constant 0 : index
    %c128_243 = arith.constant 128 : index
    %253 = vector.load %arg7[%c0_242, %c128_243] : memref<8x384xf32, #tpu.memory_space<vmem>>, vector<8x128xf32>
    %c32_244 = arith.constant 32 : index
    %c0_245 = arith.constant 0 : index
    %254 = vector.load %arg5[%c32_244, %c0_245] : memref<72x128xf32, #tpu.memory_space<vmem>>, vector<8x128xf32>
    %255 = arith.mulf %253, %254 : vector<8x128xf32>
    %c32_246 = arith.constant 32 : index
    %c0_247 = arith.constant 0 : index
    %256 = vector.load %arg8[%c32_246, %c0_247] : memref<72x128xf32, #tpu.memory_space<vmem>>, vector<8x128xf32>
    tpu.vector_store %arg8[%c32_246, %c0_247], %255 {strides = array<i32>} : memref<72x128xf32, #tpu.memory_space<vmem>>, vector<8x128xf32>,
    %c0_248 = arith.constant 0 : index
    %c129_249 = arith.constant 129 : index
    %257 = vector.load %arg7[%c0_248, %c129_249] : memref<8x384xf32, #tpu.memory_space<vmem>>, vector<8x128xf32>
    %c40_250 = arith.constant 40 : index
    %c0_251 = arith.constant 0 : index
    %258 = vector.load %arg5[%c40_250, %c0_251] : memref<72x128xf32, #tpu.memory_space<vmem>>, vector<8x128xf32>
    %259 = arith.mulf %257, %258 : vector<8x128xf32>
    %c40_252 = arith.constant 40 : index
    %c0_253 = arith.constant 0 : index
    %260 = vector.load %arg8[%c40_252, %c0_253] : memref<72x128xf32, #tpu.memory_space<vmem>>, vector<8x128xf32>
    tpu.vector_store %arg8[%c40_252, %c0_253], %259 {strides = array<i32>} : memref<72x128xf32, #tpu.memory_space<vmem>>, vector<8x128xf32>,
    %c0_254 = arith.constant 0 : index
    %c135_255 = arith.constant 135 : index
    %261 = vector.load %arg7[%c0_254, %c135_255] : memref<8x384xf32, #tpu.memory_space<vmem>>, vector<8x128xf32>
    %c48_256 = arith.constant 48 : index
    %c0_257 = arith.constant 0 : index
    %262 = vector.load %arg5[%c48_256, %c0_257] : memref<72x128xf32, #tpu.memory_space<vmem>>, vector<8x128xf32>
    %263 = arith.mulf %261, %262 : vector<8x128xf32>
    %c48_258 = arith.constant 48 : index
    %c0_259 = arith.constant 0 : index
    %264 = vector.load %arg8[%c48_258, %c0_259] : memref<72x128xf32, #tpu.memory_space<vmem>>, vector<8x128xf32>
    tpu.vector_store %arg8[%c48_258, %c0_259], %263 {strides = array<i32>} : memref<72x128xf32, #tpu.memory_space<vmem>>, vector<8x128xf32>,
    %c0_260 = arith.constant 0 : index
    %c136_261 = arith.constant 136 : index
    %265 = vector.load %arg7[%c0_260, %c136_261] : memref<8x384xf32, #tpu.memory_space<vmem>>, vector<8x128xf32>
    %c56_262 = arith.constant 56 : index
    %c0_263 = arith.constant 0 : index
    %266 = vector.load %arg5[%c56_262, %c0_263] : memref<72x128xf32, #tpu.memory_space<vmem>>, vector<8x128xf32>
    %267 = arith.mulf %265, %266 : vector<8x128xf32>
    %c56_264 = arith.constant 56 : index
    %c0_265 = arith.constant 0 : index
    %268 = vector.load %arg8[%c56_264, %c0_265] : memref<72x128xf32, #tpu.memory_space<vmem>>, vector<8x128xf32>
    tpu.vector_store %arg8[%c56_264, %c0_265], %267 {strides = array<i32>} : memref<72x128xf32, #tpu.memory_space<vmem>>, vector<8x128xf32>,
    %c0_266 = arith.constant 0 : index
    %c137_267 = arith.constant 137 : index
    %269 = vector.load %arg7[%c0_266, %c137_267] : memref<8x384xf32, #tpu.memory_space<vmem>>, vector<8x128xf32>
    %c64_268 = arith.constant 64 : index
    %c0_269 = arith.constant 0 : index
    %270 = vector.load %arg5[%c64_268, %c0_269] : memref<72x128xf32, #tpu.memory_space<vmem>>, vector<8x128xf32>
    %271 = arith.mulf %269, %270 : vector<8x128xf32>
    %c64_270 = arith.constant 64 : index
    %c0_271 = arith.constant 0 : index
    %272 = vector.load %arg8[%c64_270, %c0_271] : memref<72x128xf32, #tpu.memory_space<vmem>>, vector<8x128xf32>
    tpu.vector_store %arg8[%c64_270, %c0_271], %271 {strides = array<i32>} : memref<72x128xf32, #tpu.memory_space<vmem>>, vector<8x128xf32>,
    %c3_272 = arith.constant 3 : index
    %c0_273 = arith.constant 0 : index
    %c0_274 = arith.constant 0 : index
    %273 = vector.load %arg2[%c3_272, %c0_273, %c0_274] : memref<11x8x72xf32, #tpu.memory_space<vmem>>, vector<1x8x72xf32>
    %274 = vector.shape_cast %273 : vector<1x8x72xf32> to vector<8x72xf32>
    %c0_275 = arith.constant 0 : index
    %c0_276 = arith.constant 0 : index
    %275 = vector.load %arg8[%c0_275, %c0_276] : memref<72x128xf32, #tpu.memory_space<vmem>>, vector<72x128xf32>
    %cst_277 = arith.constant dense<0.000000e+00> : vector<8x128xf32>
    %276 = tpu.matmul %274, %275, %cst_277 {dimension_numbers = #tpu.dot_dimension_numbers<[1], [0], [0], [1], [0, 0, 1, 1], [], []>} : vector<8x72xf32>, vector<72x128xf32>, vector<8x128xf32> -> vector<8x128xf32>
    %cst_278 = arith.constant dense<0.000000e+00> : vector<8xf32>
    %277 = vector.multi_reduction <add>, %276, %cst_278 [1] : vector<8x128xf32> to vector<8xf32>
    %278 = vector.shape_cast %277 : vector<8xf32> to vector<8x1xf32>
    %279 = arith.mulf %276, %276 : vector<8x128xf32>
    %cst_279 = arith.constant dense<0.000000e+00> : vector<8xf32>
    %280 = vector.multi_reduction <add>, %279, %cst_279 [1] : vector<8x128xf32> to vector<8xf32>
    %281 = vector.shape_cast %280 : vector<8xf32> to vector<8x1xf32>
    %cst_280 = arith.constant 7.812500e-03 : f32
    %282 = vector.broadcast %cst_280 : f32 to vector<8x1xf32>
    %283 = arith.mulf %278, %282 : vector<8x1xf32>
    %cst_281 = arith.constant 7.812500e-03 : f32
    %284 = vector.broadcast %cst_281 : f32 to vector<8x1xf32>
    %285 = arith.mulf %281, %284 : vector<8x1xf32>
    %286 = arith.mulf %283, %283 : vector<8x1xf32>
    %287 = arith.subf %285, %286 : vector<8x1xf32>
    %cst_282 = arith.constant 0.000000e+00 : f32
    %288 = vector.broadcast %cst_282 : f32 to vector<8x1xf32>
    %289 = arith.maximumf %287, %288 : vector<8x1xf32>
    %c0_283 = arith.constant 0 : index
    %c4 = arith.constant 4 : index
    %290 = vector.load %arg3[%c0_283, %c4] : memref<8x12xf32, #tpu.memory_space<vmem>>, vector<8x1xf32>
    %c0_284 = arith.constant 0 : index
    %c4_285 = arith.constant 4 : index
    %291 = vector.load %arg4[%c0_284, %c4_285] : memref<8x12xf32, #tpu.memory_space<vmem>>, vector<8x1xf32>
    %cst_286 = arith.constant 9.99999974E-6 : f32
    %292 = vector.broadcast %cst_286 : f32 to vector<8x1xf32>
    %293 = arith.addf %289, %292 : vector<8x1xf32>
    %294 = math.rsqrt %293 : vector<8x1xf32>
    %295 = arith.mulf %290, %294 : vector<8x1xf32>
    %296 = arith.mulf %283, %295 : vector<8x1xf32>
    %297 = arith.subf %291, %296 : vector<8x1xf32>
    %298 = vector.broadcast %295 : vector<8x1xf32> to vector<8x128xf32>
    %299 = arith.mulf %276, %298 : vector<8x128xf32>
    %300 = vector.broadcast %297 : vector<8x1xf32> to vector<8x128xf32>
    %301 = arith.addf %299, %300 : vector<8x128xf32>
    %cst_287 = arith.constant 0.000000e+00 : f32
    %302 = vector.broadcast %cst_287 : f32 to vector<8x128xf32>
    %303 = arith.maximumf %301, %302 : vector<8x128xf32>
    %c0_288 = arith.constant 0 : index
    %c128_289 = arith.constant 128 : index
    %304 = vector.load %arg7[%c0_288, %c128_289] : memref<8x384xf32, #tpu.memory_space<vmem>>, vector<8x128xf32>
    tpu.vector_store %arg7[%c0_288, %c128_289], %303 {strides = array<i32>} : memref<8x384xf32, #tpu.memory_space<vmem>>, vector<8x128xf32>,
    %c0_290 = arith.constant 0 : index
    %c119_291 = arith.constant 119 : index
    %305 = vector.load %arg7[%c0_290, %c119_291] : memref<8x384xf32, #tpu.memory_space<vmem>>, vector<8x128xf32>
    %c0_292 = arith.constant 0 : index
    %c0_293 = arith.constant 0 : index
    %306 = vector.load %arg5[%c0_292, %c0_293] : memref<72x128xf32, #tpu.memory_space<vmem>>, vector<8x128xf32>
    %307 = arith.mulf %305, %306 : vector<8x128xf32>
    %c0_294 = arith.constant 0 : index
    %c0_295 = arith.constant 0 : index
    %308 = vector.load %arg8[%c0_294, %c0_295] : memref<72x128xf32, #tpu.memory_space<vmem>>, vector<8x128xf32>
    tpu.vector_store %arg8[%c0_294, %c0_295], %307 {strides = array<i32>} : memref<72x128xf32, #tpu.memory_space<vmem>>, vector<8x128xf32>,
    %c0_296 = arith.constant 0 : index
    %c120_297 = arith.constant 120 : index
    %309 = vector.load %arg7[%c0_296, %c120_297] : memref<8x384xf32, #tpu.memory_space<vmem>>, vector<8x128xf32>
    %c8_298 = arith.constant 8 : index
    %c0_299 = arith.constant 0 : index
    %310 = vector.load %arg5[%c8_298, %c0_299] : memref<72x128xf32, #tpu.memory_space<vmem>>, vector<8x128xf32>
    %311 = arith.mulf %309, %310 : vector<8x128xf32>
    %c8_300 = arith.constant 8 : index
    %c0_301 = arith.constant 0 : index
    %312 = vector.load %arg8[%c8_300, %c0_301] : memref<72x128xf32, #tpu.memory_space<vmem>>, vector<8x128xf32>
    tpu.vector_store %arg8[%c8_300, %c0_301], %311 {strides = array<i32>} : memref<72x128xf32, #tpu.memory_space<vmem>>, vector<8x128xf32>,
    %c0_302 = arith.constant 0 : index
    %c121_303 = arith.constant 121 : index
    %313 = vector.load %arg7[%c0_302, %c121_303] : memref<8x384xf32, #tpu.memory_space<vmem>>, vector<8x128xf32>
    %c16_304 = arith.constant 16 : index
    %c0_305 = arith.constant 0 : index
    %314 = vector.load %arg5[%c16_304, %c0_305] : memref<72x128xf32, #tpu.memory_space<vmem>>, vector<8x128xf32>
    %315 = arith.mulf %313, %314 : vector<8x128xf32>
    %c16_306 = arith.constant 16 : index
    %c0_307 = arith.constant 0 : index
    %316 = vector.load %arg8[%c16_306, %c0_307] : memref<72x128xf32, #tpu.memory_space<vmem>>, vector<8x128xf32>
    tpu.vector_store %arg8[%c16_306, %c0_307], %315 {strides = array<i32>} : memref<72x128xf32, #tpu.memory_space<vmem>>, vector<8x128xf32>,
    %c0_308 = arith.constant 0 : index
    %c127_309 = arith.constant 127 : index
    %317 = vector.load %arg7[%c0_308, %c127_309] : memref<8x384xf32, #tpu.memory_space<vmem>>, vector<8x128xf32>
    %c24_310 = arith.constant 24 : index
    %c0_311 = arith.constant 0 : index
    %318 = vector.load %arg5[%c24_310, %c0_311] : memref<72x128xf32, #tpu.memory_space<vmem>>, vector<8x128xf32>
    %319 = arith.mulf %317, %318 : vector<8x128xf32>
    %c24_312 = arith.constant 24 : index
    %c0_313 = arith.constant 0 : index
    %320 = vector.load %arg8[%c24_312, %c0_313] : memref<72x128xf32, #tpu.memory_space<vmem>>, vector<8x128xf32>
    tpu.vector_store %arg8[%c24_312, %c0_313], %319 {strides = array<i32>} : memref<72x128xf32, #tpu.memory_space<vmem>>, vector<8x128xf32>,
    %c0_314 = arith.constant 0 : index
    %c128_315 = arith.constant 128 : index
    %321 = vector.load %arg7[%c0_314, %c128_315] : memref<8x384xf32, #tpu.memory_space<vmem>>, vector<8x128xf32>
    %c32_316 = arith.constant 32 : index
    %c0_317 = arith.constant 0 : index
    %322 = vector.load %arg5[%c32_316, %c0_317] : memref<72x128xf32, #tpu.memory_space<vmem>>, vector<8x128xf32>
    %323 = arith.mulf %321, %322 : vector<8x128xf32>
    %c32_318 = arith.constant 32 : index
    %c0_319 = arith.constant 0 : index
    %324 = vector.load %arg8[%c32_318, %c0_319] : memref<72x128xf32, #tpu.memory_space<vmem>>, vector<8x128xf32>
    tpu.vector_store %arg8[%c32_318, %c0_319], %323 {strides = array<i32>} : memref<72x128xf32, #tpu.memory_space<vmem>>, vector<8x128xf32>,
    %c0_320 = arith.constant 0 : index
    %c129_321 = arith.constant 129 : index
    %325 = vector.load %arg7[%c0_320, %c129_321] : memref<8x384xf32, #tpu.memory_space<vmem>>, vector<8x128xf32>
    %c40_322 = arith.constant 40 : index
    %c0_323 = arith.constant 0 : index
    %326 = vector.load %arg5[%c40_322, %c0_323] : memref<72x128xf32, #tpu.memory_space<vmem>>, vector<8x128xf32>
    %327 = arith.mulf %325, %326 : vector<8x128xf32>
    %c40_324 = arith.constant 40 : index
    %c0_325 = arith.constant 0 : index
    %328 = vector.load %arg8[%c40_324, %c0_325] : memref<72x128xf32, #tpu.memory_space<vmem>>, vector<8x128xf32>
    tpu.vector_store %arg8[%c40_324, %c0_325], %327 {strides = array<i32>} : memref<72x128xf32, #tpu.memory_space<vmem>>, vector<8x128xf32>,
    %c0_326 = arith.constant 0 : index
    %c135_327 = arith.constant 135 : index
    %329 = vector.load %arg7[%c0_326, %c135_327] : memref<8x384xf32, #tpu.memory_space<vmem>>, vector<8x128xf32>
    %c48_328 = arith.constant 48 : index
    %c0_329 = arith.constant 0 : index
    %330 = vector.load %arg5[%c48_328, %c0_329] : memref<72x128xf32, #tpu.memory_space<vmem>>, vector<8x128xf32>
    %331 = arith.mulf %329, %330 : vector<8x128xf32>
    %c48_330 = arith.constant 48 : index
    %c0_331 = arith.constant 0 : index
    %332 = vector.load %arg8[%c48_330, %c0_331] : memref<72x128xf32, #tpu.memory_space<vmem>>, vector<8x128xf32>
    tpu.vector_store %arg8[%c48_330, %c0_331], %331 {strides = array<i32>} : memref<72x128xf32, #tpu.memory_space<vmem>>, vector<8x128xf32>,
    %c0_332 = arith.constant 0 : index
    %c136_333 = arith.constant 136 : index
    %333 = vector.load %arg7[%c0_332, %c136_333] : memref<8x384xf32, #tpu.memory_space<vmem>>, vector<8x128xf32>
    %c56_334 = arith.constant 56 : index
    %c0_335 = arith.constant 0 : index
    %334 = vector.load %arg5[%c56_334, %c0_335] : memref<72x128xf32, #tpu.memory_space<vmem>>, vector<8x128xf32>
    %335 = arith.mulf %333, %334 : vector<8x128xf32>
    %c56_336 = arith.constant 56 : index
    %c0_337 = arith.constant 0 : index
    %336 = vector.load %arg8[%c56_336, %c0_337] : memref<72x128xf32, #tpu.memory_space<vmem>>, vector<8x128xf32>
    tpu.vector_store %arg8[%c56_336, %c0_337], %335 {strides = array<i32>} : memref<72x128xf32, #tpu.memory_space<vmem>>, vector<8x128xf32>,
    %c0_338 = arith.constant 0 : index
    %c137_339 = arith.constant 137 : index
    %337 = vector.load %arg7[%c0_338, %c137_339] : memref<8x384xf32, #tpu.memory_space<vmem>>, vector<8x128xf32>
    %c64_340 = arith.constant 64 : index
    %c0_341 = arith.constant 0 : index
    %338 = vector.load %arg5[%c64_340, %c0_341] : memref<72x128xf32, #tpu.memory_space<vmem>>, vector<8x128xf32>
    %339 = arith.mulf %337, %338 : vector<8x128xf32>
    %c64_342 = arith.constant 64 : index
    %c0_343 = arith.constant 0 : index
    %340 = vector.load %arg8[%c64_342, %c0_343] : memref<72x128xf32, #tpu.memory_space<vmem>>, vector<8x128xf32>
    tpu.vector_store %arg8[%c64_342, %c0_343], %339 {strides = array<i32>} : memref<72x128xf32, #tpu.memory_space<vmem>>, vector<8x128xf32>,
    %c4_344 = arith.constant 4 : index
    %c0_345 = arith.constant 0 : index
    %c0_346 = arith.constant 0 : index
    %341 = vector.load %arg2[%c4_344, %c0_345, %c0_346] : memref<11x8x72xf32, #tpu.memory_space<vmem>>, vector<1x8x72xf32>
    %342 = vector.shape_cast %341 : vector<1x8x72xf32> to vector<8x72xf32>
    %c0_347 = arith.constant 0 : index
    %c0_348 = arith.constant 0 : index
    %343 = vector.load %arg8[%c0_347, %c0_348] : memref<72x128xf32, #tpu.memory_space<vmem>>, vector<72x128xf32>
    %cst_349 = arith.constant dense<0.000000e+00> : vector<8x128xf32>
    %344 = tpu.matmul %342, %343, %cst_349 {dimension_numbers = #tpu.dot_dimension_numbers<[1], [0], [0], [1], [0, 0, 1, 1], [], []>} : vector<8x72xf32>, vector<72x128xf32>, vector<8x128xf32> -> vector<8x128xf32>
    %cst_350 = arith.constant dense<0.000000e+00> : vector<8xf32>
    %345 = vector.multi_reduction <add>, %344, %cst_350 [1] : vector<8x128xf32> to vector<8xf32>
    %346 = vector.shape_cast %345 : vector<8xf32> to vector<8x1xf32>
    %347 = arith.mulf %344, %344 : vector<8x128xf32>
    %cst_351 = arith.constant dense<0.000000e+00> : vector<8xf32>
    %348 = vector.multi_reduction <add>, %347, %cst_351 [1] : vector<8x128xf32> to vector<8xf32>
    %349 = vector.shape_cast %348 : vector<8xf32> to vector<8x1xf32>
    %cst_352 = arith.constant 7.812500e-03 : f32
    %350 = vector.broadcast %cst_352 : f32 to vector<8x1xf32>
    %351 = arith.mulf %346, %350 : vector<8x1xf32>
    %cst_353 = arith.constant 7.812500e-03 : f32
    %352 = vector.broadcast %cst_353 : f32 to vector<8x1xf32>
    %353 = arith.mulf %349, %352 : vector<8x1xf32>
    %354 = arith.mulf %351, %351 : vector<8x1xf32>
    %355 = arith.subf %353, %354 : vector<8x1xf32>
    %cst_354 = arith.constant 0.000000e+00 : f32
    %356 = vector.broadcast %cst_354 : f32 to vector<8x1xf32>
    %357 = arith.maximumf %355, %356 : vector<8x1xf32>
    %c0_355 = arith.constant 0 : index
    %c5 = arith.constant 5 : index
    %358 = vector.load %arg3[%c0_355, %c5] : memref<8x12xf32, #tpu.memory_space<vmem>>, vector<8x1xf32>
    %c0_356 = arith.constant 0 : index
    %c5_357 = arith.constant 5 : index
    %359 = vector.load %arg4[%c0_356, %c5_357] : memref<8x12xf32, #tpu.memory_space<vmem>>, vector<8x1xf32>
    %cst_358 = arith.constant 9.99999974E-6 : f32
    %360 = vector.broadcast %cst_358 : f32 to vector<8x1xf32>
    %361 = arith.addf %357, %360 : vector<8x1xf32>
    %362 = math.rsqrt %361 : vector<8x1xf32>
    %363 = arith.mulf %358, %362 : vector<8x1xf32>
    %364 = arith.mulf %351, %363 : vector<8x1xf32>
    %365 = arith.subf %359, %364 : vector<8x1xf32>
    %366 = vector.broadcast %363 : vector<8x1xf32> to vector<8x128xf32>
    %367 = arith.mulf %344, %366 : vector<8x128xf32>
    %368 = vector.broadcast %365 : vector<8x1xf32> to vector<8x128xf32>
    %369 = arith.addf %367, %368 : vector<8x128xf32>
    %cst_359 = arith.constant 0.000000e+00 : f32
    %370 = vector.broadcast %cst_359 : f32 to vector<8x128xf32>
    %371 = arith.maximumf %369, %370 : vector<8x128xf32>
    %c0_360 = arith.constant 0 : index
    %c128_361 = arith.constant 128 : index
    %372 = vector.load %arg7[%c0_360, %c128_361] : memref<8x384xf32, #tpu.memory_space<vmem>>, vector<8x128xf32>
    tpu.vector_store %arg7[%c0_360, %c128_361], %371 {strides = array<i32>} : memref<8x384xf32, #tpu.memory_space<vmem>>, vector<8x128xf32>,
    %c0_362 = arith.constant 0 : index
    %c119_363 = arith.constant 119 : index
    %373 = vector.load %arg7[%c0_362, %c119_363] : memref<8x384xf32, #tpu.memory_space<vmem>>, vector<8x128xf32>
    %c0_364 = arith.constant 0 : index
    %c0_365 = arith.constant 0 : index
    %374 = vector.load %arg5[%c0_364, %c0_365] : memref<72x128xf32, #tpu.memory_space<vmem>>, vector<8x128xf32>
    %375 = arith.mulf %373, %374 : vector<8x128xf32>
    %c0_366 = arith.constant 0 : index
    %c0_367 = arith.constant 0 : index
    %376 = vector.load %arg8[%c0_366, %c0_367] : memref<72x128xf32, #tpu.memory_space<vmem>>, vector<8x128xf32>
    tpu.vector_store %arg8[%c0_366, %c0_367], %375 {strides = array<i32>} : memref<72x128xf32, #tpu.memory_space<vmem>>, vector<8x128xf32>,
    %c0_368 = arith.constant 0 : index
    %c120_369 = arith.constant 120 : index
    %377 = vector.load %arg7[%c0_368, %c120_369] : memref<8x384xf32, #tpu.memory_space<vmem>>, vector<8x128xf32>
    %c8_370 = arith.constant 8 : index
    %c0_371 = arith.constant 0 : index
    %378 = vector.load %arg5[%c8_370, %c0_371] : memref<72x128xf32, #tpu.memory_space<vmem>>, vector<8x128xf32>
    %379 = arith.mulf %377, %378 : vector<8x128xf32>
    %c8_372 = arith.constant 8 : index
    %c0_373 = arith.constant 0 : index
    %380 = vector.load %arg8[%c8_372, %c0_373] : memref<72x128xf32, #tpu.memory_space<vmem>>, vector<8x128xf32>
    tpu.vector_store %arg8[%c8_372, %c0_373], %379 {strides = array<i32>} : memref<72x128xf32, #tpu.memory_space<vmem>>, vector<8x128xf32>,
    %c0_374 = arith.constant 0 : index
    %c121_375 = arith.constant 121 : index
    %381 = vector.load %arg7[%c0_374, %c121_375] : memref<8x384xf32, #tpu.memory_space<vmem>>, vector<8x128xf32>
    %c16_376 = arith.constant 16 : index
    %c0_377 = arith.constant 0 : index
    %382 = vector.load %arg5[%c16_376, %c0_377] : memref<72x128xf32, #tpu.memory_space<vmem>>, vector<8x128xf32>
    %383 = arith.mulf %381, %382 : vector<8x128xf32>
    %c16_378 = arith.constant 16 : index
    %c0_379 = arith.constant 0 : index
    %384 = vector.load %arg8[%c16_378, %c0_379] : memref<72x128xf32, #tpu.memory_space<vmem>>, vector<8x128xf32>
    tpu.vector_store %arg8[%c16_378, %c0_379], %383 {strides = array<i32>} : memref<72x128xf32, #tpu.memory_space<vmem>>, vector<8x128xf32>,
    %c0_380 = arith.constant 0 : index
    %c127_381 = arith.constant 127 : index
    %385 = vector.load %arg7[%c0_380, %c127_381] : memref<8x384xf32, #tpu.memory_space<vmem>>, vector<8x128xf32>
    %c24_382 = arith.constant 24 : index
    %c0_383 = arith.constant 0 : index
    %386 = vector.load %arg5[%c24_382, %c0_383] : memref<72x128xf32, #tpu.memory_space<vmem>>, vector<8x128xf32>
    %387 = arith.mulf %385, %386 : vector<8x128xf32>
    %c24_384 = arith.constant 24 : index
    %c0_385 = arith.constant 0 : index
    %388 = vector.load %arg8[%c24_384, %c0_385] : memref<72x128xf32, #tpu.memory_space<vmem>>, vector<8x128xf32>
    tpu.vector_store %arg8[%c24_384, %c0_385], %387 {strides = array<i32>} : memref<72x128xf32, #tpu.memory_space<vmem>>, vector<8x128xf32>,
    %c0_386 = arith.constant 0 : index
    %c128_387 = arith.constant 128 : index
    %389 = vector.load %arg7[%c0_386, %c128_387] : memref<8x384xf32, #tpu.memory_space<vmem>>, vector<8x128xf32>
    %c32_388 = arith.constant 32 : index
    %c0_389 = arith.constant 0 : index
    %390 = vector.load %arg5[%c32_388, %c0_389] : memref<72x128xf32, #tpu.memory_space<vmem>>, vector<8x128xf32>
    %391 = arith.mulf %389, %390 : vector<8x128xf32>
    %c32_390 = arith.constant 32 : index
    %c0_391 = arith.constant 0 : index
    %392 = vector.load %arg8[%c32_390, %c0_391] : memref<72x128xf32, #tpu.memory_space<vmem>>, vector<8x128xf32>
    tpu.vector_store %arg8[%c32_390, %c0_391], %391 {strides = array<i32>} : memref<72x128xf32, #tpu.memory_space<vmem>>, vector<8x128xf32>,
    %c0_392 = arith.constant 0 : index
    %c129_393 = arith.constant 129 : index
    %393 = vector.load %arg7[%c0_392, %c129_393] : memref<8x384xf32, #tpu.memory_space<vmem>>, vector<8x128xf32>
    %c40_394 = arith.constant 40 : index
    %c0_395 = arith.constant 0 : index
    %394 = vector.load %arg5[%c40_394, %c0_395] : memref<72x128xf32, #tpu.memory_space<vmem>>, vector<8x128xf32>
    %395 = arith.mulf %393, %394 : vector<8x128xf32>
    %c40_396 = arith.constant 40 : index
    %c0_397 = arith.constant 0 : index
    %396 = vector.load %arg8[%c40_396, %c0_397] : memref<72x128xf32, #tpu.memory_space<vmem>>, vector<8x128xf32>
    tpu.vector_store %arg8[%c40_396, %c0_397], %395 {strides = array<i32>} : memref<72x128xf32, #tpu.memory_space<vmem>>, vector<8x128xf32>,
    %c0_398 = arith.constant 0 : index
    %c135_399 = arith.constant 135 : index
    %397 = vector.load %arg7[%c0_398, %c135_399] : memref<8x384xf32, #tpu.memory_space<vmem>>, vector<8x128xf32>
    %c48_400 = arith.constant 48 : index
    %c0_401 = arith.constant 0 : index
    %398 = vector.load %arg5[%c48_400, %c0_401] : memref<72x128xf32, #tpu.memory_space<vmem>>, vector<8x128xf32>
    %399 = arith.mulf %397, %398 : vector<8x128xf32>
    %c48_402 = arith.constant 48 : index
    %c0_403 = arith.constant 0 : index
    %400 = vector.load %arg8[%c48_402, %c0_403] : memref<72x128xf32, #tpu.memory_space<vmem>>, vector<8x128xf32>
    tpu.vector_store %arg8[%c48_402, %c0_403], %399 {strides = array<i32>} : memref<72x128xf32, #tpu.memory_space<vmem>>, vector<8x128xf32>,
    %c0_404 = arith.constant 0 : index
    %c136_405 = arith.constant 136 : index
    %401 = vector.load %arg7[%c0_404, %c136_405] : memref<8x384xf32, #tpu.memory_space<vmem>>, vector<8x128xf32>
    %c56_406 = arith.constant 56 : index
    %c0_407 = arith.constant 0 : index
    %402 = vector.load %arg5[%c56_406, %c0_407] : memref<72x128xf32, #tpu.memory_space<vmem>>, vector<8x128xf32>
    %403 = arith.mulf %401, %402 : vector<8x128xf32>
    %c56_408 = arith.constant 56 : index
    %c0_409 = arith.constant 0 : index
    %404 = vector.load %arg8[%c56_408, %c0_409] : memref<72x128xf32, #tpu.memory_space<vmem>>, vector<8x128xf32>
    tpu.vector_store %arg8[%c56_408, %c0_409], %403 {strides = array<i32>} : memref<72x128xf32, #tpu.memory_space<vmem>>, vector<8x128xf32>,
    %c0_410 = arith.constant 0 : index
    %c137_411 = arith.constant 137 : index
    %405 = vector.load %arg7[%c0_410, %c137_411] : memref<8x384xf32, #tpu.memory_space<vmem>>, vector<8x128xf32>
    %c64_412 = arith.constant 64 : index
    %c0_413 = arith.constant 0 : index
    %406 = vector.load %arg5[%c64_412, %c0_413] : memref<72x128xf32, #tpu.memory_space<vmem>>, vector<8x128xf32>
    %407 = arith.mulf %405, %406 : vector<8x128xf32>
    %c64_414 = arith.constant 64 : index
    %c0_415 = arith.constant 0 : index
    %408 = vector.load %arg8[%c64_414, %c0_415] : memref<72x128xf32, #tpu.memory_space<vmem>>, vector<8x128xf32>
    tpu.vector_store %arg8[%c64_414, %c0_415], %407 {strides = array<i32>} : memref<72x128xf32, #tpu.memory_space<vmem>>, vector<8x128xf32>,
    %c5_416 = arith.constant 5 : index
    %c0_417 = arith.constant 0 : index
    %c0_418 = arith.constant 0 : index
    %409 = vector.load %arg2[%c5_416, %c0_417, %c0_418] : memref<11x8x72xf32, #tpu.memory_space<vmem>>, vector<1x8x72xf32>
    %410 = vector.shape_cast %409 : vector<1x8x72xf32> to vector<8x72xf32>
    %c0_419 = arith.constant 0 : index
    %c0_420 = arith.constant 0 : index
    %411 = vector.load %arg8[%c0_419, %c0_420] : memref<72x128xf32, #tpu.memory_space<vmem>>, vector<72x128xf32>
    %cst_421 = arith.constant dense<0.000000e+00> : vector<8x128xf32>
    %412 = tpu.matmul %410, %411, %cst_421 {dimension_numbers = #tpu.dot_dimension_numbers<[1], [0], [0], [1], [0, 0, 1, 1], [], []>} : vector<8x72xf32>, vector<72x128xf32>, vector<8x128xf32> -> vector<8x128xf32>
    %cst_422 = arith.constant dense<0.000000e+00> : vector<8xf32>
    %413 = vector.multi_reduction <add>, %412, %cst_422 [1] : vector<8x128xf32> to vector<8xf32>
    %414 = vector.shape_cast %413 : vector<8xf32> to vector<8x1xf32>
    %415 = arith.mulf %412, %412 : vector<8x128xf32>
    %cst_423 = arith.constant dense<0.000000e+00> : vector<8xf32>
    %416 = vector.multi_reduction <add>, %415, %cst_423 [1] : vector<8x128xf32> to vector<8xf32>
    %417 = vector.shape_cast %416 : vector<8xf32> to vector<8x1xf32>
    %cst_424 = arith.constant 7.812500e-03 : f32
    %418 = vector.broadcast %cst_424 : f32 to vector<8x1xf32>
    %419 = arith.mulf %414, %418 : vector<8x1xf32>
    %cst_425 = arith.constant 7.812500e-03 : f32
    %420 = vector.broadcast %cst_425 : f32 to vector<8x1xf32>
    %421 = arith.mulf %417, %420 : vector<8x1xf32>
    %422 = arith.mulf %419, %419 : vector<8x1xf32>
    %423 = arith.subf %421, %422 : vector<8x1xf32>
    %cst_426 = arith.constant 0.000000e+00 : f32
    %424 = vector.broadcast %cst_426 : f32 to vector<8x1xf32>
    %425 = arith.maximumf %423, %424 : vector<8x1xf32>
    %c0_427 = arith.constant 0 : index
    %c6 = arith.constant 6 : index
    %426 = vector.load %arg3[%c0_427, %c6] : memref<8x12xf32, #tpu.memory_space<vmem>>, vector<8x1xf32>
    %c0_428 = arith.constant 0 : index
    %c6_429 = arith.constant 6 : index
    %427 = vector.load %arg4[%c0_428, %c6_429] : memref<8x12xf32, #tpu.memory_space<vmem>>, vector<8x1xf32>
    %cst_430 = arith.constant 9.99999974E-6 : f32
    %428 = vector.broadcast %cst_430 : f32 to vector<8x1xf32>
    %429 = arith.addf %425, %428 : vector<8x1xf32>
    %430 = math.rsqrt %429 : vector<8x1xf32>
    %431 = arith.mulf %426, %430 : vector<8x1xf32>
    %432 = arith.mulf %419, %431 : vector<8x1xf32>
    %433 = arith.subf %427, %432 : vector<8x1xf32>
    %434 = vector.broadcast %431 : vector<8x1xf32> to vector<8x128xf32>
    %435 = arith.mulf %412, %434 : vector<8x128xf32>
    %436 = vector.broadcast %433 : vector<8x1xf32> to vector<8x128xf32>
    %437 = arith.addf %435, %436 : vector<8x128xf32>
    %cst_431 = arith.constant 0.000000e+00 : f32
    %438 = vector.broadcast %cst_431 : f32 to vector<8x128xf32>
    %439 = arith.maximumf %437, %438 : vector<8x128xf32>
    %c0_432 = arith.constant 0 : index
    %c128_433 = arith.constant 128 : index
    %440 = vector.load %arg7[%c0_432, %c128_433] : memref<8x384xf32, #tpu.memory_space<vmem>>, vector<8x128xf32>
    tpu.vector_store %arg7[%c0_432, %c128_433], %439 {strides = array<i32>} : memref<8x384xf32, #tpu.memory_space<vmem>>, vector<8x128xf32>,
    %c0_434 = arith.constant 0 : index
    %c119_435 = arith.constant 119 : index
    %441 = vector.load %arg7[%c0_434, %c119_435] : memref<8x384xf32, #tpu.memory_space<vmem>>, vector<8x128xf32>
    %c0_436 = arith.constant 0 : index
    %c0_437 = arith.constant 0 : index
    %442 = vector.load %arg5[%c0_436, %c0_437] : memref<72x128xf32, #tpu.memory_space<vmem>>, vector<8x128xf32>
    %443 = arith.mulf %441, %442 : vector<8x128xf32>
    %c0_438 = arith.constant 0 : index
    %c0_439 = arith.constant 0 : index
    %444 = vector.load %arg8[%c0_438, %c0_439] : memref<72x128xf32, #tpu.memory_space<vmem>>, vector<8x128xf32>
    tpu.vector_store %arg8[%c0_438, %c0_439], %443 {strides = array<i32>} : memref<72x128xf32, #tpu.memory_space<vmem>>, vector<8x128xf32>,
    %c0_440 = arith.constant 0 : index
    %c120_441 = arith.constant 120 : index
    %445 = vector.load %arg7[%c0_440, %c120_441] : memref<8x384xf32, #tpu.memory_space<vmem>>, vector<8x128xf32>
    %c8_442 = arith.constant 8 : index
    %c0_443 = arith.constant 0 : index
    %446 = vector.load %arg5[%c8_442, %c0_443] : memref<72x128xf32, #tpu.memory_space<vmem>>, vector<8x128xf32>
    %447 = arith.mulf %445, %446 : vector<8x128xf32>
    %c8_444 = arith.constant 8 : index
    %c0_445 = arith.constant 0 : index
    %448 = vector.load %arg8[%c8_444, %c0_445] : memref<72x128xf32, #tpu.memory_space<vmem>>, vector<8x128xf32>
    tpu.vector_store %arg8[%c8_444, %c0_445], %447 {strides = array<i32>} : memref<72x128xf32, #tpu.memory_space<vmem>>, vector<8x128xf32>,
    %c0_446 = arith.constant 0 : index
    %c121_447 = arith.constant 121 : index
    %449 = vector.load %arg7[%c0_446, %c121_447] : memref<8x384xf32, #tpu.memory_space<vmem>>, vector<8x128xf32>
    %c16_448 = arith.constant 16 : index
    %c0_449 = arith.constant 0 : index
    %450 = vector.load %arg5[%c16_448, %c0_449] : memref<72x128xf32, #tpu.memory_space<vmem>>, vector<8x128xf32>
    %451 = arith.mulf %449, %450 : vector<8x128xf32>
    %c16_450 = arith.constant 16 : index
    %c0_451 = arith.constant 0 : index
    %452 = vector.load %arg8[%c16_450, %c0_451] : memref<72x128xf32, #tpu.memory_space<vmem>>, vector<8x128xf32>
    tpu.vector_store %arg8[%c16_450, %c0_451], %451 {strides = array<i32>} : memref<72x128xf32, #tpu.memory_space<vmem>>, vector<8x128xf32>,
    %c0_452 = arith.constant 0 : index
    %c127_453 = arith.constant 127 : index
    %453 = vector.load %arg7[%c0_452, %c127_453] : memref<8x384xf32, #tpu.memory_space<vmem>>, vector<8x128xf32>
    %c24_454 = arith.constant 24 : index
    %c0_455 = arith.constant 0 : index
    %454 = vector.load %arg5[%c24_454, %c0_455] : memref<72x128xf32, #tpu.memory_space<vmem>>, vector<8x128xf32>
    %455 = arith.mulf %453, %454 : vector<8x128xf32>
    %c24_456 = arith.constant 24 : index
    %c0_457 = arith.constant 0 : index
    %456 = vector.load %arg8[%c24_456, %c0_457] : memref<72x128xf32, #tpu.memory_space<vmem>>, vector<8x128xf32>
    tpu.vector_store %arg8[%c24_456, %c0_457], %455 {strides = array<i32>} : memref<72x128xf32, #tpu.memory_space<vmem>>, vector<8x128xf32>,
    %c0_458 = arith.constant 0 : index
    %c128_459 = arith.constant 128 : index
    %457 = vector.load %arg7[%c0_458, %c128_459] : memref<8x384xf32, #tpu.memory_space<vmem>>, vector<8x128xf32>
    %c32_460 = arith.constant 32 : index
    %c0_461 = arith.constant 0 : index
    %458 = vector.load %arg5[%c32_460, %c0_461] : memref<72x128xf32, #tpu.memory_space<vmem>>, vector<8x128xf32>
    %459 = arith.mulf %457, %458 : vector<8x128xf32>
    %c32_462 = arith.constant 32 : index
    %c0_463 = arith.constant 0 : index
    %460 = vector.load %arg8[%c32_462, %c0_463] : memref<72x128xf32, #tpu.memory_space<vmem>>, vector<8x128xf32>
    tpu.vector_store %arg8[%c32_462, %c0_463], %459 {strides = array<i32>} : memref<72x128xf32, #tpu.memory_space<vmem>>, vector<8x128xf32>,
    %c0_464 = arith.constant 0 : index
    %c129_465 = arith.constant 129 : index
    %461 = vector.load %arg7[%c0_464, %c129_465] : memref<8x384xf32, #tpu.memory_space<vmem>>, vector<8x128xf32>
    %c40_466 = arith.constant 40 : index
    %c0_467 = arith.constant 0 : index
    %462 = vector.load %arg5[%c40_466, %c0_467] : memref<72x128xf32, #tpu.memory_space<vmem>>, vector<8x128xf32>
    %463 = arith.mulf %461, %462 : vector<8x128xf32>
    %c40_468 = arith.constant 40 : index
    %c0_469 = arith.constant 0 : index
    %464 = vector.load %arg8[%c40_468, %c0_469] : memref<72x128xf32, #tpu.memory_space<vmem>>, vector<8x128xf32>
    tpu.vector_store %arg8[%c40_468, %c0_469], %463 {strides = array<i32>} : memref<72x128xf32, #tpu.memory_space<vmem>>, vector<8x128xf32>,
    %c0_470 = arith.constant 0 : index
    %c135_471 = arith.constant 135 : index
    %465 = vector.load %arg7[%c0_470, %c135_471] : memref<8x384xf32, #tpu.memory_space<vmem>>, vector<8x128xf32>
    %c48_472 = arith.constant 48 : index
    %c0_473 = arith.constant 0 : index
    %466 = vector.load %arg5[%c48_472, %c0_473] : memref<72x128xf32, #tpu.memory_space<vmem>>, vector<8x128xf32>
    %467 = arith.mulf %465, %466 : vector<8x128xf32>
    %c48_474 = arith.constant 48 : index
    %c0_475 = arith.constant 0 : index
    %468 = vector.load %arg8[%c48_474, %c0_475] : memref<72x128xf32, #tpu.memory_space<vmem>>, vector<8x128xf32>
    tpu.vector_store %arg8[%c48_474, %c0_475], %467 {strides = array<i32>} : memref<72x128xf32, #tpu.memory_space<vmem>>, vector<8x128xf32>,
    %c0_476 = arith.constant 0 : index
    %c136_477 = arith.constant 136 : index
    %469 = vector.load %arg7[%c0_476, %c136_477] : memref<8x384xf32, #tpu.memory_space<vmem>>, vector<8x128xf32>
    %c56_478 = arith.constant 56 : index
    %c0_479 = arith.constant 0 : index
    %470 = vector.load %arg5[%c56_478, %c0_479] : memref<72x128xf32, #tpu.memory_space<vmem>>, vector<8x128xf32>
    %471 = arith.mulf %469, %470 : vector<8x128xf32>
    %c56_480 = arith.constant 56 : index
    %c0_481 = arith.constant 0 : index
    %472 = vector.load %arg8[%c56_480, %c0_481] : memref<72x128xf32, #tpu.memory_space<vmem>>, vector<8x128xf32>
    tpu.vector_store %arg8[%c56_480, %c0_481], %471 {strides = array<i32>} : memref<72x128xf32, #tpu.memory_space<vmem>>, vector<8x128xf32>,
    %c0_482 = arith.constant 0 : index
    %c137_483 = arith.constant 137 : index
    %473 = vector.load %arg7[%c0_482, %c137_483] : memref<8x384xf32, #tpu.memory_space<vmem>>, vector<8x128xf32>
    %c64_484 = arith.constant 64 : index
    %c0_485 = arith.constant 0 : index
    %474 = vector.load %arg5[%c64_484, %c0_485] : memref<72x128xf32, #tpu.memory_space<vmem>>, vector<8x128xf32>
    %475 = arith.mulf %473, %474 : vector<8x128xf32>
    %c64_486 = arith.constant 64 : index
    %c0_487 = arith.constant 0 : index
    %476 = vector.load %arg8[%c64_486, %c0_487] : memref<72x128xf32, #tpu.memory_space<vmem>>, vector<8x128xf32>
    tpu.vector_store %arg8[%c64_486, %c0_487], %475 {strides = array<i32>} : memref<72x128xf32, #tpu.memory_space<vmem>>, vector<8x128xf32>,
    %c6_488 = arith.constant 6 : index
    %c0_489 = arith.constant 0 : index
    %c0_490 = arith.constant 0 : index
    %477 = vector.load %arg2[%c6_488, %c0_489, %c0_490] : memref<11x8x72xf32, #tpu.memory_space<vmem>>, vector<1x8x72xf32>
    %478 = vector.shape_cast %477 : vector<1x8x72xf32> to vector<8x72xf32>
    %c0_491 = arith.constant 0 : index
    %c0_492 = arith.constant 0 : index
    %479 = vector.load %arg8[%c0_491, %c0_492] : memref<72x128xf32, #tpu.memory_space<vmem>>, vector<72x128xf32>
    %cst_493 = arith.constant dense<0.000000e+00> : vector<8x128xf32>
    %480 = tpu.matmul %478, %479, %cst_493 {dimension_numbers = #tpu.dot_dimension_numbers<[1], [0], [0], [1], [0, 0, 1, 1], [], []>} : vector<8x72xf32>, vector<72x128xf32>, vector<8x128xf32> -> vector<8x128xf32>
    %cst_494 = arith.constant dense<0.000000e+00> : vector<8xf32>
    %481 = vector.multi_reduction <add>, %480, %cst_494 [1] : vector<8x128xf32> to vector<8xf32>
    %482 = vector.shape_cast %481 : vector<8xf32> to vector<8x1xf32>
    %483 = arith.mulf %480, %480 : vector<8x128xf32>
    %cst_495 = arith.constant dense<0.000000e+00> : vector<8xf32>
    %484 = vector.multi_reduction <add>, %483, %cst_495 [1] : vector<8x128xf32> to vector<8xf32>
    %485 = vector.shape_cast %484 : vector<8xf32> to vector<8x1xf32>
    %cst_496 = arith.constant 7.812500e-03 : f32
    %486 = vector.broadcast %cst_496 : f32 to vector<8x1xf32>
    %487 = arith.mulf %482, %486 : vector<8x1xf32>
    %cst_497 = arith.constant 7.812500e-03 : f32
    %488 = vector.broadcast %cst_497 : f32 to vector<8x1xf32>
    %489 = arith.mulf %485, %488 : vector<8x1xf32>
    %490 = arith.mulf %487, %487 : vector<8x1xf32>
    %491 = arith.subf %489, %490 : vector<8x1xf32>
    %cst_498 = arith.constant 0.000000e+00 : f32
    %492 = vector.broadcast %cst_498 : f32 to vector<8x1xf32>
    %493 = arith.maximumf %491, %492 : vector<8x1xf32>
    %c0_499 = arith.constant 0 : index
    %c7 = arith.constant 7 : index
    %494 = vector.load %arg3[%c0_499, %c7] : memref<8x12xf32, #tpu.memory_space<vmem>>, vector<8x1xf32>
    %c0_500 = arith.constant 0 : index
    %c7_501 = arith.constant 7 : index
    %495 = vector.load %arg4[%c0_500, %c7_501] : memref<8x12xf32, #tpu.memory_space<vmem>>, vector<8x1xf32>
    %cst_502 = arith.constant 9.99999974E-6 : f32
    %496 = vector.broadcast %cst_502 : f32 to vector<8x1xf32>
    %497 = arith.addf %493, %496 : vector<8x1xf32>
    %498 = math.rsqrt %497 : vector<8x1xf32>
    %499 = arith.mulf %494, %498 : vector<8x1xf32>
    %500 = arith.mulf %487, %499 : vector<8x1xf32>
    %501 = arith.subf %495, %500 : vector<8x1xf32>
    %502 = vector.broadcast %499 : vector<8x1xf32> to vector<8x128xf32>
    %503 = arith.mulf %480, %502 : vector<8x128xf32>
    %504 = vector.broadcast %501 : vector<8x1xf32> to vector<8x128xf32>
    %505 = arith.addf %503, %504 : vector<8x128xf32>
    %cst_503 = arith.constant 0.000000e+00 : f32
    %506 = vector.broadcast %cst_503 : f32 to vector<8x128xf32>
    %507 = arith.maximumf %505, %506 : vector<8x128xf32>
    %c0_504 = arith.constant 0 : index
    %c128_505 = arith.constant 128 : index
    %508 = vector.load %arg7[%c0_504, %c128_505] : memref<8x384xf32, #tpu.memory_space<vmem>>, vector<8x128xf32>
    tpu.vector_store %arg7[%c0_504, %c128_505], %507 {strides = array<i32>} : memref<8x384xf32, #tpu.memory_space<vmem>>, vector<8x128xf32>,
    %c0_506 = arith.constant 0 : index
    %c119_507 = arith.constant 119 : index
    %509 = vector.load %arg7[%c0_506, %c119_507] : memref<8x384xf32, #tpu.memory_space<vmem>>, vector<8x128xf32>
    %c0_508 = arith.constant 0 : index
    %c0_509 = arith.constant 0 : index
    %510 = vector.load %arg5[%c0_508, %c0_509] : memref<72x128xf32, #tpu.memory_space<vmem>>, vector<8x128xf32>
    %511 = arith.mulf %509, %510 : vector<8x128xf32>
    %c0_510 = arith.constant 0 : index
    %c0_511 = arith.constant 0 : index
    %512 = vector.load %arg8[%c0_510, %c0_511] : memref<72x128xf32, #tpu.memory_space<vmem>>, vector<8x128xf32>
    tpu.vector_store %arg8[%c0_510, %c0_511], %511 {strides = array<i32>} : memref<72x128xf32, #tpu.memory_space<vmem>>, vector<8x128xf32>,
    %c0_512 = arith.constant 0 : index
    %c120_513 = arith.constant 120 : index
    %513 = vector.load %arg7[%c0_512, %c120_513] : memref<8x384xf32, #tpu.memory_space<vmem>>, vector<8x128xf32>
    %c8_514 = arith.constant 8 : index
    %c0_515 = arith.constant 0 : index
    %514 = vector.load %arg5[%c8_514, %c0_515] : memref<72x128xf32, #tpu.memory_space<vmem>>, vector<8x128xf32>
    %515 = arith.mulf %513, %514 : vector<8x128xf32>
    %c8_516 = arith.constant 8 : index
    %c0_517 = arith.constant 0 : index
    %516 = vector.load %arg8[%c8_516, %c0_517] : memref<72x128xf32, #tpu.memory_space<vmem>>, vector<8x128xf32>
    tpu.vector_store %arg8[%c8_516, %c0_517], %515 {strides = array<i32>} : memref<72x128xf32, #tpu.memory_space<vmem>>, vector<8x128xf32>,
    %c0_518 = arith.constant 0 : index
    %c121_519 = arith.constant 121 : index
    %517 = vector.load %arg7[%c0_518, %c121_519] : memref<8x384xf32, #tpu.memory_space<vmem>>, vector<8x128xf32>
    %c16_520 = arith.constant 16 : index
    %c0_521 = arith.constant 0 : index
    %518 = vector.load %arg5[%c16_520, %c0_521] : memref<72x128xf32, #tpu.memory_space<vmem>>, vector<8x128xf32>
    %519 = arith.mulf %517, %518 : vector<8x128xf32>
    %c16_522 = arith.constant 16 : index
    %c0_523 = arith.constant 0 : index
    %520 = vector.load %arg8[%c16_522, %c0_523] : memref<72x128xf32, #tpu.memory_space<vmem>>, vector<8x128xf32>
    tpu.vector_store %arg8[%c16_522, %c0_523], %519 {strides = array<i32>} : memref<72x128xf32, #tpu.memory_space<vmem>>, vector<8x128xf32>,
    %c0_524 = arith.constant 0 : index
    %c127_525 = arith.constant 127 : index
    %521 = vector.load %arg7[%c0_524, %c127_525] : memref<8x384xf32, #tpu.memory_space<vmem>>, vector<8x128xf32>
    %c24_526 = arith.constant 24 : index
    %c0_527 = arith.constant 0 : index
    %522 = vector.load %arg5[%c24_526, %c0_527] : memref<72x128xf32, #tpu.memory_space<vmem>>, vector<8x128xf32>
    %523 = arith.mulf %521, %522 : vector<8x128xf32>
    %c24_528 = arith.constant 24 : index
    %c0_529 = arith.constant 0 : index
    %524 = vector.load %arg8[%c24_528, %c0_529] : memref<72x128xf32, #tpu.memory_space<vmem>>, vector<8x128xf32>
    tpu.vector_store %arg8[%c24_528, %c0_529], %523 {strides = array<i32>} : memref<72x128xf32, #tpu.memory_space<vmem>>, vector<8x128xf32>,
    %c0_530 = arith.constant 0 : index
    %c128_531 = arith.constant 128 : index
    %525 = vector.load %arg7[%c0_530, %c128_531] : memref<8x384xf32, #tpu.memory_space<vmem>>, vector<8x128xf32>
    %c32_532 = arith.constant 32 : index
    %c0_533 = arith.constant 0 : index
    %526 = vector.load %arg5[%c32_532, %c0_533] : memref<72x128xf32, #tpu.memory_space<vmem>>, vector<8x128xf32>
    %527 = arith.mulf %525, %526 : vector<8x128xf32>
    %c32_534 = arith.constant 32 : index
    %c0_535 = arith.constant 0 : index
    %528 = vector.load %arg8[%c32_534, %c0_535] : memref<72x128xf32, #tpu.memory_space<vmem>>, vector<8x128xf32>
    tpu.vector_store %arg8[%c32_534, %c0_535], %527 {strides = array<i32>} : memref<72x128xf32, #tpu.memory_space<vmem>>, vector<8x128xf32>,
    %c0_536 = arith.constant 0 : index
    %c129_537 = arith.constant 129 : index
    %529 = vector.load %arg7[%c0_536, %c129_537] : memref<8x384xf32, #tpu.memory_space<vmem>>, vector<8x128xf32>
    %c40_538 = arith.constant 40 : index
    %c0_539 = arith.constant 0 : index
    %530 = vector.load %arg5[%c40_538, %c0_539] : memref<72x128xf32, #tpu.memory_space<vmem>>, vector<8x128xf32>
    %531 = arith.mulf %529, %530 : vector<8x128xf32>
    %c40_540 = arith.constant 40 : index
    %c0_541 = arith.constant 0 : index
    %532 = vector.load %arg8[%c40_540, %c0_541] : memref<72x128xf32, #tpu.memory_space<vmem>>, vector<8x128xf32>
    tpu.vector_store %arg8[%c40_540, %c0_541], %531 {strides = array<i32>} : memref<72x128xf32, #tpu.memory_space<vmem>>, vector<8x128xf32>,
    %c0_542 = arith.constant 0 : index
    %c135_543 = arith.constant 135 : index
    %533 = vector.load %arg7[%c0_542, %c135_543] : memref<8x384xf32, #tpu.memory_space<vmem>>, vector<8x128xf32>
    %c48_544 = arith.constant 48 : index
    %c0_545 = arith.constant 0 : index
    %534 = vector.load %arg5[%c48_544, %c0_545] : memref<72x128xf32, #tpu.memory_space<vmem>>, vector<8x128xf32>
    %535 = arith.mulf %533, %534 : vector<8x128xf32>
    %c48_546 = arith.constant 48 : index
    %c0_547 = arith.constant 0 : index
    %536 = vector.load %arg8[%c48_546, %c0_547] : memref<72x128xf32, #tpu.memory_space<vmem>>, vector<8x128xf32>
    tpu.vector_store %arg8[%c48_546, %c0_547], %535 {strides = array<i32>} : memref<72x128xf32, #tpu.memory_space<vmem>>, vector<8x128xf32>,
    %c0_548 = arith.constant 0 : index
    %c136_549 = arith.constant 136 : index
    %537 = vector.load %arg7[%c0_548, %c136_549] : memref<8x384xf32, #tpu.memory_space<vmem>>, vector<8x128xf32>
    %c56_550 = arith.constant 56 : index
    %c0_551 = arith.constant 0 : index
    %538 = vector.load %arg5[%c56_550, %c0_551] : memref<72x128xf32, #tpu.memory_space<vmem>>, vector<8x128xf32>
    %539 = arith.mulf %537, %538 : vector<8x128xf32>
    %c56_552 = arith.constant 56 : index
    %c0_553 = arith.constant 0 : index
    %540 = vector.load %arg8[%c56_552, %c0_553] : memref<72x128xf32, #tpu.memory_space<vmem>>, vector<8x128xf32>
    tpu.vector_store %arg8[%c56_552, %c0_553], %539 {strides = array<i32>} : memref<72x128xf32, #tpu.memory_space<vmem>>, vector<8x128xf32>,
    %c0_554 = arith.constant 0 : index
    %c137_555 = arith.constant 137 : index
    %541 = vector.load %arg7[%c0_554, %c137_555] : memref<8x384xf32, #tpu.memory_space<vmem>>, vector<8x128xf32>
    %c64_556 = arith.constant 64 : index
    %c0_557 = arith.constant 0 : index
    %542 = vector.load %arg5[%c64_556, %c0_557] : memref<72x128xf32, #tpu.memory_space<vmem>>, vector<8x128xf32>
    %543 = arith.mulf %541, %542 : vector<8x128xf32>
    %c64_558 = arith.constant 64 : index
    %c0_559 = arith.constant 0 : index
    %544 = vector.load %arg8[%c64_558, %c0_559] : memref<72x128xf32, #tpu.memory_space<vmem>>, vector<8x128xf32>
    tpu.vector_store %arg8[%c64_558, %c0_559], %543 {strides = array<i32>} : memref<72x128xf32, #tpu.memory_space<vmem>>, vector<8x128xf32>,
    %c7_560 = arith.constant 7 : index
    %c0_561 = arith.constant 0 : index
    %c0_562 = arith.constant 0 : index
    %545 = vector.load %arg2[%c7_560, %c0_561, %c0_562] : memref<11x8x72xf32, #tpu.memory_space<vmem>>, vector<1x8x72xf32>
    %546 = vector.shape_cast %545 : vector<1x8x72xf32> to vector<8x72xf32>
    %c0_563 = arith.constant 0 : index
    %c0_564 = arith.constant 0 : index
    %547 = vector.load %arg8[%c0_563, %c0_564] : memref<72x128xf32, #tpu.memory_space<vmem>>, vector<72x128xf32>
    %cst_565 = arith.constant dense<0.000000e+00> : vector<8x128xf32>
    %548 = tpu.matmul %546, %547, %cst_565 {dimension_numbers = #tpu.dot_dimension_numbers<[1], [0], [0], [1], [0, 0, 1, 1], [], []>} : vector<8x72xf32>, vector<72x128xf32>, vector<8x128xf32> -> vector<8x128xf32>
    %cst_566 = arith.constant dense<0.000000e+00> : vector<8xf32>
    %549 = vector.multi_reduction <add>, %548, %cst_566 [1] : vector<8x128xf32> to vector<8xf32>
    %550 = vector.shape_cast %549 : vector<8xf32> to vector<8x1xf32>
    %551 = arith.mulf %548, %548 : vector<8x128xf32>
    %cst_567 = arith.constant dense<0.000000e+00> : vector<8xf32>
    %552 = vector.multi_reduction <add>, %551, %cst_567 [1] : vector<8x128xf32> to vector<8xf32>
    %553 = vector.shape_cast %552 : vector<8xf32> to vector<8x1xf32>
    %cst_568 = arith.constant 7.812500e-03 : f32
    %554 = vector.broadcast %cst_568 : f32 to vector<8x1xf32>
    %555 = arith.mulf %550, %554 : vector<8x1xf32>
    %cst_569 = arith.constant 7.812500e-03 : f32
    %556 = vector.broadcast %cst_569 : f32 to vector<8x1xf32>
    %557 = arith.mulf %553, %556 : vector<8x1xf32>
    %558 = arith.mulf %555, %555 : vector<8x1xf32>
    %559 = arith.subf %557, %558 : vector<8x1xf32>
    %cst_570 = arith.constant 0.000000e+00 : f32
    %560 = vector.broadcast %cst_570 : f32 to vector<8x1xf32>
    %561 = arith.maximumf %559, %560 : vector<8x1xf32>
    %c0_571 = arith.constant 0 : index
    %c8_572 = arith.constant 8 : index
    %562 = vector.load %arg3[%c0_571, %c8_572] : memref<8x12xf32, #tpu.memory_space<vmem>>, vector<8x1xf32>
    %c0_573 = arith.constant 0 : index
    %c8_574 = arith.constant 8 : index
    %563 = vector.load %arg4[%c0_573, %c8_574] : memref<8x12xf32, #tpu.memory_space<vmem>>, vector<8x1xf32>
    %cst_575 = arith.constant 9.99999974E-6 : f32
    %564 = vector.broadcast %cst_575 : f32 to vector<8x1xf32>
    %565 = arith.addf %561, %564 : vector<8x1xf32>
    %566 = math.rsqrt %565 : vector<8x1xf32>
    %567 = arith.mulf %562, %566 : vector<8x1xf32>
    %568 = arith.mulf %555, %567 : vector<8x1xf32>
    %569 = arith.subf %563, %568 : vector<8x1xf32>
    %570 = vector.broadcast %567 : vector<8x1xf32> to vector<8x128xf32>
    %571 = arith.mulf %548, %570 : vector<8x128xf32>
    %572 = vector.broadcast %569 : vector<8x1xf32> to vector<8x128xf32>
    %573 = arith.addf %571, %572 : vector<8x128xf32>
    %cst_576 = arith.constant 0.000000e+00 : f32
    %574 = vector.broadcast %cst_576 : f32 to vector<8x128xf32>
    %575 = arith.maximumf %573, %574 : vector<8x128xf32>
    %c0_577 = arith.constant 0 : index
    %c128_578 = arith.constant 128 : index
    %576 = vector.load %arg7[%c0_577, %c128_578] : memref<8x384xf32, #tpu.memory_space<vmem>>, vector<8x128xf32>
    tpu.vector_store %arg7[%c0_577, %c128_578], %575 {strides = array<i32>} : memref<8x384xf32, #tpu.memory_space<vmem>>, vector<8x128xf32>,
    %c0_579 = arith.constant 0 : index
    %c119_580 = arith.constant 119 : index
    %577 = vector.load %arg7[%c0_579, %c119_580] : memref<8x384xf32, #tpu.memory_space<vmem>>, vector<8x128xf32>
    %c0_581 = arith.constant 0 : index
    %c0_582 = arith.constant 0 : index
    %578 = vector.load %arg5[%c0_581, %c0_582] : memref<72x128xf32, #tpu.memory_space<vmem>>, vector<8x128xf32>
    %579 = arith.mulf %577, %578 : vector<8x128xf32>
    %c0_583 = arith.constant 0 : index
    %c0_584 = arith.constant 0 : index
    %580 = vector.load %arg8[%c0_583, %c0_584] : memref<72x128xf32, #tpu.memory_space<vmem>>, vector<8x128xf32>
    tpu.vector_store %arg8[%c0_583, %c0_584], %579 {strides = array<i32>} : memref<72x128xf32, #tpu.memory_space<vmem>>, vector<8x128xf32>,
    %c0_585 = arith.constant 0 : index
    %c120_586 = arith.constant 120 : index
    %581 = vector.load %arg7[%c0_585, %c120_586] : memref<8x384xf32, #tpu.memory_space<vmem>>, vector<8x128xf32>
    %c8_587 = arith.constant 8 : index
    %c0_588 = arith.constant 0 : index
    %582 = vector.load %arg5[%c8_587, %c0_588] : memref<72x128xf32, #tpu.memory_space<vmem>>, vector<8x128xf32>
    %583 = arith.mulf %581, %582 : vector<8x128xf32>
    %c8_589 = arith.constant 8 : index
    %c0_590 = arith.constant 0 : index
    %584 = vector.load %arg8[%c8_589, %c0_590] : memref<72x128xf32, #tpu.memory_space<vmem>>, vector<8x128xf32>
    tpu.vector_store %arg8[%c8_589, %c0_590], %583 {strides = array<i32>} : memref<72x128xf32, #tpu.memory_space<vmem>>, vector<8x128xf32>,
    %c0_591 = arith.constant 0 : index
    %c121_592 = arith.constant 121 : index
    %585 = vector.load %arg7[%c0_591, %c121_592] : memref<8x384xf32, #tpu.memory_space<vmem>>, vector<8x128xf32>
    %c16_593 = arith.constant 16 : index
    %c0_594 = arith.constant 0 : index
    %586 = vector.load %arg5[%c16_593, %c0_594] : memref<72x128xf32, #tpu.memory_space<vmem>>, vector<8x128xf32>
    %587 = arith.mulf %585, %586 : vector<8x128xf32>
    %c16_595 = arith.constant 16 : index
    %c0_596 = arith.constant 0 : index
    %588 = vector.load %arg8[%c16_595, %c0_596] : memref<72x128xf32, #tpu.memory_space<vmem>>, vector<8x128xf32>
    tpu.vector_store %arg8[%c16_595, %c0_596], %587 {strides = array<i32>} : memref<72x128xf32, #tpu.memory_space<vmem>>, vector<8x128xf32>,
    %c0_597 = arith.constant 0 : index
    %c127_598 = arith.constant 127 : index
    %589 = vector.load %arg7[%c0_597, %c127_598] : memref<8x384xf32, #tpu.memory_space<vmem>>, vector<8x128xf32>
    %c24_599 = arith.constant 24 : index
    %c0_600 = arith.constant 0 : index
    %590 = vector.load %arg5[%c24_599, %c0_600] : memref<72x128xf32, #tpu.memory_space<vmem>>, vector<8x128xf32>
    %591 = arith.mulf %589, %590 : vector<8x128xf32>
    %c24_601 = arith.constant 24 : index
    %c0_602 = arith.constant 0 : index
    %592 = vector.load %arg8[%c24_601, %c0_602] : memref<72x128xf32, #tpu.memory_space<vmem>>, vector<8x128xf32>
    tpu.vector_store %arg8[%c24_601, %c0_602], %591 {strides = array<i32>} : memref<72x128xf32, #tpu.memory_space<vmem>>, vector<8x128xf32>,
    %c0_603 = arith.constant 0 : index
    %c128_604 = arith.constant 128 : index
    %593 = vector.load %arg7[%c0_603, %c128_604] : memref<8x384xf32, #tpu.memory_space<vmem>>, vector<8x128xf32>
    %c32_605 = arith.constant 32 : index
    %c0_606 = arith.constant 0 : index
    %594 = vector.load %arg5[%c32_605, %c0_606] : memref<72x128xf32, #tpu.memory_space<vmem>>, vector<8x128xf32>
    %595 = arith.mulf %593, %594 : vector<8x128xf32>
    %c32_607 = arith.constant 32 : index
    %c0_608 = arith.constant 0 : index
    %596 = vector.load %arg8[%c32_607, %c0_608] : memref<72x128xf32, #tpu.memory_space<vmem>>, vector<8x128xf32>
    tpu.vector_store %arg8[%c32_607, %c0_608], %595 {strides = array<i32>} : memref<72x128xf32, #tpu.memory_space<vmem>>, vector<8x128xf32>,
    %c0_609 = arith.constant 0 : index
    %c129_610 = arith.constant 129 : index
    %597 = vector.load %arg7[%c0_609, %c129_610] : memref<8x384xf32, #tpu.memory_space<vmem>>, vector<8x128xf32>
    %c40_611 = arith.constant 40 : index
    %c0_612 = arith.constant 0 : index
    %598 = vector.load %arg5[%c40_611, %c0_612] : memref<72x128xf32, #tpu.memory_space<vmem>>, vector<8x128xf32>
    %599 = arith.mulf %597, %598 : vector<8x128xf32>
    %c40_613 = arith.constant 40 : index
    %c0_614 = arith.constant 0 : index
    %600 = vector.load %arg8[%c40_613, %c0_614] : memref<72x128xf32, #tpu.memory_space<vmem>>, vector<8x128xf32>
    tpu.vector_store %arg8[%c40_613, %c0_614], %599 {strides = array<i32>} : memref<72x128xf32, #tpu.memory_space<vmem>>, vector<8x128xf32>,
    %c0_615 = arith.constant 0 : index
    %c135_616 = arith.constant 135 : index
    %601 = vector.load %arg7[%c0_615, %c135_616] : memref<8x384xf32, #tpu.memory_space<vmem>>, vector<8x128xf32>
    %c48_617 = arith.constant 48 : index
    %c0_618 = arith.constant 0 : index
    %602 = vector.load %arg5[%c48_617, %c0_618] : memref<72x128xf32, #tpu.memory_space<vmem>>, vector<8x128xf32>
    %603 = arith.mulf %601, %602 : vector<8x128xf32>
    %c48_619 = arith.constant 48 : index
    %c0_620 = arith.constant 0 : index
    %604 = vector.load %arg8[%c48_619, %c0_620] : memref<72x128xf32, #tpu.memory_space<vmem>>, vector<8x128xf32>
    tpu.vector_store %arg8[%c48_619, %c0_620], %603 {strides = array<i32>} : memref<72x128xf32, #tpu.memory_space<vmem>>, vector<8x128xf32>,
    %c0_621 = arith.constant 0 : index
    %c136_622 = arith.constant 136 : index
    %605 = vector.load %arg7[%c0_621, %c136_622] : memref<8x384xf32, #tpu.memory_space<vmem>>, vector<8x128xf32>
    %c56_623 = arith.constant 56 : index
    %c0_624 = arith.constant 0 : index
    %606 = vector.load %arg5[%c56_623, %c0_624] : memref<72x128xf32, #tpu.memory_space<vmem>>, vector<8x128xf32>
    %607 = arith.mulf %605, %606 : vector<8x128xf32>
    %c56_625 = arith.constant 56 : index
    %c0_626 = arith.constant 0 : index
    %608 = vector.load %arg8[%c56_625, %c0_626] : memref<72x128xf32, #tpu.memory_space<vmem>>, vector<8x128xf32>
    tpu.vector_store %arg8[%c56_625, %c0_626], %607 {strides = array<i32>} : memref<72x128xf32, #tpu.memory_space<vmem>>, vector<8x128xf32>,
    %c0_627 = arith.constant 0 : index
    %c137_628 = arith.constant 137 : index
    %609 = vector.load %arg7[%c0_627, %c137_628] : memref<8x384xf32, #tpu.memory_space<vmem>>, vector<8x128xf32>
    %c64_629 = arith.constant 64 : index
    %c0_630 = arith.constant 0 : index
    %610 = vector.load %arg5[%c64_629, %c0_630] : memref<72x128xf32, #tpu.memory_space<vmem>>, vector<8x128xf32>
    %611 = arith.mulf %609, %610 : vector<8x128xf32>
    %c64_631 = arith.constant 64 : index
    %c0_632 = arith.constant 0 : index
    %612 = vector.load %arg8[%c64_631, %c0_632] : memref<72x128xf32, #tpu.memory_space<vmem>>, vector<8x128xf32>
    tpu.vector_store %arg8[%c64_631, %c0_632], %611 {strides = array<i32>} : memref<72x128xf32, #tpu.memory_space<vmem>>, vector<8x128xf32>,
    %c8_633 = arith.constant 8 : index
    %c0_634 = arith.constant 0 : index
    %c0_635 = arith.constant 0 : index
    %613 = vector.load %arg2[%c8_633, %c0_634, %c0_635] : memref<11x8x72xf32, #tpu.memory_space<vmem>>, vector<1x8x72xf32>
    %614 = vector.shape_cast %613 : vector<1x8x72xf32> to vector<8x72xf32>
    %c0_636 = arith.constant 0 : index
    %c0_637 = arith.constant 0 : index
    %615 = vector.load %arg8[%c0_636, %c0_637] : memref<72x128xf32, #tpu.memory_space<vmem>>, vector<72x128xf32>
    %cst_638 = arith.constant dense<0.000000e+00> : vector<8x128xf32>
    %616 = tpu.matmul %614, %615, %cst_638 {dimension_numbers = #tpu.dot_dimension_numbers<[1], [0], [0], [1], [0, 0, 1, 1], [], []>} : vector<8x72xf32>, vector<72x128xf32>, vector<8x128xf32> -> vector<8x128xf32>
    %cst_639 = arith.constant dense<0.000000e+00> : vector<8xf32>
    %617 = vector.multi_reduction <add>, %616, %cst_639 [1] : vector<8x128xf32> to vector<8xf32>
    %618 = vector.shape_cast %617 : vector<8xf32> to vector<8x1xf32>
    %619 = arith.mulf %616, %616 : vector<8x128xf32>
    %cst_640 = arith.constant dense<0.000000e+00> : vector<8xf32>
    %620 = vector.multi_reduction <add>, %619, %cst_640 [1] : vector<8x128xf32> to vector<8xf32>
    %621 = vector.shape_cast %620 : vector<8xf32> to vector<8x1xf32>
    %cst_641 = arith.constant 7.812500e-03 : f32
    %622 = vector.broadcast %cst_641 : f32 to vector<8x1xf32>
    %623 = arith.mulf %618, %622 : vector<8x1xf32>
    %cst_642 = arith.constant 7.812500e-03 : f32
    %624 = vector.broadcast %cst_642 : f32 to vector<8x1xf32>
    %625 = arith.mulf %621, %624 : vector<8x1xf32>
    %626 = arith.mulf %623, %623 : vector<8x1xf32>
    %627 = arith.subf %625, %626 : vector<8x1xf32>
    %cst_643 = arith.constant 0.000000e+00 : f32
    %628 = vector.broadcast %cst_643 : f32 to vector<8x1xf32>
    %629 = arith.maximumf %627, %628 : vector<8x1xf32>
    %c0_644 = arith.constant 0 : index
    %c9 = arith.constant 9 : index
    %630 = vector.load %arg3[%c0_644, %c9] : memref<8x12xf32, #tpu.memory_space<vmem>>, vector<8x1xf32>
    %c0_645 = arith.constant 0 : index
    %c9_646 = arith.constant 9 : index
    %631 = vector.load %arg4[%c0_645, %c9_646] : memref<8x12xf32, #tpu.memory_space<vmem>>, vector<8x1xf32>
    %cst_647 = arith.constant 9.99999974E-6 : f32
    %632 = vector.broadcast %cst_647 : f32 to vector<8x1xf32>
    %633 = arith.addf %629, %632 : vector<8x1xf32>
    %634 = math.rsqrt %633 : vector<8x1xf32>
    %635 = arith.mulf %630, %634 : vector<8x1xf32>
    %636 = arith.mulf %623, %635 : vector<8x1xf32>
    %637 = arith.subf %631, %636 : vector<8x1xf32>
    %638 = vector.broadcast %635 : vector<8x1xf32> to vector<8x128xf32>
    %639 = arith.mulf %616, %638 : vector<8x128xf32>
    %640 = vector.broadcast %637 : vector<8x1xf32> to vector<8x128xf32>
    %641 = arith.addf %639, %640 : vector<8x128xf32>
    %cst_648 = arith.constant 0.000000e+00 : f32
    %642 = vector.broadcast %cst_648 : f32 to vector<8x128xf32>
    %643 = arith.maximumf %641, %642 : vector<8x128xf32>
    %c0_649 = arith.constant 0 : index
    %c128_650 = arith.constant 128 : index
    %644 = vector.load %arg7[%c0_649, %c128_650] : memref<8x384xf32, #tpu.memory_space<vmem>>, vector<8x128xf32>
    tpu.vector_store %arg7[%c0_649, %c128_650], %643 {strides = array<i32>} : memref<8x384xf32, #tpu.memory_space<vmem>>, vector<8x128xf32>,
    %c0_651 = arith.constant 0 : index
    %c119_652 = arith.constant 119 : index
    %645 = vector.load %arg7[%c0_651, %c119_652] : memref<8x384xf32, #tpu.memory_space<vmem>>, vector<8x128xf32>
    %c0_653 = arith.constant 0 : index
    %c0_654 = arith.constant 0 : index
    %646 = vector.load %arg5[%c0_653, %c0_654] : memref<72x128xf32, #tpu.memory_space<vmem>>, vector<8x128xf32>
    %647 = arith.mulf %645, %646 : vector<8x128xf32>
    %c0_655 = arith.constant 0 : index
    %c0_656 = arith.constant 0 : index
    %648 = vector.load %arg8[%c0_655, %c0_656] : memref<72x128xf32, #tpu.memory_space<vmem>>, vector<8x128xf32>
    tpu.vector_store %arg8[%c0_655, %c0_656], %647 {strides = array<i32>} : memref<72x128xf32, #tpu.memory_space<vmem>>, vector<8x128xf32>,
    %c0_657 = arith.constant 0 : index
    %c120_658 = arith.constant 120 : index
    %649 = vector.load %arg7[%c0_657, %c120_658] : memref<8x384xf32, #tpu.memory_space<vmem>>, vector<8x128xf32>
    %c8_659 = arith.constant 8 : index
    %c0_660 = arith.constant 0 : index
    %650 = vector.load %arg5[%c8_659, %c0_660] : memref<72x128xf32, #tpu.memory_space<vmem>>, vector<8x128xf32>
    %651 = arith.mulf %649, %650 : vector<8x128xf32>
    %c8_661 = arith.constant 8 : index
    %c0_662 = arith.constant 0 : index
    %652 = vector.load %arg8[%c8_661, %c0_662] : memref<72x128xf32, #tpu.memory_space<vmem>>, vector<8x128xf32>
    tpu.vector_store %arg8[%c8_661, %c0_662], %651 {strides = array<i32>} : memref<72x128xf32, #tpu.memory_space<vmem>>, vector<8x128xf32>,
    %c0_663 = arith.constant 0 : index
    %c121_664 = arith.constant 121 : index
    %653 = vector.load %arg7[%c0_663, %c121_664] : memref<8x384xf32, #tpu.memory_space<vmem>>, vector<8x128xf32>
    %c16_665 = arith.constant 16 : index
    %c0_666 = arith.constant 0 : index
    %654 = vector.load %arg5[%c16_665, %c0_666] : memref<72x128xf32, #tpu.memory_space<vmem>>, vector<8x128xf32>
    %655 = arith.mulf %653, %654 : vector<8x128xf32>
    %c16_667 = arith.constant 16 : index
    %c0_668 = arith.constant 0 : index
    %656 = vector.load %arg8[%c16_667, %c0_668] : memref<72x128xf32, #tpu.memory_space<vmem>>, vector<8x128xf32>
    tpu.vector_store %arg8[%c16_667, %c0_668], %655 {strides = array<i32>} : memref<72x128xf32, #tpu.memory_space<vmem>>, vector<8x128xf32>,
    %c0_669 = arith.constant 0 : index
    %c127_670 = arith.constant 127 : index
    %657 = vector.load %arg7[%c0_669, %c127_670] : memref<8x384xf32, #tpu.memory_space<vmem>>, vector<8x128xf32>
    %c24_671 = arith.constant 24 : index
    %c0_672 = arith.constant 0 : index
    %658 = vector.load %arg5[%c24_671, %c0_672] : memref<72x128xf32, #tpu.memory_space<vmem>>, vector<8x128xf32>
    %659 = arith.mulf %657, %658 : vector<8x128xf32>
    %c24_673 = arith.constant 24 : index
    %c0_674 = arith.constant 0 : index
    %660 = vector.load %arg8[%c24_673, %c0_674] : memref<72x128xf32, #tpu.memory_space<vmem>>, vector<8x128xf32>
    tpu.vector_store %arg8[%c24_673, %c0_674], %659 {strides = array<i32>} : memref<72x128xf32, #tpu.memory_space<vmem>>, vector<8x128xf32>,
    %c0_675 = arith.constant 0 : index
    %c128_676 = arith.constant 128 : index
    %661 = vector.load %arg7[%c0_675, %c128_676] : memref<8x384xf32, #tpu.memory_space<vmem>>, vector<8x128xf32>
    %c32_677 = arith.constant 32 : index
    %c0_678 = arith.constant 0 : index
    %662 = vector.load %arg5[%c32_677, %c0_678] : memref<72x128xf32, #tpu.memory_space<vmem>>, vector<8x128xf32>
    %663 = arith.mulf %661, %662 : vector<8x128xf32>
    %c32_679 = arith.constant 32 : index
    %c0_680 = arith.constant 0 : index
    %664 = vector.load %arg8[%c32_679, %c0_680] : memref<72x128xf32, #tpu.memory_space<vmem>>, vector<8x128xf32>
    tpu.vector_store %arg8[%c32_679, %c0_680], %663 {strides = array<i32>} : memref<72x128xf32, #tpu.memory_space<vmem>>, vector<8x128xf32>,
    %c0_681 = arith.constant 0 : index
    %c129_682 = arith.constant 129 : index
    %665 = vector.load %arg7[%c0_681, %c129_682] : memref<8x384xf32, #tpu.memory_space<vmem>>, vector<8x128xf32>
    %c40_683 = arith.constant 40 : index
    %c0_684 = arith.constant 0 : index
    %666 = vector.load %arg5[%c40_683, %c0_684] : memref<72x128xf32, #tpu.memory_space<vmem>>, vector<8x128xf32>
    %667 = arith.mulf %665, %666 : vector<8x128xf32>
    %c40_685 = arith.constant 40 : index
    %c0_686 = arith.constant 0 : index
    %668 = vector.load %arg8[%c40_685, %c0_686] : memref<72x128xf32, #tpu.memory_space<vmem>>, vector<8x128xf32>
    tpu.vector_store %arg8[%c40_685, %c0_686], %667 {strides = array<i32>} : memref<72x128xf32, #tpu.memory_space<vmem>>, vector<8x128xf32>,
    %c0_687 = arith.constant 0 : index
    %c135_688 = arith.constant 135 : index
    %669 = vector.load %arg7[%c0_687, %c135_688] : memref<8x384xf32, #tpu.memory_space<vmem>>, vector<8x128xf32>
    %c48_689 = arith.constant 48 : index
    %c0_690 = arith.constant 0 : index
    %670 = vector.load %arg5[%c48_689, %c0_690] : memref<72x128xf32, #tpu.memory_space<vmem>>, vector<8x128xf32>
    %671 = arith.mulf %669, %670 : vector<8x128xf32>
    %c48_691 = arith.constant 48 : index
    %c0_692 = arith.constant 0 : index
    %672 = vector.load %arg8[%c48_691, %c0_692] : memref<72x128xf32, #tpu.memory_space<vmem>>, vector<8x128xf32>
    tpu.vector_store %arg8[%c48_691, %c0_692], %671 {strides = array<i32>} : memref<72x128xf32, #tpu.memory_space<vmem>>, vector<8x128xf32>,
    %c0_693 = arith.constant 0 : index
    %c136_694 = arith.constant 136 : index
    %673 = vector.load %arg7[%c0_693, %c136_694] : memref<8x384xf32, #tpu.memory_space<vmem>>, vector<8x128xf32>
    %c56_695 = arith.constant 56 : index
    %c0_696 = arith.constant 0 : index
    %674 = vector.load %arg5[%c56_695, %c0_696] : memref<72x128xf32, #tpu.memory_space<vmem>>, vector<8x128xf32>
    %675 = arith.mulf %673, %674 : vector<8x128xf32>
    %c56_697 = arith.constant 56 : index
    %c0_698 = arith.constant 0 : index
    %676 = vector.load %arg8[%c56_697, %c0_698] : memref<72x128xf32, #tpu.memory_space<vmem>>, vector<8x128xf32>
    tpu.vector_store %arg8[%c56_697, %c0_698], %675 {strides = array<i32>} : memref<72x128xf32, #tpu.memory_space<vmem>>, vector<8x128xf32>,
    %c0_699 = arith.constant 0 : index
    %c137_700 = arith.constant 137 : index
    %677 = vector.load %arg7[%c0_699, %c137_700] : memref<8x384xf32, #tpu.memory_space<vmem>>, vector<8x128xf32>
    %c64_701 = arith.constant 64 : index
    %c0_702 = arith.constant 0 : index
    %678 = vector.load %arg5[%c64_701, %c0_702] : memref<72x128xf32, #tpu.memory_space<vmem>>, vector<8x128xf32>
    %679 = arith.mulf %677, %678 : vector<8x128xf32>
    %c64_703 = arith.constant 64 : index
    %c0_704 = arith.constant 0 : index
    %680 = vector.load %arg8[%c64_703, %c0_704] : memref<72x128xf32, #tpu.memory_space<vmem>>, vector<8x128xf32>
    tpu.vector_store %arg8[%c64_703, %c0_704], %679 {strides = array<i32>} : memref<72x128xf32, #tpu.memory_space<vmem>>, vector<8x128xf32>,
    %c9_705 = arith.constant 9 : index
    %c0_706 = arith.constant 0 : index
    %c0_707 = arith.constant 0 : index
    %681 = vector.load %arg2[%c9_705, %c0_706, %c0_707] : memref<11x8x72xf32, #tpu.memory_space<vmem>>, vector<1x8x72xf32>
    %682 = vector.shape_cast %681 : vector<1x8x72xf32> to vector<8x72xf32>
    %c0_708 = arith.constant 0 : index
    %c0_709 = arith.constant 0 : index
    %683 = vector.load %arg8[%c0_708, %c0_709] : memref<72x128xf32, #tpu.memory_space<vmem>>, vector<72x128xf32>
    %cst_710 = arith.constant dense<0.000000e+00> : vector<8x128xf32>
    %684 = tpu.matmul %682, %683, %cst_710 {dimension_numbers = #tpu.dot_dimension_numbers<[1], [0], [0], [1], [0, 0, 1, 1], [], []>} : vector<8x72xf32>, vector<72x128xf32>, vector<8x128xf32> -> vector<8x128xf32>
    %cst_711 = arith.constant dense<0.000000e+00> : vector<8xf32>
    %685 = vector.multi_reduction <add>, %684, %cst_711 [1] : vector<8x128xf32> to vector<8xf32>
    %686 = vector.shape_cast %685 : vector<8xf32> to vector<8x1xf32>
    %687 = arith.mulf %684, %684 : vector<8x128xf32>
    %cst_712 = arith.constant dense<0.000000e+00> : vector<8xf32>
    %688 = vector.multi_reduction <add>, %687, %cst_712 [1] : vector<8x128xf32> to vector<8xf32>
    %689 = vector.shape_cast %688 : vector<8xf32> to vector<8x1xf32>
    %cst_713 = arith.constant 7.812500e-03 : f32
    %690 = vector.broadcast %cst_713 : f32 to vector<8x1xf32>
    %691 = arith.mulf %686, %690 : vector<8x1xf32>
    %cst_714 = arith.constant 7.812500e-03 : f32
    %692 = vector.broadcast %cst_714 : f32 to vector<8x1xf32>
    %693 = arith.mulf %689, %692 : vector<8x1xf32>
    %694 = arith.mulf %691, %691 : vector<8x1xf32>
    %695 = arith.subf %693, %694 : vector<8x1xf32>
    %cst_715 = arith.constant 0.000000e+00 : f32
    %696 = vector.broadcast %cst_715 : f32 to vector<8x1xf32>
    %697 = arith.maximumf %695, %696 : vector<8x1xf32>
    %c0_716 = arith.constant 0 : index
    %c10 = arith.constant 10 : index
    %698 = vector.load %arg3[%c0_716, %c10] : memref<8x12xf32, #tpu.memory_space<vmem>>, vector<8x1xf32>
    %c0_717 = arith.constant 0 : index
    %c10_718 = arith.constant 10 : index
    %699 = vector.load %arg4[%c0_717, %c10_718] : memref<8x12xf32, #tpu.memory_space<vmem>>, vector<8x1xf32>
    %cst_719 = arith.constant 9.99999974E-6 : f32
    %700 = vector.broadcast %cst_719 : f32 to vector<8x1xf32>
    %701 = arith.addf %697, %700 : vector<8x1xf32>
    %702 = math.rsqrt %701 : vector<8x1xf32>
    %703 = arith.mulf %698, %702 : vector<8x1xf32>
    %704 = arith.mulf %691, %703 : vector<8x1xf32>
    %705 = arith.subf %699, %704 : vector<8x1xf32>
    %706 = vector.broadcast %703 : vector<8x1xf32> to vector<8x128xf32>
    %707 = arith.mulf %684, %706 : vector<8x128xf32>
    %708 = vector.broadcast %705 : vector<8x1xf32> to vector<8x128xf32>
    %709 = arith.addf %707, %708 : vector<8x128xf32>
    %cst_720 = arith.constant 0.000000e+00 : f32
    %710 = vector.broadcast %cst_720 : f32 to vector<8x128xf32>
    %711 = arith.maximumf %709, %710 : vector<8x128xf32>
    %c0_721 = arith.constant 0 : index
    %c128_722 = arith.constant 128 : index
    %712 = vector.load %arg7[%c0_721, %c128_722] : memref<8x384xf32, #tpu.memory_space<vmem>>, vector<8x128xf32>
    tpu.vector_store %arg7[%c0_721, %c128_722], %711 {strides = array<i32>} : memref<8x384xf32, #tpu.memory_space<vmem>>, vector<8x128xf32>,
    %c0_723 = arith.constant 0 : index
    %c119_724 = arith.constant 119 : index
    %713 = vector.load %arg7[%c0_723, %c119_724] : memref<8x384xf32, #tpu.memory_space<vmem>>, vector<8x128xf32>
    %c0_725 = arith.constant 0 : index
    %c0_726 = arith.constant 0 : index
    %714 = vector.load %arg5[%c0_725, %c0_726] : memref<72x128xf32, #tpu.memory_space<vmem>>, vector<8x128xf32>
    %715 = arith.mulf %713, %714 : vector<8x128xf32>
    %c0_727 = arith.constant 0 : index
    %c0_728 = arith.constant 0 : index
    %716 = vector.load %arg8[%c0_727, %c0_728] : memref<72x128xf32, #tpu.memory_space<vmem>>, vector<8x128xf32>
    tpu.vector_store %arg8[%c0_727, %c0_728], %715 {strides = array<i32>} : memref<72x128xf32, #tpu.memory_space<vmem>>, vector<8x128xf32>,
    %c0_729 = arith.constant 0 : index
    %c120_730 = arith.constant 120 : index
    %717 = vector.load %arg7[%c0_729, %c120_730] : memref<8x384xf32, #tpu.memory_space<vmem>>, vector<8x128xf32>
    %c8_731 = arith.constant 8 : index
    %c0_732 = arith.constant 0 : index
    %718 = vector.load %arg5[%c8_731, %c0_732] : memref<72x128xf32, #tpu.memory_space<vmem>>, vector<8x128xf32>
    %719 = arith.mulf %717, %718 : vector<8x128xf32>
    %c8_733 = arith.constant 8 : index
    %c0_734 = arith.constant 0 : index
    %720 = vector.load %arg8[%c8_733, %c0_734] : memref<72x128xf32, #tpu.memory_space<vmem>>, vector<8x128xf32>
    tpu.vector_store %arg8[%c8_733, %c0_734], %719 {strides = array<i32>} : memref<72x128xf32, #tpu.memory_space<vmem>>, vector<8x128xf32>,
    %c0_735 = arith.constant 0 : index
    %c121_736 = arith.constant 121 : index
    %721 = vector.load %arg7[%c0_735, %c121_736] : memref<8x384xf32, #tpu.memory_space<vmem>>, vector<8x128xf32>
    %c16_737 = arith.constant 16 : index
    %c0_738 = arith.constant 0 : index
    %722 = vector.load %arg5[%c16_737, %c0_738] : memref<72x128xf32, #tpu.memory_space<vmem>>, vector<8x128xf32>
    %723 = arith.mulf %721, %722 : vector<8x128xf32>
    %c16_739 = arith.constant 16 : index
    %c0_740 = arith.constant 0 : index
    %724 = vector.load %arg8[%c16_739, %c0_740] : memref<72x128xf32, #tpu.memory_space<vmem>>, vector<8x128xf32>
    tpu.vector_store %arg8[%c16_739, %c0_740], %723 {strides = array<i32>} : memref<72x128xf32, #tpu.memory_space<vmem>>, vector<8x128xf32>,
    %c0_741 = arith.constant 0 : index
    %c127_742 = arith.constant 127 : index
    %725 = vector.load %arg7[%c0_741, %c127_742] : memref<8x384xf32, #tpu.memory_space<vmem>>, vector<8x128xf32>
    %c24_743 = arith.constant 24 : index
    %c0_744 = arith.constant 0 : index
    %726 = vector.load %arg5[%c24_743, %c0_744] : memref<72x128xf32, #tpu.memory_space<vmem>>, vector<8x128xf32>
    %727 = arith.mulf %725, %726 : vector<8x128xf32>
    %c24_745 = arith.constant 24 : index
    %c0_746 = arith.constant 0 : index
    %728 = vector.load %arg8[%c24_745, %c0_746] : memref<72x128xf32, #tpu.memory_space<vmem>>, vector<8x128xf32>
    tpu.vector_store %arg8[%c24_745, %c0_746], %727 {strides = array<i32>} : memref<72x128xf32, #tpu.memory_space<vmem>>, vector<8x128xf32>,
    %c0_747 = arith.constant 0 : index
    %c128_748 = arith.constant 128 : index
    %729 = vector.load %arg7[%c0_747, %c128_748] : memref<8x384xf32, #tpu.memory_space<vmem>>, vector<8x128xf32>
    %c32_749 = arith.constant 32 : index
    %c0_750 = arith.constant 0 : index
    %730 = vector.load %arg5[%c32_749, %c0_750] : memref<72x128xf32, #tpu.memory_space<vmem>>, vector<8x128xf32>
    %731 = arith.mulf %729, %730 : vector<8x128xf32>
    %c32_751 = arith.constant 32 : index
    %c0_752 = arith.constant 0 : index
    %732 = vector.load %arg8[%c32_751, %c0_752] : memref<72x128xf32, #tpu.memory_space<vmem>>, vector<8x128xf32>
    tpu.vector_store %arg8[%c32_751, %c0_752], %731 {strides = array<i32>} : memref<72x128xf32, #tpu.memory_space<vmem>>, vector<8x128xf32>,
    %c0_753 = arith.constant 0 : index
    %c129_754 = arith.constant 129 : index
    %733 = vector.load %arg7[%c0_753, %c129_754] : memref<8x384xf32, #tpu.memory_space<vmem>>, vector<8x128xf32>
    %c40_755 = arith.constant 40 : index
    %c0_756 = arith.constant 0 : index
    %734 = vector.load %arg5[%c40_755, %c0_756] : memref<72x128xf32, #tpu.memory_space<vmem>>, vector<8x128xf32>
    %735 = arith.mulf %733, %734 : vector<8x128xf32>
    %c40_757 = arith.constant 40 : index
    %c0_758 = arith.constant 0 : index
    %736 = vector.load %arg8[%c40_757, %c0_758] : memref<72x128xf32, #tpu.memory_space<vmem>>, vector<8x128xf32>
    tpu.vector_store %arg8[%c40_757, %c0_758], %735 {strides = array<i32>} : memref<72x128xf32, #tpu.memory_space<vmem>>, vector<8x128xf32>,
    %c0_759 = arith.constant 0 : index
    %c135_760 = arith.constant 135 : index
    %737 = vector.load %arg7[%c0_759, %c135_760] : memref<8x384xf32, #tpu.memory_space<vmem>>, vector<8x128xf32>
    %c48_761 = arith.constant 48 : index
    %c0_762 = arith.constant 0 : index
    %738 = vector.load %arg5[%c48_761, %c0_762] : memref<72x128xf32, #tpu.memory_space<vmem>>, vector<8x128xf32>
    %739 = arith.mulf %737, %738 : vector<8x128xf32>
    %c48_763 = arith.constant 48 : index
    %c0_764 = arith.constant 0 : index
    %740 = vector.load %arg8[%c48_763, %c0_764] : memref<72x128xf32, #tpu.memory_space<vmem>>, vector<8x128xf32>
    tpu.vector_store %arg8[%c48_763, %c0_764], %739 {strides = array<i32>} : memref<72x128xf32, #tpu.memory_space<vmem>>, vector<8x128xf32>,
    %c0_765 = arith.constant 0 : index
    %c136_766 = arith.constant 136 : index
    %741 = vector.load %arg7[%c0_765, %c136_766] : memref<8x384xf32, #tpu.memory_space<vmem>>, vector<8x128xf32>
    %c56_767 = arith.constant 56 : index
    %c0_768 = arith.constant 0 : index
    %742 = vector.load %arg5[%c56_767, %c0_768] : memref<72x128xf32, #tpu.memory_space<vmem>>, vector<8x128xf32>
    %743 = arith.mulf %741, %742 : vector<8x128xf32>
    %c56_769 = arith.constant 56 : index
    %c0_770 = arith.constant 0 : index
    %744 = vector.load %arg8[%c56_769, %c0_770] : memref<72x128xf32, #tpu.memory_space<vmem>>, vector<8x128xf32>
    tpu.vector_store %arg8[%c56_769, %c0_770], %743 {strides = array<i32>} : memref<72x128xf32, #tpu.memory_space<vmem>>, vector<8x128xf32>,
    %c0_771 = arith.constant 0 : index
    %c137_772 = arith.constant 137 : index
    %745 = vector.load %arg7[%c0_771, %c137_772] : memref<8x384xf32, #tpu.memory_space<vmem>>, vector<8x128xf32>
    %c64_773 = arith.constant 64 : index
    %c0_774 = arith.constant 0 : index
    %746 = vector.load %arg5[%c64_773, %c0_774] : memref<72x128xf32, #tpu.memory_space<vmem>>, vector<8x128xf32>
    %747 = arith.mulf %745, %746 : vector<8x128xf32>
    %c64_775 = arith.constant 64 : index
    %c0_776 = arith.constant 0 : index
    %748 = vector.load %arg8[%c64_775, %c0_776] : memref<72x128xf32, #tpu.memory_space<vmem>>, vector<8x128xf32>
    tpu.vector_store %arg8[%c64_775, %c0_776], %747 {strides = array<i32>} : memref<72x128xf32, #tpu.memory_space<vmem>>, vector<8x128xf32>,
    %c10_777 = arith.constant 10 : index
    %c0_778 = arith.constant 0 : index
    %c0_779 = arith.constant 0 : index
    %749 = vector.load %arg2[%c10_777, %c0_778, %c0_779] : memref<11x8x72xf32, #tpu.memory_space<vmem>>, vector<1x8x72xf32>
    %750 = vector.shape_cast %749 : vector<1x8x72xf32> to vector<8x72xf32>
    %c0_780 = arith.constant 0 : index
    %c0_781 = arith.constant 0 : index
    %751 = vector.load %arg8[%c0_780, %c0_781] : memref<72x128xf32, #tpu.memory_space<vmem>>, vector<72x128xf32>
    %cst_782 = arith.constant dense<0.000000e+00> : vector<8x128xf32>
    %752 = tpu.matmul %750, %751, %cst_782 {dimension_numbers = #tpu.dot_dimension_numbers<[1], [0], [0], [1], [0, 0, 1, 1], [], []>} : vector<8x72xf32>, vector<72x128xf32>, vector<8x128xf32> -> vector<8x128xf32>
    %cst_783 = arith.constant dense<0.000000e+00> : vector<8xf32>
    %753 = vector.multi_reduction <add>, %752, %cst_783 [1] : vector<8x128xf32> to vector<8xf32>
    %754 = vector.shape_cast %753 : vector<8xf32> to vector<8x1xf32>
    %755 = arith.mulf %752, %752 : vector<8x128xf32>
    %cst_784 = arith.constant dense<0.000000e+00> : vector<8xf32>
    %756 = vector.multi_reduction <add>, %755, %cst_784 [1] : vector<8x128xf32> to vector<8xf32>
    %757 = vector.shape_cast %756 : vector<8xf32> to vector<8x1xf32>
    %cst_785 = arith.constant 7.812500e-03 : f32
    %758 = vector.broadcast %cst_785 : f32 to vector<8x1xf32>
    %759 = arith.mulf %754, %758 : vector<8x1xf32>
    %cst_786 = arith.constant 7.812500e-03 : f32
    %760 = vector.broadcast %cst_786 : f32 to vector<8x1xf32>
    %761 = arith.mulf %757, %760 : vector<8x1xf32>
    %762 = arith.mulf %759, %759 : vector<8x1xf32>
    %763 = arith.subf %761, %762 : vector<8x1xf32>
    %cst_787 = arith.constant 0.000000e+00 : f32
    %764 = vector.broadcast %cst_787 : f32 to vector<8x1xf32>
    %765 = arith.maximumf %763, %764 : vector<8x1xf32>
    %c0_788 = arith.constant 0 : index
    %c11 = arith.constant 11 : index
    %766 = vector.load %arg3[%c0_788, %c11] : memref<8x12xf32, #tpu.memory_space<vmem>>, vector<8x1xf32>
    %c0_789 = arith.constant 0 : index
    %c11_790 = arith.constant 11 : index
    %767 = vector.load %arg4[%c0_789, %c11_790] : memref<8x12xf32, #tpu.memory_space<vmem>>, vector<8x1xf32>
    %cst_791 = arith.constant 9.99999974E-6 : f32
    %768 = vector.broadcast %cst_791 : f32 to vector<8x1xf32>
    %769 = arith.addf %765, %768 : vector<8x1xf32>
    %770 = math.rsqrt %769 : vector<8x1xf32>
    %771 = arith.mulf %766, %770 : vector<8x1xf32>
    %772 = arith.mulf %759, %771 : vector<8x1xf32>
    %773 = arith.subf %767, %772 : vector<8x1xf32>
    %774 = vector.broadcast %771 : vector<8x1xf32> to vector<8x128xf32>
    %775 = arith.mulf %752, %774 : vector<8x128xf32>
    %776 = vector.broadcast %773 : vector<8x1xf32> to vector<8x128xf32>
    %777 = arith.addf %775, %776 : vector<8x128xf32>
    %cst_792 = arith.constant 0.000000e+00 : f32
    %778 = vector.broadcast %cst_792 : f32 to vector<8x128xf32>
    %779 = arith.maximumf %777, %778 : vector<8x128xf32>
    %c0_793 = arith.constant 0 : index
    %c0_794 = arith.constant 0 : index
    %780 = vector.load %arg6[%c0_793, %c0_794] : memref<8x128xf32, #tpu.memory_space<vmem>>, vector<8x128xf32>
    tpu.vector_store %arg6[%c0_793, %c0_794], %779 {strides = array<i32>} : memref<8x128xf32, #tpu.memory_space<vmem>>, vector<8x128xf32>,
    return
  }
}

</mosaic_0001>

<llo_original>
// kernel: boosted_conv3x3_forward.1
$region0: #{boosted_conv3x3_forward.1}
  #allocation0 [shape = 'u32[]', space=smem, size = 0x4, offset = 0x4, fixed_abs, tag = 'smem constant byte address 0x4 - core index']
  #allocation1 [shape = 'u32[72,128]{1,0:T(1,128)}', space=vmem, size = 0x9000, scoped, tag = 'internal scratch']
  #allocation2 [shape = 'f32[8,384]{1,0:T(8,128)}', space=vmem, size = 0x3000, scoped, tag = 'scratch operand']
  #allocation3 [shape = 'f32[72,128]{1,0:T(8,128)}', space=vmem, size = 0x9000, scoped, tag = 'scratch operand']
  %s0 = inlined_call_operand.vmem [shape: f32[40,128], index: 0, kind: input, shape index: {}]
  %s1 = inlined_call_operand.vmem [shape: f32[8,40], index: 1, kind: input, shape index: {}]
  %s2 = inlined_call_operand.vmem [shape: f32[11,8,72], index: 2, kind: input, shape index: {}]
  %s3 = inlined_call_operand.vmem [shape: f32[8,12], index: 3, kind: input, shape index: {}]
  %s4 = inlined_call_operand.vmem [shape: f32[8,12], index: 4, kind: input, shape index: {}]
  %s5 = inlined_call_operand.vmem [shape: f32[72,128], index: 5, kind: input, shape index: {}]
  %s6 = inlined_call_operand.vmem [shape: f32[8,128], index: 6, kind: output, shape index: {}]
  %s7 = sld [smem:[#allocation0]]
  $region34: #{boosted_conv3x3_forward.1} parent=0
    _
  %s9 = ssub.s32 1, %s7
  %s10 = scalar_select 0, %s9, %s7
  // Predicated region
  $region2: #{boosted_conv3x3_forward.1} parent=0 // pred_check
    _
  $region3: #{boosted_conv3x3_forward.1} parent=0 // pred_check_branch
    %12 = sbr.rel (0) target = $region5
  $region4: #{boosted_conv3x3_forward.1} parent=0 // pred_region
    _
  $region5: #{boosted_conv3x3_forward.1} parent=0 // pred_fallthru
    _
  // Predicated region
  $region6: #{boosted_conv3x3_forward.1} parent=0 // pred_check
    _
  $region7: #{boosted_conv3x3_forward.1} parent=0 // pred_check_branch
    %14 = sbr.rel (0) target = $region9
  $region8: #{boosted_conv3x3_forward.1} parent=0 // pred_region
    _
  $region9: #{boosted_conv3x3_forward.1} parent=0 // pred_fallthru
    _
  // Predicated region
  $region10: #{boosted_conv3x3_forward.1} parent=0 // pred_check
    _
  $region11: #{boosted_conv3x3_forward.1} parent=0 // pred_check_branch
    %16 = sbr.rel (0) target = $region13
  $region12: #{boosted_conv3x3_forward.1} parent=0 // pred_region
    _
  $region13: #{boosted_conv3x3_forward.1} parent=0 // pred_fallthru
    _
  // Predicated region
  $region14: #{boosted_conv3x3_forward.1} parent=0 // pred_check
    _
  $region15: #{boosted_conv3x3_forward.1} parent=0 // pred_check_branch
    %18 = sbr.rel (0) target = $region17
  $region16: #{boosted_conv3x3_forward.1} parent=0 // pred_region
    _
  $region17: #{boosted_conv3x3_forward.1} parent=0 // pred_fallthru
    _
  // Predicated region
  $region18: #{boosted_conv3x3_forward.1} parent=0 // pred_check
    _
  $region19: #{boosted_conv3x3_forward.1} parent=0 // pred_check_branch
    %20 = sbr.rel (0) target = $region21
  $region20: #{boosted_conv3x3_forward.1} parent=0 // pred_region
    _
  $region21: #{boosted_conv3x3_forward.1} parent=0 // pred_fallthru
    _
  // Predicated region
  $region22: #{boosted_conv3x3_forward.1} parent=0 // pred_check
    _
  $region23: #{boosted_conv3x3_forward.1} parent=0 // pred_check_branch
    %22 = sbr.rel (0) target = $region25
  $region24: #{boosted_conv3x3_forward.1} parent=0 // pred_region
    _
  $region25: #{boosted_conv3x3_forward.1} parent=0 // pred_fallthru
    _
  %23 = vst [vmem:[#allocation2] sm:$0xff] 0.0
  %24 = vst [vmem:[#allocation2 + $0x8] sm:$0xff] 0.0
  %25 = vst [vmem:[#allocation2 + $0x10] sm:$0xff] 0.0
  %v26 = vld [vmem:[%s1] sm:$0xff]
  %v27 = vld [vmem:[%s0] sm:$0xff]
  %v28 = vld [vmem:[%s0 + $0x8] sm:$0xff]
  %v29 = vld [vmem:[%s0 + $0x10] sm:$0xff]
  %v30 = vld [vmem:[%s0 + $0x18] sm:$0xff]
  %v31 = vld [vmem:[%s0 + $0x20] sm:$0xff]
  %vm32 = vcmask 326656
  %v34 = vsel %vm32, %v26, 0
  %36 = vmatpush.msra.mxu0 0.0
  %37 = vmatpush.msra.mxu0 0.0
  %38 = vmatpush.msra.mxu0 0.0
  %39 = vmatpush.msra.mxu0 0.0
  %40 = vmatpush.msra.mxu0 0.0
  %41 = vmatpush.msra.mxu0 0.0
  %42 = vmatpush.msra.mxu0 0.0
  %43 = vmatpush.msra.mxu0 0.0
  %44 = vmatpush.msra.mxu0 0.0
  %45 = vmatpush.msra.mxu0 0.0
  %46 = vmatpush.msra.mxu0 0.0
  %47 = vmatpush.msra.mxu0 %v31
  %48 = vmatpush.msra.mxu0 %v30
  %49 = vmatpush.msra.mxu0 %v29
  %50 = vmatpush.msra.mxu0 %v28
  %51 = vmatpush.msra.mxu0 %v27
  %52 = vmatmul.f32.gmra.mxu0 %v34
  %v53 = vpop.f32.mrf.mxu0
  %v54 = vadd.f32 0.0, %v53
  %55 = vdwg.mxu0
  %56 = vadd.xlane.f32.xlu0 %v54
  %v57 = vpop.xlane.xlu0 %56
  %v58 = vmul.f32 %v54, %v54
  %59 = vadd.xlane.f32.xlu0 %v58
  %v60 = vpop.xlane.xlu0 %59
  %v61 = vmul.f32 %v57, 0.0078125
  %v62 = vmul.f32 %v60, 0.0078125
  %v63 = vmul.f32 %v61, %v61
  %v64 = vsub.f32 %v62, %v63
  %v65 = vmax.f32 %v64, 0.0
  %v66 = vld [vmem:[%s3] sm:$0xff]
  %v67 = vld [vmem:[%s4] sm:$0xff]
  %v68 = vadd.f32 %v65, 1e-05
  %v69 = vrsqrt.pop %v68
  %v70 = vmul.f32 %v69, %v68
  %v71 = vmul.f32 %v70, %v69
  %v72 = vmul.f32 0.5, %v71
  %v73 = vsub.f32 1.5, %v72
  %v74 = vmul.f32 %v69, %v73
  %vm75 = vweird.f32 %v68
  %vm76 = vweird.f32 %v69
  %vm77 = vmor %vm75, %vm76
  %v78 = vsel %vm77, %v69, %v74
  %v79 = vmul.f32 %v66, %v78
  %v80 = vmul.f32 %v61, %v79
  %v81 = vsub.f32 %v67, %v80
  %83 = vset.pattern.permute.xlu0 0
  %84 = vperm.xlu0 %83, %v79
  %v85 = vpop.permute.xlu0 %84
  %v87 = vmul.f32 %v54, %v85
  %89 = vset.pattern.permute.xlu0 0
  %90 = vperm.xlu0 %89, %v81
  %v91 = vpop.permute.xlu0 %90
  %v93 = vadd.f32 %v87, %v91
  %v94 = vmax.f32 %v93, 0.0
  %95 = vst [vmem:[#allocation2 + $0x8] sm:$0xff] %v94
  %v96 = vld [vmem:[#allocation2] sm:$0xff]
  %v97 = vld [vmem:[#allocation2 + $0x8] sm:$0xff]
  %v98 = vld [vmem:[%s5] sm:$0xff]
  %100 = vrot.lane.b32.xlu0 %v98, 119
  %v101 = vpop.permute.xlu0 %100
  %v103 = vmul.f32 %v96, %v101
  %v104 = vmul.f32 %v97, %v101
  %107 = vrot.lane.b32.xlu0 %v103, 9
  %v108 = vpop.permute.xlu0 %107
  %109 = vrot.lane.b32.xlu0 %v104, 9
  %v110 = vpop.permute.xlu0 %109
  %vm111 = vcmask 72704
  %v112 = vsel %vm111, %v108, %v110
  %114 = vst [vmem:[#allocation3] sm:$0xff] %v112
  %v115 = vld [vmem:[#allocation2] sm:$0xff]
  %v116 = vld [vmem:[#allocation2 + $0x8] sm:$0xff]
  %v117 = vld [vmem:[%s5 + $0x8] sm:$0xff]
  %119 = vrot.lane.b32.xlu0 %v117, 120
  %v120 = vpop.permute.xlu0 %119
  %v122 = vmul.f32 %v115, %v120
  %v123 = vmul.f32 %v116, %v120
  %126 = vrot.lane.b32.xlu0 %v122, 8
  %v127 = vpop.permute.xlu0 %126
  %128 = vrot.lane.b32.xlu0 %v123, 8
  %v129 = vpop.permute.xlu0 %128
  %vm130 = vcmask 64512
  %v131 = vsel %vm130, %v127, %v129
  %133 = vst [vmem:[#allocation3 + $0x8] sm:$0xff] %v131
  %v134 = vld [vmem:[#allocation2] sm:$0xff]
  %v135 = vld [vmem:[#allocation2 + $0x8] sm:$0xff]
  %v136 = vld [vmem:[%s5 + $0x10] sm:$0xff]
  %138 = vrot.lane.b32.xlu0 %v136, 121
  %v139 = vpop.permute.xlu0 %138
  %v141 = vmul.f32 %v134, %v139
  %v142 = vmul.f32 %v135, %v139
  %145 = vrot.lane.b32.xlu0 %v141, 7
  %v146 = vpop.permute.xlu0 %145
  %147 = vrot.lane.b32.xlu0 %v142, 7
  %v148 = vpop.permute.xlu0 %147
  %vm149 = vcmask 56320
  %v150 = vsel %vm149, %v146, %v148
  %152 = vst [vmem:[#allocation3 + $0x10] sm:$0xff] %v150
  %v153 = vld [vmem:[#allocation2] sm:$0xff]
  %v154 = vld [vmem:[#allocation2 + $0x8] sm:$0xff]
  %v155 = vld [vmem:[%s5 + $0x18] sm:$0xff]
  %157 = vrot.lane.b32.xlu0 %v155, 127
  %v158 = vpop.permute.xlu0 %157
  %v160 = vmul.f32 %v153, %v158
  %v161 = vmul.f32 %v154, %v158
  %164 = vrot.lane.b32.xlu0 %v160, 1
  %v165 = vpop.permute.xlu0 %164
  %166 = vrot.lane.b32.xlu0 %v161, 1
  %v167 = vpop.permute.xlu0 %166
  %vm168 = vcmask 7168
  %v169 = vsel %vm168, %v165, %v167
  %171 = vst [vmem:[#allocation3 + $0x18] sm:$0xff] %v169
  %v172 = vld [vmem:[#allocation2 + $0x8] sm:$0xff]
  %v173 = vld [vmem:[%s5 + $0x20] sm:$0xff]
  %v174 = vmul.f32 %v172, %v173
  %175 = vst [vmem:[#allocation3 + $0x20] sm:$0xff] %v174
  %v176 = vld [vmem:[#allocation2 + $0x8] sm:$0xff]
  %v177 = vld [vmem:[#allocation2 + $0x10] sm:$0xff]
  %v178 = vld [vmem:[%s5 + $0x28] sm:$0xff]
  %180 = vrot.lane.b32.xlu0 %v178, 1
  %v181 = vpop.permute.xlu0 %180
  %v183 = vmul.f32 %v176, %v181
  %v184 = vmul.f32 %v177, %v181
  %187 = vrot.lane.b32.xlu0 %v183, 127
  %v188 = vpop.permute.xlu0 %187
  %189 = vrot.lane.b32.xlu0 %v184, 127
  %v190 = vpop.permute.xlu0 %189
  %vm191 = vcmask 1039360
  %v192 = vsel %vm191, %v188, %v190
  %194 = vst [vmem:[#allocation3 + $0x28] sm:$0xff] %v192
  %v195 = vld [vmem:[#allocation2 + $0x8] sm:$0xff]
  %v196 = vld [vmem:[#allocation2 + $0x10] sm:$0xff]
  %v197 = vld [vmem:[%s5 + $0x30] sm:$0xff]
  %199 = vrot.lane.b32.xlu0 %v197, 7
  %v200 = vpop.permute.xlu0 %199
  %v202 = vmul.f32 %v195, %v200
  %v203 = vmul.f32 %v196, %v200
  %206 = vrot.lane.b32.xlu0 %v202, 121
  %v207 = vpop.permute.xlu0 %206
  %208 = vrot.lane.b32.xlu0 %v203, 121
  %v209 = vpop.permute.xlu0 %208
  %vm210 = vcmask 990208
  %v211 = vsel %vm210, %v207, %v209
  %213 = vst [vmem:[#allocation3 + $0x30] sm:$0xff] %v211
  %v214 = vld [vmem:[#allocation2 + $0x8] sm:$0xff]
  %v215 = vld [vmem:[#allocation2 + $0x10] sm:$0xff]
  %v216 = vld [vmem:[%s5 + $0x38] sm:$0xff]
  %218 = vrot.lane.b32.xlu0 %v216, 8
  %v219 = vpop.permute.xlu0 %218
  %v221 = vmul.f32 %v214, %v219
  %v222 = vmul.f32 %v215, %v219
  %225 = vrot.lane.b32.xlu0 %v221, 120
  %v226 = vpop.permute.xlu0 %225
  %227 = vrot.lane.b32.xlu0 %v222, 120
  %v228 = vpop.permute.xlu0 %227
  %vm229 = vcmask 982016
  %v230 = vsel %vm229, %v226, %v228
  %232 = vst [vmem:[#allocation3 + $0x38] sm:$0xff] %v230
  %v233 = vld [vmem:[#allocation2 + $0x8] sm:$0xff]
  %v234 = vld [vmem:[#allocation2 + $0x10] sm:$0xff]
  %v235 = vld [vmem:[%s5 + $0x40] sm:$0xff]
  %237 = vrot.lane.b32.xlu0 %v235, 9
  %v238 = vpop.permute.xlu0 %237
  %v240 = vmul.f32 %v233, %v238
  %v241 = vmul.f32 %v234, %v238
  %244 = vrot.lane.b32.xlu0 %v240, 119
  %v245 = vpop.permute.xlu0 %244
  %246 = vrot.lane.b32.xlu0 %v241, 119
  %v247 = vpop.permute.xlu0 %246
  %vm248 = vcmask 973824
  %v249 = vsel %vm248, %v245, %v247
  %251 = vst [vmem:[#allocation3 + $0x40] sm:$0xff] %v249
  %v252 = vld [vmem:[%s2] sm:$0xff]
  %v253 = vld [vmem:[#allocation3] sm:$0xff]
  %v254 = vld [vmem:[#allocation3 + $0x8] sm:$0xff]
  %v255 = vld [vmem:[#allocation3 + $0x10] sm:$0xff]
  %v256 = vld [vmem:[#allocation3 + $0x18] sm:$0xff]
  %v257 = vld [vmem:[#allocation3 + $0x20] sm:$0xff]
  %v258 = vld [vmem:[#allocation3 + $0x28] sm:$0xff]
  %v259 = vld [vmem:[#allocation3 + $0x30] sm:$0xff]
  %v260 = vld [vmem:[#allocation3 + $0x38] sm:$0xff]
  %v261 = vld [vmem:[#allocation3 + $0x40] sm:$0xff]
  %vm262 = vcmask 588800
  %v264 = vsel %vm262, %v252, 0
  %266 = vmatpush.msra.mxu0 0.0
  %267 = vmatpush.msra.mxu0 0.0
  %268 = vmatpush.msra.mxu0 0.0
  %269 = vmatpush.msra.mxu0 0.0
  %270 = vmatpush.msra.mxu0 0.0
  %271 = vmatpush.msra.mxu0 0.0
  %272 = vmatpush.msra.mxu0 0.0
  %273 = vmatpush.msra.mxu0 %v261
  %274 = vmatpush.msra.mxu0 %v260
  %275 = vmatpush.msra.mxu0 %v259
  %276 = vmatpush.msra.mxu0 %v258
  %277 = vmatpush.msra.mxu0 %v257
  %278 = vmatpush.msra.mxu0 %v256
  %279 = vmatpush.msra.mxu0 %v255
  %280 = vmatpush.msra.mxu0 %v254
  %281 = vmatpush.msra.mxu0 %v253
  %282 = vmatmul.f32.gmra.mxu0 %v264
  %v283 = vpop.f32.mrf.mxu0
  %v284 = vadd.f32 0.0, %v283
  %285 = vdwg.mxu0
  %286 = vadd.xlane.f32.xlu0 %v284
  %v287 = vpop.xlane.xlu0 %286
  %v288 = vmul.f32 %v284, %v284
  %289 = vadd.xlane.f32.xlu0 %v288
  %v290 = vpop.xlane.xlu0 %289
  %v291 = vmul.f32 %v287, 0.0078125
  %v292 = vmul.f32 %v290, 0.0078125
  %v293 = vmul.f32 %v291, %v291
  %v294 = vsub.f32 %v292, %v293
  %v295 = vmax.f32 %v294, 0.0
  %v296 = vld [vmem:[%s3] sm:$0xff]
  %v297 = vld [vmem:[%s4] sm:$0xff]
  %v298 = vadd.f32 %v295, 1e-05
  %v299 = vrsqrt.pop %v298
  %v300 = vmul.f32 %v299, %v298
  %v301 = vmul.f32 %v300, %v299
  %v302 = vmul.f32 0.5, %v301
  %v303 = vsub.f32 1.5, %v302
  %v304 = vmul.f32 %v299, %v303
  %vm305 = vweird.f32 %v298
  %vm306 = vweird.f32 %v299
  %vm307 = vmor %vm305, %vm306
  %v308 = vsel %vm307, %v299, %v304
  %v309 = vmul.f32 %v296, %v308
  %v310 = vmul.f32 %v291, %v309
  %v311 = vsub.f32 %v297, %v310
  %313 = vset.pattern.permute.xlu0 1
  %314 = vperm.xlu0 %313, %v309
  %v315 = vpop.permute.xlu0 %314
  %v317 = vmul.f32 %v284, %v315
  %319 = vset.pattern.permute.xlu0 1
  %320 = vperm.xlu0 %319, %v311
  %v321 = vpop.permute.xlu0 %320
  %v323 = vadd.f32 %v317, %v321
  %v324 = vmax.f32 %v323, 0.0
  %325 = vst [vmem:[#allocation2 + $0x8] sm:$0xff] %v324
  %v326 = vld [vmem:[#allocation2] sm:$0xff]
  %v327 = vld [vmem:[#allocation2 + $0x8] sm:$0xff]
  %v328 = vld [vmem:[%s5] sm:$0xff]
  %330 = vrot.lane.b32.xlu0 %v328, 119
  %v331 = vpop.permute.xlu0 %330
  %v333 = vmul.f32 %v326, %v331
  %v334 = vmul.f32 %v327, %v331
  %337 = vrot.lane.b32.xlu0 %v333, 9
  %v338 = vpop.permute.xlu0 %337
  %339 = vrot.lane.b32.xlu0 %v334, 9
  %v340 = vpop.permute.xlu0 %339
  %v341 = vsel %vm111, %v338, %v340
  %343 = vst [vmem:[#allocation3] sm:$0xff] %v341
  %v344 = vld [vmem:[#allocation2] sm:$0xff]
  %v345 = vld [vmem:[#allocation2 + $0x8] sm:$0xff]
  %v346 = vld [vmem:[%s5 + $0x8] sm:$0xff]
  %348 = vrot.lane.b32.xlu0 %v346, 120
  %v349 = vpop.permute.xlu0 %348
  %v351 = vmul.f32 %v344, %v349
  %v352 = vmul.f32 %v345, %v349
  %355 = vrot.lane.b32.xlu0 %v351, 8
  %v356 = vpop.permute.xlu0 %355
  %357 = vrot.lane.b32.xlu0 %v352, 8
  %v358 = vpop.permute.xlu0 %357
  %v359 = vsel %vm130, %v356, %v358
  %361 = vst [vmem:[#allocation3 + $0x8] sm:$0xff] %v359
  %v362 = vld [vmem:[#allocation2] sm:$0xff]
  %v363 = vld [vmem:[#allocation2 + $0x8] sm:$0xff]
  %v364 = vld [vmem:[%s5 + $0x10] sm:$0xff]
  %366 = vrot.lane.b32.xlu0 %v364, 121
  %v367 = vpop.permute.xlu0 %366
  %v369 = vmul.f32 %v362, %v367
  %v370 = vmul.f32 %v363, %v367
  %373 = vrot.lane.b32.xlu0 %v369, 7
  %v374 = vpop.permute.xlu0 %373
  %375 = vrot.lane.b32.xlu0 %v370, 7
  %v376 = vpop.permute.xlu0 %375
  %v377 = vsel %vm149, %v374, %v376
  %379 = vst [vmem:[#allocation3 + $0x10] sm:$0xff] %v377
  %v380 = vld [vmem:[#allocation2] sm:$0xff]
  %v381 = vld [vmem:[#allocation2 + $0x8] sm:$0xff]
  %v382 = vld [vmem:[%s5 + $0x18] sm:$0xff]
  %384 = vrot.lane.b32.xlu0 %v382, 127
  %v385 = vpop.permute.xlu0 %384
  %v387 = vmul.f32 %v380, %v385
  %v388 = vmul.f32 %v381, %v385
  %391 = vrot.lane.b32.xlu0 %v387, 1
  %v392 = vpop.permute.xlu0 %391
  %393 = vrot.lane.b32.xlu0 %v388, 1
  %v394 = vpop.permute.xlu0 %393
  %v395 = vsel %vm168, %v392, %v394
  %397 = vst [vmem:[#allocation3 + $0x18] sm:$0xff] %v395
  %v398 = vld [vmem:[#allocation2 + $0x8] sm:$0xff]
  %v399 = vld [vmem:[%s5 + $0x20] sm:$0xff]
  %v400 = vmul.f32 %v398, %v399
  %401 = vst [vmem:[#allocation3 + $0x20] sm:$0xff] %v400
  %v402 = vld [vmem:[#allocation2 + $0x8] sm:$0xff]
  %v403 = vld [vmem:[#allocation2 + $0x10] sm:$0xff]
  %v404 = vld [vmem:[%s5 + $0x28] sm:$0xff]
  %406 = vrot.lane.b32.xlu0 %v404, 1
  %v407 = vpop.permute.xlu0 %406
  %v409 = vmul.f32 %v402, %v407
  %v410 = vmul.f32 %v403, %v407
  %413 = vrot.lane.b32.xlu0 %v409, 127
  %v414 = vpop.permute.xlu0 %413
  %415 = vrot.lane.b32.xlu0 %v410, 127
  %v416 = vpop.permute.xlu0 %415
  %v417 = vsel %vm191, %v414, %v416
  %419 = vst [vmem:[#allocation3 + $0x28] sm:$0xff] %v417
  %v420 = vld [vmem:[#allocation2 + $0x8] sm:$0xff]
  %v421 = vld [vmem:[#allocation2 + $0x10] sm:$0xff]
  %v422 = vld [vmem:[%s5 + $0x30] sm:$0xff]
  %424 = vrot.lane.b32.xlu0 %v422, 7
  %v425 = vpop.permute.xlu0 %424
  %v427 = vmul.f32 %v420, %v425
  %v428 = vmul.f32 %v421, %v425
  %431 = vrot.lane.b32.xlu0 %v427, 121
  %v432 = vpop.permute.xlu0 %431
  %433 = vrot.lane.b32.xlu0 %v428, 121
  %v434 = vpop.permute.xlu0 %433
  %v435 = vsel %vm210, %v432, %v434
  %437 = vst [vmem:[#allocation3 + $0x30] sm:$0xff] %v435
  %v438 = vld [vmem:[#allocation2 + $0x8] sm:$0xff]
  %v439 = vld [vmem:[#allocation2 + $0x10] sm:$0xff]
  %v440 = vld [vmem:[%s5 + $0x38] sm:$0xff]
  %442 = vrot.lane.b32.xlu0 %v440, 8
  %v443 = vpop.permute.xlu0 %442
  %v445 = vmul.f32 %v438, %v443
  %v446 = vmul.f32 %v439, %v443
  %449 = vrot.lane.b32.xlu0 %v445, 120
  %v450 = vpop.permute.xlu0 %449
  %451 = vrot.lane.b32.xlu0 %v446, 120
  %v452 = vpop.permute.xlu0 %451
  %v453 = vsel %vm229, %v450, %v452
  %455 = vst [vmem:[#allocation3 + $0x38] sm:$0xff] %v453
  %v456 = vld [vmem:[#allocation2 + $0x8] sm:$0xff]
  %v457 = vld [vmem:[#allocation2 + $0x10] sm:$0xff]
  %v458 = vld [vmem:[%s5 + $0x40] sm:$0xff]
  %460 = vrot.lane.b32.xlu0 %v458, 9
  %v461 = vpop.permute.xlu0 %460
  %v463 = vmul.f32 %v456, %v461
  %v464 = vmul.f32 %v457, %v461
  %467 = vrot.lane.b32.xlu0 %v463, 119
  %v468 = vpop.permute.xlu0 %467
  %469 = vrot.lane.b32.xlu0 %v464, 119
  %v470 = vpop.permute.xlu0 %469
  %v471 = vsel %vm248, %v468, %v470
  %473 = vst [vmem:[#allocation3 + $0x40] sm:$0xff] %v471
  %s474 = scalar_lea.vmem %s2, 8
  %v475 = vld [vmem:[%s474] sm:$0xff]
  %v476 = vld [vmem:[#allocation3] sm:$0xff]
  %v477 = vld [vmem:[#allocation3 + $0x8] sm:$0xff]
  %v478 = vld [vmem:[#allocation3 + $0x10] sm:$0xff]
  %v479 = vld [vmem:[#allocation3 + $0x18] sm:$0xff]
  %v480 = vld [vmem:[#allocation3 + $0x20] sm:$0xff]
  %v481 = vld [vmem:[#allocation3 + $0x28] sm:$0xff]
  %v482 = vld [vmem:[#allocation3 + $0x30] sm:$0xff]
  %v483 = vld [vmem:[#allocation3 + $0x38] sm:$0xff]
  %v484 = vld [vmem:[#allocation3 + $0x40] sm:$0xff]
  %v486 = vsel %vm262, %v475, 0
  %488 = vmatpush.msra.mxu0 0.0
  %489 = vmatpush.msra.mxu0 0.0
  %490 = vmatpush.msra.mxu0 0.0
  %491 = vmatpush.msra.mxu0 0.0
  %492 = vmatpush.msra.mxu0 0.0
  %493 = vmatpush.msra.mxu0 0.0
  %494 = vmatpush.msra.mxu0 0.0
  %495 = vmatpush.msra.mxu0 %v484
  %496 = vmatpush.msra.mxu0 %v483
  %497 = vmatpush.msra.mxu0 %v482
  %498 = vmatpush.msra.mxu0 %v481
  %499 = vmatpush.msra.mxu0 %v480
  %500 = vmatpush.msra.mxu0 %v479
  %501 = vmatpush.msra.mxu0 %v478
  %502 = vmatpush.msra.mxu0 %v477
  %503 = vmatpush.msra.mxu0 %v476
  %504 = vmatmul.f32.gmra.mxu0 %v486
  %v505 = vpop.f32.mrf.mxu0
  %v506 = vadd.f32 0.0, %v505
  %507 = vdwg.mxu0
  %508 = vadd.xlane.f32.xlu0 %v506
  %v509 = vpop.xlane.xlu0 %508
  %v510 = vmul.f32 %v506, %v506
  %511 = vadd.xlane.f32.xlu0 %v510
  %v512 = vpop.xlane.xlu0 %511
  %v513 = vmul.f32 %v509, 0.0078125
  %v514 = vmul.f32 %v512, 0.0078125
  %v515 = vmul.f32 %v513, %v513
  %v516 = vsub.f32 %v514, %v515
  %v517 = vmax.f32 %v516, 0.0
  %v518 = vld [vmem:[%s3] sm:$0xff]
  %v519 = vld [vmem:[%s4] sm:$0xff]
  %v520 = vadd.f32 %v517, 1e-05
  %v521 = vrsqrt.pop %v520
  %v522 = vmul.f32 %v521, %v520
  %v523 = vmul.f32 %v522, %v521
  %v524 = vmul.f32 0.5, %v523
  %v525 = vsub.f32 1.5, %v524
  %v526 = vmul.f32 %v521, %v525
  %vm527 = vweird.f32 %v520
  %vm528 = vweird.f32 %v521
  %vm529 = vmor %vm527, %vm528
  %v530 = vsel %vm529, %v521, %v526
  %v531 = vmul.f32 %v518, %v530
  %v532 = vmul.f32 %v513, %v531
  %v533 = vsub.f32 %v519, %v532
  %535 = vset.pattern.permute.xlu0 2
  %536 = vperm.xlu0 %535, %v531
  %v537 = vpop.permute.xlu0 %536
  %v539 = vmul.f32 %v506, %v537
  %541 = vset.pattern.permute.xlu0 2
  %542 = vperm.xlu0 %541, %v533
  %v543 = vpop.permute.xlu0 %542
  %v545 = vadd.f32 %v539, %v543
  %v546 = vmax.f32 %v545, 0.0
  %547 = vst [vmem:[#allocation2 + $0x8] sm:$0xff] %v546
  %v548 = vld [vmem:[#allocation2] sm:$0xff]
  %v549 = vld [vmem:[#allocation2 + $0x8] sm:$0xff]
  %v550 = vld [vmem:[%s5] sm:$0xff]
  %552 = vrot.lane.b32.xlu0 %v550, 119
  %v553 = vpop.permute.xlu0 %552
  %v555 = vmul.f32 %v548, %v553
  %v556 = vmul.f32 %v549, %v553
  %559 = vrot.lane.b32.xlu0 %v555, 9
  %v560 = vpop.permute.xlu0 %559
  %561 = vrot.lane.b32.xlu0 %v556, 9
  %v562 = vpop.permute.xlu0 %561
  %v563 = vsel %vm111, %v560, %v562
  %565 = vst [vmem:[#allocation3] sm:$0xff] %v563
  %v566 = vld [vmem:[#allocation2] sm:$0xff]
  %v567 = vld [vmem:[#allocation2 + $0x8] sm:$0xff]
  %v568 = vld [vmem:[%s5 + $0x8] sm:$0xff]
  %570 = vrot.lane.b32.xlu0 %v568, 120
  %v571 = vpop.permute.xlu0 %570
  %v573 = vmul.f32 %v566, %v571
  %v574 = vmul.f32 %v567, %v571
  %577 = vrot.lane.b32.xlu0 %v573, 8
  %v578 = vpop.permute.xlu0 %577
  %579 = vrot.lane.b32.xlu0 %v574, 8
  %v580 = vpop.permute.xlu0 %579
  %v581 = vsel %vm130, %v578, %v580
  %583 = vst [vmem:[#allocation3 + $0x8] sm:$0xff] %v581
  %v584 = vld [vmem:[#allocation2] sm:$0xff]
  %v585 = vld [vmem:[#allocation2 + $0x8] sm:$0xff]
  %v586 = vld [vmem:[%s5 + $0x10] sm:$0xff]
  %588 = vrot.lane.b32.xlu0 %v586, 121
  %v589 = vpop.permute.xlu0 %588
  %v591 = vmul.f32 %v584, %v589
  %v592 = vmul.f32 %v585, %v589
  %595 = vrot.lane.b32.xlu0 %v591, 7
  %v596 = vpop.permute.xlu0 %595
  %597 = vrot.lane.b32.xlu0 %v592, 7
  %v598 = vpop.permute.xlu0 %597
  %v599 = vsel %vm149, %v596, %v598
  %601 = vst [vmem:[#allocation3 + $0x10] sm:$0xff] %v599
  %v602 = vld [vmem:[#allocation2] sm:$0xff]
  %v603 = vld [vmem:[#allocation2 + $0x8] sm:$0xff]
  %v604 = vld [vmem:[%s5 + $0x18] sm:$0xff]
  %606 = vrot.lane.b32.xlu0 %v604, 127
  %v607 = vpop.permute.xlu0 %606
  %v609 = vmul.f32 %v602, %v607
  %v610 = vmul.f32 %v603, %v607
  %613 = vrot.lane.b32.xlu0 %v609, 1
  %v614 = vpop.permute.xlu0 %613
  %615 = vrot.lane.b32.xlu0 %v610, 1
  %v616 = vpop.permute.xlu0 %615
  %v617 = vsel %vm168, %v614, %v616
  %619 = vst [vmem:[#allocation3 + $0x18] sm:$0xff] %v617
  %v620 = vld [vmem:[#allocation2 + $0x8] sm:$0xff]
  %v621 = vld [vmem:[%s5 + $0x20] sm:$0xff]
  %v622 = vmul.f32 %v620, %v621
  %623 = vst [vmem:[#allocation3 + $0x20] sm:$0xff] %v622
  %v624 = vld [vmem:[#allocation2 + $0x8] sm:$0xff]
  %v625 = vld [vmem:[#allocation2 + $0x10] sm:$0xff]
  %v626 = vld [vmem:[%s5 + $0x28] sm:$0xff]
  %628 = vrot.lane.b32.xlu0 %v626, 1
  %v629 = vpop.permute.xlu0 %628
  %v631 = vmul.f32 %v624, %v629
  %v632 = vmul.f32 %v625, %v629
  %635 = vrot.lane.b32.xlu0 %v631, 127
  %v636 = vpop.permute.xlu0 %635
  %637 = vrot.lane.b32.xlu0 %v632, 127
  %v638 = vpop.permute.xlu0 %637
  %v639 = vsel %vm191, %v636, %v638
  %641 = vst [vmem:[#allocation3 + $0x28] sm:$0xff] %v639
  %v642 = vld [vmem:[#allocation2 + $0x8] sm:$0xff]
  %v643 = vld [vmem:[#allocation2 + $0x10] sm:$0xff]
  %v644 = vld [vmem:[%s5 + $0x30] sm:$0xff]
  %646 = vrot.lane.b32.xlu0 %v644, 7
  %v647 = vpop.permute.xlu0 %646
  %v649 = vmul.f32 %v642, %v647
  %v650 = vmul.f32 %v643, %v647
  %653 = vrot.lane.b32.xlu0 %v649, 121
  %v654 = vpop.permute.xlu0 %653
  %655 = vrot.lane.b32.xlu0 %v650, 121
  %v656 = vpop.permute.xlu0 %655
  %v657 = vsel %vm210, %v654, %v656
  %659 = vst [vmem:[#allocation3 + $0x30] sm:$0xff] %v657
  %v660 = vld [vmem:[#allocation2 + $0x8] sm:$0xff]
  %v661 = vld [vmem:[#allocation2 + $0x10] sm:$0xff]
  %v662 = vld [vmem:[%s5 + $0x38] sm:$0xff]
  %664 = vrot.lane.b32.xlu0 %v662, 8
  %v665 = vpop.permute.xlu0 %664
  %v667 = vmul.f32 %v660, %v665
  %v668 = vmul.f32 %v661, %v665
  %671 = vrot.lane.b32.xlu0 %v667, 120
  %v672 = vpop.permute.xlu0 %671
  %673 = vrot.lane.b32.xlu0 %v668, 120
  %v674 = vpop.permute.xlu0 %673
  %v675 = vsel %vm229, %v672, %v674
  %677 = vst [vmem:[#allocation3 + $0x38] sm:$0xff] %v675
  %v678 = vld [vmem:[#allocation2 + $0x8] sm:$0xff]
  %v679 = vld [vmem:[#allocation2 + $0x10] sm:$0xff]
  %v680 = vld [vmem:[%s5 + $0x40] sm:$0xff]
  %682 = vrot.lane.b32.xlu0 %v680, 9
  %v683 = vpop.permute.xlu0 %682
  %v685 = vmul.f32 %v678, %v683
  %v686 = vmul.f32 %v679, %v683
  %689 = vrot.lane.b32.xlu0 %v685, 119
  %v690 = vpop.permute.xlu0 %689
  %691 = vrot.lane.b32.xlu0 %v686, 119
  %v692 = vpop.permute.xlu0 %691
  %v693 = vsel %vm248, %v690, %v692
  %695 = vst [vmem:[#allocation3 + $0x40] sm:$0xff] %v693
  %s696 = scalar_lea.vmem %s2, 16
  %v697 = vld [vmem:[%s696] sm:$0xff]
  %v698 = vld [vmem:[#allocation3] sm:$0xff]
  %v699 = vld [vmem:[#allocation3 + $0x8] sm:$0xff]
  %v700 = vld [vmem:[#allocation3 + $0x10] sm:$0xff]
  %v701 = vld [vmem:[#allocation3 + $0x18] sm:$0xff]
  %v702 = vld [vmem:[#allocation3 + $0x20] sm:$0xff]
  %v703 = vld [vmem:[#allocation3 + $0x28] sm:$0xff]
  %v704 = vld [vmem:[#allocation3 + $0x30] sm:$0xff]
  %v705 = vld [vmem:[#allocation3 + $0x38] sm:$0xff]
  %v706 = vld [vmem:[#allocation3 + $0x40] sm:$0xff]
  %v708 = vsel %vm262, %v697, 0
  %710 = vmatpush.msra.mxu0 0.0
  %711 = vmatpush.msra.mxu0 0.0
  %712 = vmatpush.msra.mxu0 0.0
  %713 = vmatpush.msra.mxu0 0.0
  %714 = vmatpush.msra.mxu0 0.0
  %715 = vmatpush.msra.mxu0 0.0
  %716 = vmatpush.msra.mxu0 0.0
  %717 = vmatpush.msra.mxu0 %v706
  %718 = vmatpush.msra.mxu0 %v705
  %719 = vmatpush.msra.mxu0 %v704
  %720 = vmatpush.msra.mxu0 %v703
  %721 = vmatpush.msra.mxu0 %v702
  %722 = vmatpush.msra.mxu0 %v701
  %723 = vmatpush.msra.mxu0 %v700
  %724 = vmatpush.msra.mxu0 %v699
  %725 = vmatpush.msra.mxu0 %v698
  %726 = vmatmul.f32.gmra.mxu0 %v708
  %v727 = vpop.f32.mrf.mxu0
  %v728 = vadd.f32 0.0, %v727
  %729 = vdwg.mxu0
  %730 = vadd.xlane.f32.xlu0 %v728
  %v731 = vpop.xlane.xlu0 %730
  %v732 = vmul.f32 %v728, %v728
  %733 = vadd.xlane.f32.xlu0 %v732
  %v734 = vpop.xlane.xlu0 %733
  %v735 = vmul.f32 %v731, 0.0078125
  %v736 = vmul.f32 %v734, 0.0078125
  %v737 = vmul.f32 %v735, %v735
  %v738 = vsub.f32 %v736, %v737
  %v739 = vmax.f32 %v738, 0.0
  %v740 = vld [vmem:[%s3] sm:$0xff]
  %v741 = vld [vmem:[%s4] sm:$0xff]
  %v742 = vadd.f32 %v739, 1e-05
  %v743 = vrsqrt.pop %v742
  %v744 = vmul.f32 %v743, %v742
  %v745 = vmul.f32 %v744, %v743
  %v746 = vmul.f32 0.5, %v745
  %v747 = vsub.f32 1.5, %v746
  %v748 = vmul.f32 %v743, %v747
  %vm749 = vweird.f32 %v742
  %vm750 = vweird.f32 %v743
  %vm751 = vmor %vm749, %vm750
  %v752 = vsel %vm751, %v743, %v748
  %v753 = vmul.f32 %v740, %v752
  %v754 = vmul.f32 %v735, %v753
  %v755 = vsub.f32 %v741, %v754
  %757 = vset.pattern.permute.xlu0 3
  %758 = vperm.xlu0 %757, %v753
  %v759 = vpop.permute.xlu0 %758
  %v761 = vmul.f32 %v728, %v759
  %763 = vset.pattern.permute.xlu0 3
  %764 = vperm.xlu0 %763, %v755
  %v765 = vpop.permute.xlu0 %764
  %v767 = vadd.f32 %v761, %v765
  %v768 = vmax.f32 %v767, 0.0
  %769 = vst [vmem:[#allocation2 + $0x8] sm:$0xff] %v768
  %v770 = vld [vmem:[#allocation2] sm:$0xff]
  %v771 = vld [vmem:[#allocation2 + $0x8] sm:$0xff]
  %v772 = vld [vmem:[%s5] sm:$0xff]
  %774 = vrot.lane.b32.xlu0 %v772, 119
  %v775 = vpop.permute.xlu0 %774
  %v777 = vmul.f32 %v770, %v775
  %v778 = vmul.f32 %v771, %v775
  %781 = vrot.lane.b32.xlu0 %v777, 9
  %v782 = vpop.permute.xlu0 %781
  %783 = vrot.lane.b32.xlu0 %v778, 9
  %v784 = vpop.permute.xlu0 %783
  %v785 = vsel %vm111, %v782, %v784
  %787 = vst [vmem:[#allocation3] sm:$0xff] %v785
  %v788 = vld [vmem:[#allocation2] sm:$0xff]
  %v789 = vld [vmem:[#allocation2 + $0x8] sm:$0xff]
  %v790 = vld [vmem:[%s5 + $0x8] sm:$0xff]
  %792 = vrot.lane.b32.xlu0 %v790, 120
  %v793 = vpop.permute.xlu0 %792
  %v795 = vmul.f32 %v788, %v793
  %v796 = vmul.f32 %v789, %v793
  %799 = vrot.lane.b32.xlu0 %v795, 8
  %v800 = vpop.permute.xlu0 %799
  %801 = vrot.lane.b32.xlu0 %v796, 8
  %v802 = vpop.permute.xlu0 %801
  %v803 = vsel %vm130, %v800, %v802
  %805 = vst [vmem:[#allocation3 + $0x8] sm:$0xff] %v803
  %v806 = vld [vmem:[#allocation2] sm:$0xff]
  %v807 = vld [vmem:[#allocation2 + $0x8] sm:$0xff]
  %v808 = vld [vmem:[%s5 + $0x10] sm:$0xff]
  %810 = vrot.lane.b32.xlu0 %v808, 121
  %v811 = vpop.permute.xlu0 %810
  %v813 = vmul.f32 %v806, %v811
  %v814 = vmul.f32 %v807, %v811
  %817 = vrot.lane.b32.xlu0 %v813, 7
  %v818 = vpop.permute.xlu0 %817
  %819 = vrot.lane.b32.xlu0 %v814, 7
  %v820 = vpop.permute.xlu0 %819
  %v821 = vsel %vm149, %v818, %v820
  %823 = vst [vmem:[#allocation3 + $0x10] sm:$0xff] %v821
  %v824 = vld [vmem:[#allocation2] sm:$0xff]
  %v825 = vld [vmem:[#allocation2 + $0x8] sm:$0xff]
  %v826 = vld [vmem:[%s5 + $0x18] sm:$0xff]
  %828 = vrot.lane.b32.xlu0 %v826, 127
  %v829 = vpop.permute.xlu0 %828
  %v831 = vmul.f32 %v824, %v829
  %v832 = vmul.f32 %v825, %v829
  %835 = vrot.lane.b32.xlu0 %v831, 1
  %v836 = vpop.permute.xlu0 %835
  %837 = vrot.lane.b32.xlu0 %v832, 1
  %v838 = vpop.permute.xlu0 %837
  %v839 = vsel %vm168, %v836, %v838
  %841 = vst [vmem:[#allocation3 + $0x18] sm:$0xff] %v839
  %v842 = vld [vmem:[#allocation2 + $0x8] sm:$0xff]
  %v843 = vld [vmem:[%s5 + $0x20] sm:$0xff]
  %v844 = vmul.f32 %v842, %v843
  %845 = vst [vmem:[#allocation3 + $0x20] sm:$0xff] %v844
  %v846 = vld [vmem:[#allocation2 + $0x8] sm:$0xff]
  %v847 = vld [vmem:[#allocation2 + $0x10] sm:$0xff]
  %v848 = vld [vmem:[%s5 + $0x28] sm:$0xff]
  %850 = vrot.lane.b32.xlu0 %v848, 1
  %v851 = vpop.permute.xlu0 %850
  %v853 = vmul.f32 %v846, %v851
  %v854 = vmul.f32 %v847, %v851
  %857 = vrot.lane.b32.xlu0 %v853, 127
  %v858 = vpop.permute.xlu0 %857
  %859 = vrot.lane.b32.xlu0 %v854, 127
  %v860 = vpop.permute.xlu0 %859
  %v861 = vsel %vm191, %v858, %v860
  %863 = vst [vmem:[#allocation3 + $0x28] sm:$0xff] %v861
  %v864 = vld [vmem:[#allocation2 + $0x8] sm:$0xff]
  %v865 = vld [vmem:[#allocation2 + $0x10] sm:$0xff]
  %v866 = vld [vmem:[%s5 + $0x30] sm:$0xff]
  %868 = vrot.lane.b32.xlu0 %v866, 7
  %v869 = vpop.permute.xlu0 %868
  %v871 = vmul.f32 %v864, %v869
  %v872 = vmul.f32 %v865, %v869
  %875 = vrot.lane.b32.xlu0 %v871, 121
  %v876 = vpop.permute.xlu0 %875
  %877 = vrot.lane.b32.xlu0 %v872, 121
  %v878 = vpop.permute.xlu0 %877
  %v879 = vsel %vm210, %v876, %v878
  %881 = vst [vmem:[#allocation3 + $0x30] sm:$0xff] %v879
  %v882 = vld [vmem:[#allocation2 + $0x8] sm:$0xff]
  %v883 = vld [vmem:[#allocation2 + $0x10] sm:$0xff]
  %v884 = vld [vmem:[%s5 + $0x38] sm:$0xff]
  %886 = vrot.lane.b32.xlu0 %v884, 8
  %v887 = vpop.permute.xlu0 %886
  %v889 = vmul.f32 %v882, %v887
  %v890 = vmul.f32 %v883, %v887
  %893 = vrot.lane.b32.xlu0 %v889, 120
  %v894 = vpop.permute.xlu0 %893
  %895 = vrot.lane.b32.xlu0 %v890, 120
  %v896 = vpop.permute.xlu0 %895
  %v897 = vsel %vm229, %v894, %v896
  %899 = vst [vmem:[#allocation3 + $0x38] sm:$0xff] %v897
  %v900 = vld [vmem:[#allocation2 + $0x8] sm:$0xff]
  %v901 = vld [vmem:[#allocation2 + $0x10] sm:$0xff]
  %v902 = vld [vmem:[%s5 + $0x40] sm:$0xff]
  %904 = vrot.lane.b32.xlu0 %v902, 9
  %v905 = vpop.permute.xlu0 %904
  %v907 = vmul.f32 %v900, %v905
  %v908 = vmul.f32 %v901, %v905
  %911 = vrot.lane.b32.xlu0 %v907, 119
  %v912 = vpop.permute.xlu0 %911
  %913 = vrot.lane.b32.xlu0 %v908, 119
  %v914 = vpop.permute.xlu0 %913
  %v915 = vsel %vm248, %v912, %v914
  %917 = vst [vmem:[#allocation3 + $0x40] sm:$0xff] %v915
  %s918 = scalar_lea.vmem %s2, 24
  %v919 = vld [vmem:[%s918] sm:$0xff]
  %v920 = vld [vmem:[#allocation3] sm:$0xff]
  %v921 = vld [vmem:[#allocation3 + $0x8] sm:$0xff]
  %v922 = vld [vmem:[#allocation3 + $0x10] sm:$0xff]
  %v923 = vld [vmem:[#allocation3 + $0x18] sm:$0xff]
  %v924 = vld [vmem:[#allocation3 + $0x20] sm:$0xff]
  %v925 = vld [vmem:[#allocation3 + $0x28] sm:$0xff]
  %v926 = vld [vmem:[#allocation3 + $0x30] sm:$0xff]
  %v927 = vld [vmem:[#allocation3 + $0x38] sm:$0xff]
  %v928 = vld [vmem:[#allocation3 + $0x40] sm:$0xff]
  %v930 = vsel %vm262, %v919, 0
  %932 = vmatpush.msra.mxu0 0.0
  %933 = vmatpush.msra.mxu0 0.0
  %934 = vmatpush.msra.mxu0 0.0
  %935 = vmatpush.msra.mxu0 0.0
  %936 = vmatpush.msra.mxu0 0.0
  %937 = vmatpush.msra.mxu0 0.0
  %938 = vmatpush.msra.mxu0 0.0
  %939 = vmatpush.msra.mxu0 %v928
  %940 = vmatpush.msra.mxu0 %v927
  %941 = vmatpush.msra.mxu0 %v926
  %942 = vmatpush.msra.mxu0 %v925
  %943 = vmatpush.msra.mxu0 %v924
  %944 = vmatpush.msra.mxu0 %v923
  %945 = vmatpush.msra.mxu0 %v922
  %946 = vmatpush.msra.mxu0 %v921
  %947 = vmatpush.msra.mxu0 %v920
  %948 = vmatmul.f32.gmra.mxu0 %v930
  %v949 = vpop.f32.mrf.mxu0
  %v950 = vadd.f32 0.0, %v949
  %951 = vdwg.mxu0
  %952 = vadd.xlane.f32.xlu0 %v950
  %v953 = vpop.xlane.xlu0 %952
  %v954 = vmul.f32 %v950, %v950
  %955 = vadd.xlane.f32.xlu0 %v954
  %v956 = vpop.xlane.xlu0 %955
  %v957 = vmul.f32 %v953, 0.0078125
  %v958 = vmul.f32 %v956, 0.0078125
  %v959 = vmul.f32 %v957, %v957
  %v960 = vsub.f32 %v958, %v959
  %v961 = vmax.f32 %v960, 0.0
  %v962 = vld [vmem:[%s3] sm:$0xff]
  %v963 = vld [vmem:[%s4] sm:$0xff]
  %v964 = vadd.f32 %v961, 1e-05
  %v965 = vrsqrt.pop %v964
  %v966 = vmul.f32 %v965, %v964
  %v967 = vmul.f32 %v966, %v965
  %v968 = vmul.f32 0.5, %v967
  %v969 = vsub.f32 1.5, %v968
  %v970 = vmul.f32 %v965, %v969
  %vm971 = vweird.f32 %v964
  %vm972 = vweird.f32 %v965
  %vm973 = vmor %vm971, %vm972
  %v974 = vsel %vm973, %v965, %v970
  %v975 = vmul.f32 %v962, %v974
  %v976 = vmul.f32 %v957, %v975
  %v977 = vsub.f32 %v963, %v976
  %979 = vset.pattern.permute.xlu0 4
  %980 = vperm.xlu0 %979, %v975
  %v981 = vpop.permute.xlu0 %980
  %v983 = vmul.f32 %v950, %v981
  %985 = vset.pattern.permute.xlu0 4
  %986 = vperm.xlu0 %985, %v977
  %v987 = vpop.permute.xlu0 %986
  %v989 = vadd.f32 %v983, %v987
  %v990 = vmax.f32 %v989, 0.0
  %991 = vst [vmem:[#allocation2 + $0x8] sm:$0xff] %v990
  %v992 = vld [vmem:[#allocation2] sm:$0xff]
  %v993 = vld [vmem:[#allocation2 + $0x8] sm:$0xff]
  %v994 = vld [vmem:[%s5] sm:$0xff]
  %996 = vrot.lane.b32.xlu0 %v994, 119
  %v997 = vpop.permute.xlu0 %996
  %v999 = vmul.f32 %v992, %v997
  %v1000 = vmul.f32 %v993, %v997
  %1003 = vrot.lane.b32.xlu0 %v999, 9
  %v1004 = vpop.permute.xlu0 %1003
  %1005 = vrot.lane.b32.xlu0 %v1000, 9
  %v1006 = vpop.permute.xlu0 %1005
  %v1007 = vsel %vm111, %v1004, %v1006
  %1009 = vst [vmem:[#allocation3] sm:$0xff] %v1007
  %v1010 = vld [vmem:[#allocation2] sm:$0xff]
  %v1011 = vld [vmem:[#allocation2 + $0x8] sm:$0xff]
  %v1012 = vld [vmem:[%s5 + $0x8] sm:$0xff]
  %1014 = vrot.lane.b32.xlu0 %v1012, 120
  %v1015 = vpop.permute.xlu0 %1014
  %v1017 = vmul.f32 %v1010, %v1015
  %v1018 = vmul.f32 %v1011, %v1015
  %1021 = vrot.lane.b32.xlu0 %v1017, 8
  %v1022 = vpop.permute.xlu0 %1021
  %1023 = vrot.lane.b32.xlu0 %v1018, 8
  %v1024 = vpop.permute.xlu0 %1023
  %v1025 = vsel %vm130, %v1022, %v1024
  %1027 = vst [vmem:[#allocation3 + $0x8] sm:$0xff] %v1025
  %v1028 = vld [vmem:[#allocation2] sm:$0xff]
  %v1029 = vld [vmem:[#allocation2 + $0x8] sm:$0xff]
  %v1030 = vld [vmem:[%s5 + $0x10] sm:$0xff]
  %1032 = vrot.lane.b32.xlu0 %v1030, 121
  %v1033 = vpop.permute.xlu0 %1032
  %v1035 = vmul.f32 %v1028, %v1033
  %v1036 = vmul.f32 %v1029, %v1033
  %1039 = vrot.lane.b32.xlu0 %v1035, 7
  %v1040 = vpop.permute.xlu0 %1039
  %1041 = vrot.lane.b32.xlu0 %v1036, 7
  %v1042 = vpop.permute.xlu0 %1041
  %v1043 = vsel %vm149, %v1040, %v1042
  %1045 = vst [vmem:[#allocation3 + $0x10] sm:$0xff] %v1043
  %v1046 = vld [vmem:[#allocation2] sm:$0xff]
  %v1047 = vld [vmem:[#allocation2 + $0x8] sm:$0xff]
  %v1048 = vld [vmem:[%s5 + $0x18] sm:$0xff]
  %1050 = vrot.lane.b32.xlu0 %v1048, 127
  %v1051 = vpop.permute.xlu0 %1050
  %v1053 = vmul.f32 %v1046, %v1051
  %v1054 = vmul.f32 %v1047, %v1051
  %1057 = vrot.lane.b32.xlu0 %v1053, 1
  %v1058 = vpop.permute.xlu0 %1057
  %1059 = vrot.lane.b32.xlu0 %v1054, 1
  %v1060 = vpop.permute.xlu0 %1059
  %v1061 = vsel %vm168, %v1058, %v1060
  %1063 = vst [vmem:[#allocation3 + $0x18] sm:$0xff] %v1061
  %v1064 = vld [vmem:[#allocation2 + $0x8] sm:$0xff]
  %v1065 = vld [vmem:[%s5 + $0x20] sm:$0xff]
  %v1066 = vmul.f32 %v1064, %v1065
  %1067 = vst [vmem:[#allocation3 + $0x20] sm:$0xff] %v1066
  %v1068 = vld [vmem:[#allocation2 + $0x8] sm:$0xff]
  %v1069 = vld [vmem:[#allocation2 + $0x10] sm:$0xff]
  %v1070 = vld [vmem:[%s5 + $0x28] sm:$0xff]
  %1072 = vrot.lane.b32.xlu0 %v1070, 1
  %v1073 = vpop.permute.xlu0 %1072
  %v1075 = vmul.f32 %v1068, %v1073
  %v1076 = vmul.f32 %v1069, %v1073
  %1079 = vrot.lane.b32.xlu0 %v1075, 127
  %v1080 = vpop.permute.xlu0 %1079
  %1081 = vrot.lane.b32.xlu0 %v1076, 127
  %v1082 = vpop.permute.xlu0 %1081
  %v1083 = vsel %vm191, %v1080, %v1082
  %1085 = vst [vmem:[#allocation3 + $0x28] sm:$0xff] %v1083
  %v1086 = vld [vmem:[#allocation2 + $0x8] sm:$0xff]
  %v1087 = vld [vmem:[#allocation2 + $0x10] sm:$0xff]
  %v1088 = vld [vmem:[%s5 + $0x30] sm:$0xff]
  %1090 = vrot.lane.b32.xlu0 %v1088, 7
  %v1091 = vpop.permute.xlu0 %1090
  %v1093 = vmul.f32 %v1086, %v1091
  %v1094 = vmul.f32 %v1087, %v1091
  %1097 = vrot.lane.b32.xlu0 %v1093, 121
  %v1098 = vpop.permute.xlu0 %1097
  %1099 = vrot.lane.b32.xlu0 %v1094, 121
  %v1100 = vpop.permute.xlu0 %1099
  %v1101 = vsel %vm210, %v1098, %v1100
  %1103 = vst [vmem:[#allocation3 + $0x30] sm:$0xff] %v1101
  %v1104 = vld [vmem:[#allocation2 + $0x8] sm:$0xff]
  %v1105 = vld [vmem:[#allocation2 + $0x10] sm:$0xff]
  %v1106 = vld [vmem:[%s5 + $0x38] sm:$0xff]
  %1108 = vrot.lane.b32.xlu0 %v1106, 8
  %v1109 = vpop.permute.xlu0 %1108
  %v1111 = vmul.f32 %v1104, %v1109
  %v1112 = vmul.f32 %v1105, %v1109
  %1115 = vrot.lane.b32.xlu0 %v1111, 120
  %v1116 = vpop.permute.xlu0 %1115
  %1117 = vrot.lane.b32.xlu0 %v1112, 120
  %v1118 = vpop.permute.xlu0 %1117
  %v1119 = vsel %vm229, %v1116, %v1118
  %1121 = vst [vmem:[#allocation3 + $0x38] sm:$0xff] %v1119
  %v1122 = vld [vmem:[#allocation2 + $0x8] sm:$0xff]
  %v1123 = vld [vmem:[#allocation2 + $0x10] sm:$0xff]
  %v1124 = vld [vmem:[%s5 + $0x40] sm:$0xff]
  %1126 = vrot.lane.b32.xlu0 %v1124, 9
  %v1127 = vpop.permute.xlu0 %1126
  %v1129 = vmul.f32 %v1122, %v1127
  %v1130 = vmul.f32 %v1123, %v1127
  %1133 = vrot.lane.b32.xlu0 %v1129, 119
  %v1134 = vpop.permute.xlu0 %1133
  %1135 = vrot.lane.b32.xlu0 %v1130, 119
  %v1136 = vpop.permute.xlu0 %1135
  %v1137 = vsel %vm248, %v1134, %v1136
  %1139 = vst [vmem:[#allocation3 + $0x40] sm:$0xff] %v1137
  %s1140 = scalar_lea.vmem %s2, 32
  %v1141 = vld [vmem:[%s1140] sm:$0xff]
  %v1142 = vld [vmem:[#allocation3] sm:$0xff]
  %v1143 = vld [vmem:[#allocation3 + $0x8] sm:$0xff]
  %v1144 = vld [vmem:[#allocation3 + $0x10] sm:$0xff]
  %v1145 = vld [vmem:[#allocation3 + $0x18] sm:$0xff]
  %v1146 = vld [vmem:[#allocation3 + $0x20] sm:$0xff]
  %v1147 = vld [vmem:[#allocation3 + $0x28] sm:$0xff]
  %v1148 = vld [vmem:[#allocation3 + $0x30] sm:$0xff]
  %v1149 = vld [vmem:[#allocation3 + $0x38] sm:$0xff]
  %v1150 = vld [vmem:[#allocation3 + $0x40] sm:$0xff]
  %v1152 = vsel %vm262, %v1141, 0
  %1154 = vmatpush.msra.mxu0 0.0
  %1155 = vmatpush.msra.mxu0 0.0
  %1156 = vmatpush.msra.mxu0 0.0
  %1157 = vmatpush.msra.mxu0 0.0
  %1158 = vmatpush.msra.mxu0 0.0
  %1159 = vmatpush.msra.mxu0 0.0
  %1160 = vmatpush.msra.mxu0 0.0
  %1161 = vmatpush.msra.mxu0 %v1150
  %1162 = vmatpush.msra.mxu0 %v1149
  %1163 = vmatpush.msra.mxu0 %v1148
  %1164 = vmatpush.msra.mxu0 %v1147
  %1165 = vmatpush.msra.mxu0 %v1146
  %1166 = vmatpush.msra.mxu0 %v1145
  %1167 = vmatpush.msra.mxu0 %v1144
  %1168 = vmatpush.msra.mxu0 %v1143
  %1169 = vmatpush.msra.mxu0 %v1142
  %1170 = vmatmul.f32.gmra.mxu0 %v1152
  %v1171 = vpop.f32.mrf.mxu0
  %v1172 = vadd.f32 0.0, %v1171
  %1173 = vdwg.mxu0
  %1174 = vadd.xlane.f32.xlu0 %v1172
  %v1175 = vpop.xlane.xlu0 %1174
  %v1176 = vmul.f32 %v1172, %v1172
  %1177 = vadd.xlane.f32.xlu0 %v1176
  %v1178 = vpop.xlane.xlu0 %1177
  %v1179 = vmul.f32 %v1175, 0.0078125
  %v1180 = vmul.f32 %v1178, 0.0078125
  %v1181 = vmul.f32 %v1179, %v1179
  %v1182 = vsub.f32 %v1180, %v1181
  %v1183 = vmax.f32 %v1182, 0.0
  %v1184 = vld [vmem:[%s3] sm:$0xff]
  %v1185 = vld [vmem:[%s4] sm:$0xff]
  %v1186 = vadd.f32 %v1183, 1e-05
  %v1187 = vrsqrt.pop %v1186
  %v1188 = vmul.f32 %v1187, %v1186
  %v1189 = vmul.f32 %v1188, %v1187
  %v1190 = vmul.f32 0.5, %v1189
  %v1191 = vsub.f32 1.5, %v1190
  %v1192 = vmul.f32 %v1187, %v1191
  %vm1193 = vweird.f32 %v1186
  %vm1194 = vweird.f32 %v1187
  %vm1195 = vmor %vm1193, %vm1194
  %v1196 = vsel %vm1195, %v1187, %v1192
  %v1197 = vmul.f32 %v1184, %v1196
  %v1198 = vmul.f32 %v1179, %v1197
  %v1199 = vsub.f32 %v1185, %v1198
  %1201 = vset.pattern.permute.xlu0 5
  %1202 = vperm.xlu0 %1201, %v1197
  %v1203 = vpop.permute.xlu0 %1202
  %v1205 = vmul.f32 %v1172, %v1203
  %1207 = vset.pattern.permute.xlu0 5
  %1208 = vperm.xlu0 %1207, %v1199
  %v1209 = vpop.permute.xlu0 %1208
  %v1211 = vadd.f32 %v1205, %v1209
  %v1212 = vmax.f32 %v1211, 0.0
  %1213 = vst [vmem:[#allocation2 + $0x8] sm:$0xff] %v1212
  %v1214 = vld [vmem:[#allocation2] sm:$0xff]
  %v1215 = vld [vmem:[#allocation2 + $0x8] sm:$0xff]
  %v1216 = vld [vmem:[%s5] sm:$0xff]
  %1218 = vrot.lane.b32.xlu0 %v1216, 119
  %v1219 = vpop.permute.xlu0 %1218
  %v1221 = vmul.f32 %v1214, %v1219
  %v1222 = vmul.f32 %v1215, %v1219
  %1225 = vrot.lane.b32.xlu0 %v1221, 9
  %v1226 = vpop.permute.xlu0 %1225
  %1227 = vrot.lane.b32.xlu0 %v1222, 9
  %v1228 = vpop.permute.xlu0 %1227
  %v1229 = vsel %vm111, %v1226, %v1228
  %1231 = vst [vmem:[#allocation3] sm:$0xff] %v1229
  %v1232 = vld [vmem:[#allocation2] sm:$0xff]
  %v1233 = vld [vmem:[#allocation2 + $0x8] sm:$0xff]
  %v1234 = vld [vmem:[%s5 + $0x8] sm:$0xff]
  %1236 = vrot.lane.b32.xlu0 %v1234, 120
  %v1237 = vpop.permute.xlu0 %1236
  %v1239 = vmul.f32 %v1232, %v1237
  %v1240 = vmul.f32 %v1233, %v1237
  %1243 = vrot.lane.b32.xlu0 %v1239, 8
  %v1244 = vpop.permute.xlu0 %1243
  %1245 = vrot.lane.b32.xlu0 %v1240, 8
  %v1246 = vpop.permute.xlu0 %1245
  %v1247 = vsel %vm130, %v1244, %v1246
  %1249 = vst [vmem:[#allocation3 + $0x8] sm:$0xff] %v1247
  %v1250 = vld [vmem:[#allocation2] sm:$0xff]
  %v1251 = vld [vmem:[#allocation2 + $0x8] sm:$0xff]
  %v1252 = vld [vmem:[%s5 + $0x10] sm:$0xff]
  %1254 = vrot.lane.b32.xlu0 %v1252, 121
  %v1255 = vpop.permute.xlu0 %1254
  %v1257 = vmul.f32 %v1250, %v1255
  %v1258 = vmul.f32 %v1251, %v1255
  %1261 = vrot.lane.b32.xlu0 %v1257, 7
  %v1262 = vpop.permute.xlu0 %1261
  %1263 = vrot.lane.b32.xlu0 %v1258, 7
  %v1264 = vpop.permute.xlu0 %1263
  %v1265 = vsel %vm149, %v1262, %v1264
  %1267 = vst [vmem:[#allocation3 + $0x10] sm:$0xff] %v1265
  %v1268 = vld [vmem:[#allocation2] sm:$0xff]
  %v1269 = vld [vmem:[#allocation2 + $0x8] sm:$0xff]
  %v1270 = vld [vmem:[%s5 + $0x18] sm:$0xff]
  %1272 = vrot.lane.b32.xlu0 %v1270, 127
  %v1273 = vpop.permute.xlu0 %1272
  %v1275 = vmul.f32 %v1268, %v1273
  %v1276 = vmul.f32 %v1269, %v1273
  %1279 = vrot.lane.b32.xlu0 %v1275, 1
  %v1280 = vpop.permute.xlu0 %1279
  %1281 = vrot.lane.b32.xlu0 %v1276, 1
  %v1282 = vpop.permute.xlu0 %1281
  %v1283 = vsel %vm168, %v1280, %v1282
  %1285 = vst [vmem:[#allocation3 + $0x18] sm:$0xff] %v1283
  %v1286 = vld [vmem:[#allocation2 + $0x8] sm:$0xff]
  %v1287 = vld [vmem:[%s5 + $0x20] sm:$0xff]
  %v1288 = vmul.f32 %v1286, %v1287
  %1289 = vst [vmem:[#allocation3 + $0x20] sm:$0xff] %v1288
  %v1290 = vld [vmem:[#allocation2 + $0x8] sm:$0xff]
  %v1291 = vld [vmem:[#allocation2 + $0x10] sm:$0xff]
  %v1292 = vld [vmem:[%s5 + $0x28] sm:$0xff]
  %1294 = vrot.lane.b32.xlu0 %v1292, 1
  %v1295 = vpop.permute.xlu0 %1294
  %v1297 = vmul.f32 %v1290, %v1295
  %v1298 = vmul.f32 %v1291, %v1295
  %1301 = vrot.lane.b32.xlu0 %v1297, 127
  %v1302 = vpop.permute.xlu0 %1301
  %1303 = vrot.lane.b32.xlu0 %v1298, 127
  %v1304 = vpop.permute.xlu0 %1303
  %v1305 = vsel %vm191, %v1302, %v1304
  %1307 = vst [vmem:[#allocation3 + $0x28] sm:$0xff] %v1305
  %v1308 = vld [vmem:[#allocation2 + $0x8] sm:$0xff]
  %v1309 = vld [vmem:[#allocation2 + $0x10] sm:$0xff]
  %v1310 = vld [vmem:[%s5 + $0x30] sm:$0xff]
  %1312 = vrot.lane.b32.xlu0 %v1310, 7
  %v1313 = vpop.permute.xlu0 %1312
  %v1315 = vmul.f32 %v1308, %v1313
  %v1316 = vmul.f32 %v1309, %v1313
  %1319 = vrot.lane.b32.xlu0 %v1315, 121
  %v1320 = vpop.permute.xlu0 %1319
  %1321 = vrot.lane.b32.xlu0 %v1316, 121
  %v1322 = vpop.permute.xlu0 %1321
  %v1323 = vsel %vm210, %v1320, %v1322
  %1325 = vst [vmem:[#allocation3 + $0x30] sm:$0xff] %v1323
  %v1326 = vld [vmem:[#allocation2 + $0x8] sm:$0xff]
  %v1327 = vld [vmem:[#allocation2 + $0x10] sm:$0xff]
  %v1328 = vld [vmem:[%s5 + $0x38] sm:$0xff]
  %1330 = vrot.lane.b32.xlu0 %v1328, 8
  %v1331 = vpop.permute.xlu0 %1330
  %v1333 = vmul.f32 %v1326, %v1331
  %v1334 = vmul.f32 %v1327, %v1331
  %1337 = vrot.lane.b32.xlu0 %v1333, 120
  %v1338 = vpop.permute.xlu0 %1337
  %1339 = vrot.lane.b32.xlu0 %v1334, 120
  %v1340 = vpop.permute.xlu0 %1339
  %v1341 = vsel %vm229, %v1338, %v1340
  %1343 = vst [vmem:[#allocation3 + $0x38] sm:$0xff] %v1341
  %v1344 = vld [vmem:[#allocation2 + $0x8] sm:$0xff]
  %v1345 = vld [vmem:[#allocation2 + $0x10] sm:$0xff]
  %v1346 = vld [vmem:[%s5 + $0x40] sm:$0xff]
  %1348 = vrot.lane.b32.xlu0 %v1346, 9
  %v1349 = vpop.permute.xlu0 %1348
  %v1351 = vmul.f32 %v1344, %v1349
  %v1352 = vmul.f32 %v1345, %v1349
  %1355 = vrot.lane.b32.xlu0 %v1351, 119
  %v1356 = vpop.permute.xlu0 %1355
  %1357 = vrot.lane.b32.xlu0 %v1352, 119
  %v1358 = vpop.permute.xlu0 %1357
  %v1359 = vsel %vm248, %v1356, %v1358
  %1361 = vst [vmem:[#allocation3 + $0x40] sm:$0xff] %v1359
  %s1362 = scalar_lea.vmem %s2, 40
  %v1363 = vld [vmem:[%s1362] sm:$0xff]
  %v1364 = vld [vmem:[#allocation3] sm:$0xff]
  %v1365 = vld [vmem:[#allocation3 + $0x8] sm:$0xff]
  %v1366 = vld [vmem:[#allocation3 + $0x10] sm:$0xff]
  %v1367 = vld [vmem:[#allocation3 + $0x18] sm:$0xff]
  %v1368 = vld [vmem:[#allocation3 + $0x20] sm:$0xff]
  %v1369 = vld [vmem:[#allocation3 + $0x28] sm:$0xff]
  %v1370 = vld [vmem:[#allocation3 + $0x30] sm:$0xff]
  %v1371 = vld [vmem:[#allocation3 + $0x38] sm:$0xff]
  %v1372 = vld [vmem:[#allocation3 + $0x40] sm:$0xff]
  %v1374 = vsel %vm262, %v1363, 0
  %1376 = vmatpush.msra.mxu0 0.0
  %1377 = vmatpush.msra.mxu0 0.0
  %1378 = vmatpush.msra.mxu0 0.0
  %1379 = vmatpush.msra.mxu0 0.0
  %1380 = vmatpush.msra.mxu0 0.0
  %1381 = vmatpush.msra.mxu0 0.0
  %1382 = vmatpush.msra.mxu0 0.0
  %1383 = vmatpush.msra.mxu0 %v1372
  %1384 = vmatpush.msra.mxu0 %v1371
  %1385 = vmatpush.msra.mxu0 %v1370
  %1386 = vmatpush.msra.mxu0 %v1369
  %1387 = vmatpush.msra.mxu0 %v1368
  %1388 = vmatpush.msra.mxu0 %v1367
  %1389 = vmatpush.msra.mxu0 %v1366
  %1390 = vmatpush.msra.mxu0 %v1365
  %1391 = vmatpush.msra.mxu0 %v1364
  %1392 = vmatmul.f32.gmra.mxu0 %v1374
  %v1393 = vpop.f32.mrf.mxu0
  %v1394 = vadd.f32 0.0, %v1393
  %1395 = vdwg.mxu0
  %1396 = vadd.xlane.f32.xlu0 %v1394
  %v1397 = vpop.xlane.xlu0 %1396
  %v1398 = vmul.f32 %v1394, %v1394
  %1399 = vadd.xlane.f32.xlu0 %v1398
  %v1400 = vpop.xlane.xlu0 %1399
  %v1401 = vmul.f32 %v1397, 0.0078125
  %v1402 = vmul.f32 %v1400, 0.0078125
  %v1403 = vmul.f32 %v1401, %v1401
  %v1404 = vsub.f32 %v1402, %v1403
  %v1405 = vmax.f32 %v1404, 0.0
  %v1406 = vld [vmem:[%s3] sm:$0xff]
  %v1407 = vld [vmem:[%s4] sm:$0xff]
  %v1408 = vadd.f32 %v1405, 1e-05
  %v1409 = vrsqrt.pop %v1408
  %v1410 = vmul.f32 %v1409, %v1408
  %v1411 = vmul.f32 %v1410, %v1409
  %v1412 = vmul.f32 0.5, %v1411
  %v1413 = vsub.f32 1.5, %v1412
  %v1414 = vmul.f32 %v1409, %v1413
  %vm1415 = vweird.f32 %v1408
  %vm1416 = vweird.f32 %v1409
  %vm1417 = vmor %vm1415, %vm1416
  %v1418 = vsel %vm1417, %v1409, %v1414
  %v1419 = vmul.f32 %v1406, %v1418
  %v1420 = vmul.f32 %v1401, %v1419
  %v1421 = vsub.f32 %v1407, %v1420
  %1423 = vset.pattern.permute.xlu0 6
  %1424 = vperm.xlu0 %1423, %v1419
  %v1425 = vpop.permute.xlu0 %1424
  %v1427 = vmul.f32 %v1394, %v1425
  %1429 = vset.pattern.permute.xlu0 6
  %1430 = vperm.xlu0 %1429, %v1421
  %v1431 = vpop.permute.xlu0 %1430
  %v1433 = vadd.f32 %v1427, %v1431
  %v1434 = vmax.f32 %v1433, 0.0
  %1435 = vst [vmem:[#allocation2 + $0x8] sm:$0xff] %v1434
  %v1436 = vld [vmem:[#allocation2] sm:$0xff]
  %v1437 = vld [vmem:[#allocation2 + $0x8] sm:$0xff]
  %v1438 = vld [vmem:[%s5] sm:$0xff]
  %1440 = vrot.lane.b32.xlu0 %v1438, 119
  %v1441 = vpop.permute.xlu0 %1440
  %v1443 = vmul.f32 %v1436, %v1441
  %v1444 = vmul.f32 %v1437, %v1441
  %1447 = vrot.lane.b32.xlu0 %v1443, 9
  %v1448 = vpop.permute.xlu0 %1447
  %1449 = vrot.lane.b32.xlu0 %v1444, 9
  %v1450 = vpop.permute.xlu0 %1449
  %v1451 = vsel %vm111, %v1448, %v1450
  %1453 = vst [vmem:[#allocation3] sm:$0xff] %v1451
  %v1454 = vld [vmem:[#allocation2] sm:$0xff]
  %v1455 = vld [vmem:[#allocation2 + $0x8] sm:$0xff]
  %v1456 = vld [vmem:[%s5 + $0x8] sm:$0xff]
  %1458 = vrot.lane.b32.xlu0 %v1456, 120
  %v1459 = vpop.permute.xlu0 %1458
  %v1461 = vmul.f32 %v1454, %v1459
  %v1462 = vmul.f32 %v1455, %v1459
  %1465 = vrot.lane.b32.xlu0 %v1461, 8
  %v1466 = vpop.permute.xlu0 %1465
  %1467 = vrot.lane.b32.xlu0 %v1462, 8
  %v1468 = vpop.permute.xlu0 %1467
  %v1469 = vsel %vm130, %v1466, %v1468
  %1471 = vst [vmem:[#allocation3 + $0x8] sm:$0xff] %v1469
  %v1472 = vld [vmem:[#allocation2] sm:$0xff]
  %v1473 = vld [vmem:[#allocation2 + $0x8] sm:$0xff]
  %v1474 = vld [vmem:[%s5 + $0x10] sm:$0xff]
  %1476 = vrot.lane.b32.xlu0 %v1474, 121
  %v1477 = vpop.permute.xlu0 %1476
  %v1479 = vmul.f32 %v1472, %v1477
  %v1480 = vmul.f32 %v1473, %v1477
  %1483 = vrot.lane.b32.xlu0 %v1479, 7
  %v1484 = vpop.permute.xlu0 %1483
  %1485 = vrot.lane.b32.xlu0 %v1480, 7
  %v1486 = vpop.permute.xlu0 %1485
  %v1487 = vsel %vm149, %v1484, %v1486
  %1489 = vst [vmem:[#allocation3 + $0x10] sm:$0xff] %v1487
  %v1490 = vld [vmem:[#allocation2] sm:$0xff]
  %v1491 = vld [vmem:[#allocation2 + $0x8] sm:$0xff]
  %v1492 = vld [vmem:[%s5 + $0x18] sm:$0xff]
  %1494 = vrot.lane.b32.xlu0 %v1492, 127
  %v1495 = vpop.permute.xlu0 %1494
  %v1497 = vmul.f32 %v1490, %v1495
  %v1498 = vmul.f32 %v1491, %v1495
  %1501 = vrot.lane.b32.xlu0 %v1497, 1
  %v1502 = vpop.permute.xlu0 %1501
  %1503 = vrot.lane.b32.xlu0 %v1498, 1
  %v1504 = vpop.permute.xlu0 %1503
  %v1505 = vsel %vm168, %v1502, %v1504
  %1507 = vst [vmem:[#allocation3 + $0x18] sm:$0xff] %v1505
  %v1508 = vld [vmem:[#allocation2 + $0x8] sm:$0xff]
  %v1509 = vld [vmem:[%s5 + $0x20] sm:$0xff]
  %v1510 = vmul.f32 %v1508, %v1509
  %1511 = vst [vmem:[#allocation3 + $0x20] sm:$0xff] %v1510
  %v1512 = vld [vmem:[#allocation2 + $0x8] sm:$0xff]
  %v1513 = vld [vmem:[#allocation2 + $0x10] sm:$0xff]
  %v1514 = vld [vmem:[%s5 + $0x28] sm:$0xff]
  %1516 = vrot.lane.b32.xlu0 %v1514, 1
  %v1517 = vpop.permute.xlu0 %1516
  %v1519 = vmul.f32 %v1512, %v1517
  %v1520 = vmul.f32 %v1513, %v1517
  %1523 = vrot.lane.b32.xlu0 %v1519, 127
  %v1524 = vpop.permute.xlu0 %1523
  %1525 = vrot.lane.b32.xlu0 %v1520, 127
  %v1526 = vpop.permute.xlu0 %1525
  %v1527 = vsel %vm191, %v1524, %v1526
  %1529 = vst [vmem:[#allocation3 + $0x28] sm:$0xff] %v1527
  %v1530 = vld [vmem:[#allocation2 + $0x8] sm:$0xff]
  %v1531 = vld [vmem:[#allocation2 + $0x10] sm:$0xff]
  %v1532 = vld [vmem:[%s5 + $0x30] sm:$0xff]
  %1534 = vrot.lane.b32.xlu0 %v1532, 7
  %v1535 = vpop.permute.xlu0 %1534
  %v1537 = vmul.f32 %v1530, %v1535
  %v1538 = vmul.f32 %v1531, %v1535
  %1541 = vrot.lane.b32.xlu0 %v1537, 121
  %v1542 = vpop.permute.xlu0 %1541
  %1543 = vrot.lane.b32.xlu0 %v1538, 121
  %v1544 = vpop.permute.xlu0 %1543
  %v1545 = vsel %vm210, %v1542, %v1544
  %1547 = vst [vmem:[#allocation3 + $0x30] sm:$0xff] %v1545
  %v1548 = vld [vmem:[#allocation2 + $0x8] sm:$0xff]
  %v1549 = vld [vmem:[#allocation2 + $0x10] sm:$0xff]
  %v1550 = vld [vmem:[%s5 + $0x38] sm:$0xff]
  %1552 = vrot.lane.b32.xlu0 %v1550, 8
  %v1553 = vpop.permute.xlu0 %1552
  %v1555 = vmul.f32 %v1548, %v1553
  %v1556 = vmul.f32 %v1549, %v1553
  %1559 = vrot.lane.b32.xlu0 %v1555, 120
  %v1560 = vpop.permute.xlu0 %1559
  %1561 = vrot.lane.b32.xlu0 %v1556, 120
  %v1562 = vpop.permute.xlu0 %1561
  %v1563 = vsel %vm229, %v1560, %v1562
  %1565 = vst [vmem:[#allocation3 + $0x38] sm:$0xff] %v1563
  %v1566 = vld [vmem:[#allocation2 + $0x8] sm:$0xff]
  %v1567 = vld [vmem:[#allocation2 + $0x10] sm:$0xff]
  %v1568 = vld [vmem:[%s5 + $0x40] sm:$0xff]
  %1570 = vrot.lane.b32.xlu0 %v1568, 9
  %v1571 = vpop.permute.xlu0 %1570
  %v1573 = vmul.f32 %v1566, %v1571
  %v1574 = vmul.f32 %v1567, %v1571
  %1577 = vrot.lane.b32.xlu0 %v1573, 119
  %v1578 = vpop.permute.xlu0 %1577
  %1579 = vrot.lane.b32.xlu0 %v1574, 119
  %v1580 = vpop.permute.xlu0 %1579
  %v1581 = vsel %vm248, %v1578, %v1580
  %1583 = vst [vmem:[#allocation3 + $0x40] sm:$0xff] %v1581
  %s1584 = scalar_lea.vmem %s2, 48
  %v1585 = vld [vmem:[%s1584] sm:$0xff]
  %v1586 = vld [vmem:[#allocation3] sm:$0xff]
  %v1587 = vld [vmem:[#allocation3 + $0x8] sm:$0xff]
  %v1588 = vld [vmem:[#allocation3 + $0x10] sm:$0xff]
  %v1589 = vld [vmem:[#allocation3 + $0x18] sm:$0xff]
  %v1590 = vld [vmem:[#allocation3 + $0x20] sm:$0xff]
  %v1591 = vld [vmem:[#allocation3 + $0x28] sm:$0xff]
  %v1592 = vld [vmem:[#allocation3 + $0x30] sm:$0xff]
  %v1593 = vld [vmem:[#allocation3 + $0x38] sm:$0xff]
  %v1594 = vld [vmem:[#allocation3 + $0x40] sm:$0xff]
  %v1596 = vsel %vm262, %v1585, 0
  %1598 = vmatpush.msra.mxu0 0.0
  %1599 = vmatpush.msra.mxu0 0.0
  %1600 = vmatpush.msra.mxu0 0.0
  %1601 = vmatpush.msra.mxu0 0.0
  %1602 = vmatpush.msra.mxu0 0.0
  %1603 = vmatpush.msra.mxu0 0.0
  %1604 = vmatpush.msra.mxu0 0.0
  %1605 = vmatpush.msra.mxu0 %v1594
  %1606 = vmatpush.msra.mxu0 %v1593
  %1607 = vmatpush.msra.mxu0 %v1592
  %1608 = vmatpush.msra.mxu0 %v1591
  %1609 = vmatpush.msra.mxu0 %v1590
  %1610 = vmatpush.msra.mxu0 %v1589
  %1611 = vmatpush.msra.mxu0 %v1588
  %1612 = vmatpush.msra.mxu0 %v1587
  %1613 = vmatpush.msra.mxu0 %v1586
  %1614 = vmatmul.f32.gmra.mxu0 %v1596
  %v1615 = vpop.f32.mrf.mxu0
  %v1616 = vadd.f32 0.0, %v1615
  %1617 = vdwg.mxu0
  %1618 = vadd.xlane.f32.xlu0 %v1616
  %v1619 = vpop.xlane.xlu0 %1618
  %v1620 = vmul.f32 %v1616, %v1616
  %1621 = vadd.xlane.f32.xlu0 %v1620
  %v1622 = vpop.xlane.xlu0 %1621
  %v1623 = vmul.f32 %v1619, 0.0078125
  %v1624 = vmul.f32 %v1622, 0.0078125
  %v1625 = vmul.f32 %v1623, %v1623
  %v1626 = vsub.f32 %v1624, %v1625
  %v1627 = vmax.f32 %v1626, 0.0
  %v1628 = vld [vmem:[%s3] sm:$0xff]
  %v1629 = vld [vmem:[%s4] sm:$0xff]
  %v1630 = vadd.f32 %v1627, 1e-05
  %v1631 = vrsqrt.pop %v1630
  %v1632 = vmul.f32 %v1631, %v1630
  %v1633 = vmul.f32 %v1632, %v1631
  %v1634 = vmul.f32 0.5, %v1633
  %v1635 = vsub.f32 1.5, %v1634
  %v1636 = vmul.f32 %v1631, %v1635
  %vm1637 = vweird.f32 %v1630
  %vm1638 = vweird.f32 %v1631
  %vm1639 = vmor %vm1637, %vm1638
  %v1640 = vsel %vm1639, %v1631, %v1636
  %v1641 = vmul.f32 %v1628, %v1640
  %v1642 = vmul.f32 %v1623, %v1641
  %v1643 = vsub.f32 %v1629, %v1642
  %1645 = vset.pattern.permute.xlu0 7
  %1646 = vperm.xlu0 %1645, %v1641
  %v1647 = vpop.permute.xlu0 %1646
  %v1649 = vmul.f32 %v1616, %v1647
  %1651 = vset.pattern.permute.xlu0 7
  %1652 = vperm.xlu0 %1651, %v1643
  %v1653 = vpop.permute.xlu0 %1652
  %v1655 = vadd.f32 %v1649, %v1653
  %v1656 = vmax.f32 %v1655, 0.0
  %1657 = vst [vmem:[#allocation2 + $0x8] sm:$0xff] %v1656
  %v1658 = vld [vmem:[#allocation2] sm:$0xff]
  %v1659 = vld [vmem:[#allocation2 + $0x8] sm:$0xff]
  %v1660 = vld [vmem:[%s5] sm:$0xff]
  %1662 = vrot.lane.b32.xlu0 %v1660, 119
  %v1663 = vpop.permute.xlu0 %1662
  %v1665 = vmul.f32 %v1658, %v1663
  %v1666 = vmul.f32 %v1659, %v1663
  %1669 = vrot.lane.b32.xlu0 %v1665, 9
  %v1670 = vpop.permute.xlu0 %1669
  %1671 = vrot.lane.b32.xlu0 %v1666, 9
  %v1672 = vpop.permute.xlu0 %1671
  %v1673 = vsel %vm111, %v1670, %v1672
  %1675 = vst [vmem:[#allocation3] sm:$0xff] %v1673
  %v1676 = vld [vmem:[#allocation2] sm:$0xff]
  %v1677 = vld [vmem:[#allocation2 + $0x8] sm:$0xff]
  %v1678 = vld [vmem:[%s5 + $0x8] sm:$0xff]
  %1680 = vrot.lane.b32.xlu0 %v1678, 120
  %v1681 = vpop.permute.xlu0 %1680
  %v1683 = vmul.f32 %v1676, %v1681
  %v1684 = vmul.f32 %v1677, %v1681
  %1687 = vrot.lane.b32.xlu0 %v1683, 8
  %v1688 = vpop.permute.xlu0 %1687
  %1689 = vrot.lane.b32.xlu0 %v1684, 8
  %v1690 = vpop.permute.xlu0 %1689
  %v1691 = vsel %vm130, %v1688, %v1690
  %1693 = vst [vmem:[#allocation3 + $0x8] sm:$0xff] %v1691
  %v1694 = vld [vmem:[#allocation2] sm:$0xff]
  %v1695 = vld [vmem:[#allocation2 + $0x8] sm:$0xff]
  %v1696 = vld [vmem:[%s5 + $0x10] sm:$0xff]
  %1698 = vrot.lane.b32.xlu0 %v1696, 121
  %v1699 = vpop.permute.xlu0 %1698
  %v1701 = vmul.f32 %v1694, %v1699
  %v1702 = vmul.f32 %v1695, %v1699
  %1705 = vrot.lane.b32.xlu0 %v1701, 7
  %v1706 = vpop.permute.xlu0 %1705
  %1707 = vrot.lane.b32.xlu0 %v1702, 7
  %v1708 = vpop.permute.xlu0 %1707
  %v1709 = vsel %vm149, %v1706, %v1708
  %1711 = vst [vmem:[#allocation3 + $0x10] sm:$0xff] %v1709
  %v1712 = vld [vmem:[#allocation2] sm:$0xff]
  %v1713 = vld [vmem:[#allocation2 + $0x8] sm:$0xff]
  %v1714 = vld [vmem:[%s5 + $0x18] sm:$0xff]
  %1716 = vrot.lane.b32.xlu0 %v1714, 127
  %v1717 = vpop.permute.xlu0 %1716
  %v1719 = vmul.f32 %v1712, %v1717
  %v1720 = vmul.f32 %v1713, %v1717
  %1723 = vrot.lane.b32.xlu0 %v1719, 1
  %v1724 = vpop.permute.xlu0 %1723
  %1725 = vrot.lane.b32.xlu0 %v1720, 1
  %v1726 = vpop.permute.xlu0 %1725
  %v1727 = vsel %vm168, %v1724, %v1726
  %1729 = vst [vmem:[#allocation3 + $0x18] sm:$0xff] %v1727
  %v1730 = vld [vmem:[#allocation2 + $0x8] sm:$0xff]
  %v1731 = vld [vmem:[%s5 + $0x20] sm:$0xff]
  %v1732 = vmul.f32 %v1730, %v1731
  %1733 = vst [vmem:[#allocation3 + $0x20] sm:$0xff] %v1732
  %v1734 = vld [vmem:[#allocation2 + $0x8] sm:$0xff]
  %v1735 = vld [vmem:[#allocation2 + $0x10] sm:$0xff]
  %v1736 = vld [vmem:[%s5 + $0x28] sm:$0xff]
  %1738 = vrot.lane.b32.xlu0 %v1736, 1
  %v1739 = vpop.permute.xlu0 %1738
  %v1741 = vmul.f32 %v1734, %v1739
  %v1742 = vmul.f32 %v1735, %v1739
  %1745 = vrot.lane.b32.xlu0 %v1741, 127
  %v1746 = vpop.permute.xlu0 %1745
  %1747 = vrot.lane.b32.xlu0 %v1742, 127
  %v1748 = vpop.permute.xlu0 %1747
  %v1749 = vsel %vm191, %v1746, %v1748
  %1751 = vst [vmem:[#allocation3 + $0x28] sm:$0xff] %v1749
  %v1752 = vld [vmem:[#allocation2 + $0x8] sm:$0xff]
  %v1753 = vld [vmem:[#allocation2 + $0x10] sm:$0xff]
  %v1754 = vld [vmem:[%s5 + $0x30] sm:$0xff]
  %1756 = vrot.lane.b32.xlu0 %v1754, 7
  %v1757 = vpop.permute.xlu0 %1756
  %v1759 = vmul.f32 %v1752, %v1757
  %v1760 = vmul.f32 %v1753, %v1757
  %1763 = vrot.lane.b32.xlu0 %v1759, 121
  %v1764 = vpop.permute.xlu0 %1763
  %1765 = vrot.lane.b32.xlu0 %v1760, 121
  %v1766 = vpop.permute.xlu0 %1765
  %v1767 = vsel %vm210, %v1764, %v1766
  %1769 = vst [vmem:[#allocation3 + $0x30] sm:$0xff] %v1767
  %v1770 = vld [vmem:[#allocation2 + $0x8] sm:$0xff]
  %v1771 = vld [vmem:[#allocation2 + $0x10] sm:$0xff]
  %v1772 = vld [vmem:[%s5 + $0x38] sm:$0xff]
  %1774 = vrot.lane.b32.xlu0 %v1772, 8
  %v1775 = vpop.permute.xlu0 %1774
  %v1777 = vmul.f32 %v1770, %v1775
  %v1778 = vmul.f32 %v1771, %v1775
  %1781 = vrot.lane.b32.xlu0 %v1777, 120
  %v1782 = vpop.permute.xlu0 %1781
  %1783 = vrot.lane.b32.xlu0 %v1778, 120
  %v1784 = vpop.permute.xlu0 %1783
  %v1785 = vsel %vm229, %v1782, %v1784
  %1787 = vst [vmem:[#allocation3 + $0x38] sm:$0xff] %v1785
  %v1788 = vld [vmem:[#allocation2 + $0x8] sm:$0xff]
  %v1789 = vld [vmem:[#allocation2 + $0x10] sm:$0xff]
  %v1790 = vld [vmem:[%s5 + $0x40] sm:$0xff]
  %1792 = vrot.lane.b32.xlu0 %v1790, 9
  %v1793 = vpop.permute.xlu0 %1792
  %v1795 = vmul.f32 %v1788, %v1793
  %v1796 = vmul.f32 %v1789, %v1793
  %1799 = vrot.lane.b32.xlu0 %v1795, 119
  %v1800 = vpop.permute.xlu0 %1799
  %1801 = vrot.lane.b32.xlu0 %v1796, 119
  %v1802 = vpop.permute.xlu0 %1801
  %v1803 = vsel %vm248, %v1800, %v1802
  %1805 = vst [vmem:[#allocation3 + $0x40] sm:$0xff] %v1803
  %s1806 = scalar_lea.vmem %s2, 56
  %v1807 = vld [vmem:[%s1806] sm:$0xff]
  %v1808 = vld [vmem:[#allocation3] sm:$0xff]
  %v1809 = vld [vmem:[#allocation3 + $0x8] sm:$0xff]
  %v1810 = vld [vmem:[#allocation3 + $0x10] sm:$0xff]
  %v1811 = vld [vmem:[#allocation3 + $0x18] sm:$0xff]
  %v1812 = vld [vmem:[#allocation3 + $0x20] sm:$0xff]
  %v1813 = vld [vmem:[#allocation3 + $0x28] sm:$0xff]
  %v1814 = vld [vmem:[#allocation3 + $0x30] sm:$0xff]
  %v1815 = vld [vmem:[#allocation3 + $0x38] sm:$0xff]
  %v1816 = vld [vmem:[#allocation3 + $0x40] sm:$0xff]
  %v1818 = vsel %vm262, %v1807, 0
  %1820 = vmatpush.msra.mxu0 0.0
  %1821 = vmatpush.msra.mxu0 0.0
  %1822 = vmatpush.msra.mxu0 0.0
  %1823 = vmatpush.msra.mxu0 0.0
  %1824 = vmatpush.msra.mxu0 0.0
  %1825 = vmatpush.msra.mxu0 0.0
  %1826 = vmatpush.msra.mxu0 0.0
  %1827 = vmatpush.msra.mxu0 %v1816
  %1828 = vmatpush.msra.mxu0 %v1815
  %1829 = vmatpush.msra.mxu0 %v1814
  %1830 = vmatpush.msra.mxu0 %v1813
  %1831 = vmatpush.msra.mxu0 %v1812
  %1832 = vmatpush.msra.mxu0 %v1811
  %1833 = vmatpush.msra.mxu0 %v1810
  %1834 = vmatpush.msra.mxu0 %v1809
  %1835 = vmatpush.msra.mxu0 %v1808
  %1836 = vmatmul.f32.gmra.mxu0 %v1818
  %v1837 = vpop.f32.mrf.mxu0
  %v1838 = vadd.f32 0.0, %v1837
  %1839 = vdwg.mxu0
  %1840 = vadd.xlane.f32.xlu0 %v1838
  %v1841 = vpop.xlane.xlu0 %1840
  %v1842 = vmul.f32 %v1838, %v1838
  %1843 = vadd.xlane.f32.xlu0 %v1842
  %v1844 = vpop.xlane.xlu0 %1843
  %v1845 = vmul.f32 %v1841, 0.0078125
  %v1846 = vmul.f32 %v1844, 0.0078125
  %v1847 = vmul.f32 %v1845, %v1845
  %v1848 = vsub.f32 %v1846, %v1847
  %v1849 = vmax.f32 %v1848, 0.0
  %v1850 = vld [vmem:[%s3] sm:$0xff]
  %v1851 = vld [vmem:[%s4] sm:$0xff]
  %v1852 = vadd.f32 %v1849, 1e-05
  %v1853 = vrsqrt.pop %v1852
  %v1854 = vmul.f32 %v1853, %v1852
  %v1855 = vmul.f32 %v1854, %v1853
  %v1856 = vmul.f32 0.5, %v1855
  %v1857 = vsub.f32 1.5, %v1856
  %v1858 = vmul.f32 %v1853, %v1857
  %vm1859 = vweird.f32 %v1852
  %vm1860 = vweird.f32 %v1853
  %vm1861 = vmor %vm1859, %vm1860
  %v1862 = vsel %vm1861, %v1853, %v1858
  %v1863 = vmul.f32 %v1850, %v1862
  %v1864 = vmul.f32 %v1845, %v1863
  %v1865 = vsub.f32 %v1851, %v1864
  %1867 = vset.pattern.permute.xlu0 8
  %1868 = vperm.xlu0 %1867, %v1863
  %v1869 = vpop.permute.xlu0 %1868
  %v1871 = vmul.f32 %v1838, %v1869
  %1873 = vset.pattern.permute.xlu0 8
  %1874 = vperm.xlu0 %1873, %v1865
  %v1875 = vpop.permute.xlu0 %1874
  %v1877 = vadd.f32 %v1871, %v1875
  %v1878 = vmax.f32 %v1877, 0.0
  %1879 = vst [vmem:[#allocation2 + $0x8] sm:$0xff] %v1878
  %v1880 = vld [vmem:[#allocation2] sm:$0xff]
  %v1881 = vld [vmem:[#allocation2 + $0x8] sm:$0xff]
  %v1882 = vld [vmem:[%s5] sm:$0xff]
  %1884 = vrot.lane.b32.xlu0 %v1882, 119
  %v1885 = vpop.permute.xlu0 %1884
  %v1887 = vmul.f32 %v1880, %v1885
  %v1888 = vmul.f32 %v1881, %v1885
  %1891 = vrot.lane.b32.xlu0 %v1887, 9
  %v1892 = vpop.permute.xlu0 %1891
  %1893 = vrot.lane.b32.xlu0 %v1888, 9
  %v1894 = vpop.permute.xlu0 %1893
  %v1895 = vsel %vm111, %v1892, %v1894
  %1897 = vst [vmem:[#allocation3] sm:$0xff] %v1895
  %v1898 = vld [vmem:[#allocation2] sm:$0xff]
  %v1899 = vld [vmem:[#allocation2 + $0x8] sm:$0xff]
  %v1900 = vld [vmem:[%s5 + $0x8] sm:$0xff]
  %1902 = vrot.lane.b32.xlu0 %v1900, 120
  %v1903 = vpop.permute.xlu0 %1902
  %v1905 = vmul.f32 %v1898, %v1903
  %v1906 = vmul.f32 %v1899, %v1903
  %1909 = vrot.lane.b32.xlu0 %v1905, 8
  %v1910 = vpop.permute.xlu0 %1909
  %1911 = vrot.lane.b32.xlu0 %v1906, 8
  %v1912 = vpop.permute.xlu0 %1911
  %v1913 = vsel %vm130, %v1910, %v1912
  %1915 = vst [vmem:[#allocation3 + $0x8] sm:$0xff] %v1913
  %v1916 = vld [vmem:[#allocation2] sm:$0xff]
  %v1917 = vld [vmem:[#allocation2 + $0x8] sm:$0xff]
  %v1918 = vld [vmem:[%s5 + $0x10] sm:$0xff]
  %1920 = vrot.lane.b32.xlu0 %v1918, 121
  %v1921 = vpop.permute.xlu0 %1920
  %v1923 = vmul.f32 %v1916, %v1921
  %v1924 = vmul.f32 %v1917, %v1921
  %1927 = vrot.lane.b32.xlu0 %v1923, 7
  %v1928 = vpop.permute.xlu0 %1927
  %1929 = vrot.lane.b32.xlu0 %v1924, 7
  %v1930 = vpop.permute.xlu0 %1929
  %v1931 = vsel %vm149, %v1928, %v1930
  %1933 = vst [vmem:[#allocation3 + $0x10] sm:$0xff] %v1931
  %v1934 = vld [vmem:[#allocation2] sm:$0xff]
  %v1935 = vld [vmem:[#allocation2 + $0x8] sm:$0xff]
  %v1936 = vld [vmem:[%s5 + $0x18] sm:$0xff]
  %1938 = vrot.lane.b32.xlu0 %v1936, 127
  %v1939 = vpop.permute.xlu0 %1938
  %v1941 = vmul.f32 %v1934, %v1939
  %v1942 = vmul.f32 %v1935, %v1939
  %1945 = vrot.lane.b32.xlu0 %v1941, 1
  %v1946 = vpop.permute.xlu0 %1945
  %1947 = vrot.lane.b32.xlu0 %v1942, 1
  %v1948 = vpop.permute.xlu0 %1947
  %v1949 = vsel %vm168, %v1946, %v1948
  %1951 = vst [vmem:[#allocation3 + $0x18] sm:$0xff] %v1949
  %v1952 = vld [vmem:[#allocation2 + $0x8] sm:$0xff]
  %v1953 = vld [vmem:[%s5 + $0x20] sm:$0xff]
  %v1954 = vmul.f32 %v1952, %v1953
  %1955 = vst [vmem:[#allocation3 + $0x20] sm:$0xff] %v1954
  %v1956 = vld [vmem:[#allocation2 + $0x8] sm:$0xff]
  %v1957 = vld [vmem:[#allocation2 + $0x10] sm:$0xff]
  %v1958 = vld [vmem:[%s5 + $0x28] sm:$0xff]
  %1960 = vrot.lane.b32.xlu0 %v1958, 1
  %v1961 = vpop.permute.xlu0 %1960
  %v1963 = vmul.f32 %v1956, %v1961
  %v1964 = vmul.f32 %v1957, %v1961
  %1967 = vrot.lane.b32.xlu0 %v1963, 127
  %v1968 = vpop.permute.xlu0 %1967
  %1969 = vrot.lane.b32.xlu0 %v1964, 127
  %v1970 = vpop.permute.xlu0 %1969
  %v1971 = vsel %vm191, %v1968, %v1970
  %1973 = vst [vmem:[#allocation3 + $0x28] sm:$0xff] %v1971
  %v1974 = vld [vmem:[#allocation2 + $0x8] sm:$0xff]
  %v1975 = vld [vmem:[#allocation2 + $0x10] sm:$0xff]
  %v1976 = vld [vmem:[%s5 + $0x30] sm:$0xff]
  %1978 = vrot.lane.b32.xlu0 %v1976, 7
  %v1979 = vpop.permute.xlu0 %1978
  %v1981 = vmul.f32 %v1974, %v1979
  %v1982 = vmul.f32 %v1975, %v1979
  %1985 = vrot.lane.b32.xlu0 %v1981, 121
  %v1986 = vpop.permute.xlu0 %1985
  %1987 = vrot.lane.b32.xlu0 %v1982, 121
  %v1988 = vpop.permute.xlu0 %1987
  %v1989 = vsel %vm210, %v1986, %v1988
  %1991 = vst [vmem:[#allocation3 + $0x30] sm:$0xff] %v1989
  %v1992 = vld [vmem:[#allocation2 + $0x8] sm:$0xff]
  %v1993 = vld [vmem:[#allocation2 + $0x10] sm:$0xff]
  %v1994 = vld [vmem:[%s5 + $0x38] sm:$0xff]
  %1996 = vrot.lane.b32.xlu0 %v1994, 8
  %v1997 = vpop.permute.xlu0 %1996
  %v1999 = vmul.f32 %v1992, %v1997
  %v2000 = vmul.f32 %v1993, %v1997
  %2003 = vrot.lane.b32.xlu0 %v1999, 120
  %v2004 = vpop.permute.xlu0 %2003
  %2005 = vrot.lane.b32.xlu0 %v2000, 120
  %v2006 = vpop.permute.xlu0 %2005
  %v2007 = vsel %vm229, %v2004, %v2006
  %2009 = vst [vmem:[#allocation3 + $0x38] sm:$0xff] %v2007
  %v2010 = vld [vmem:[#allocation2 + $0x8] sm:$0xff]
  %v2011 = vld [vmem:[#allocation2 + $0x10] sm:$0xff]
  %v2012 = vld [vmem:[%s5 + $0x40] sm:$0xff]
  %2014 = vrot.lane.b32.xlu0 %v2012, 9
  %v2015 = vpop.permute.xlu0 %2014
  %v2017 = vmul.f32 %v2010, %v2015
  %v2018 = vmul.f32 %v2011, %v2015
  %2021 = vrot.lane.b32.xlu0 %v2017, 119
  %v2022 = vpop.permute.xlu0 %2021
  %2023 = vrot.lane.b32.xlu0 %v2018, 119
  %v2024 = vpop.permute.xlu0 %2023
  %v2025 = vsel %vm248, %v2022, %v2024
  %2027 = vst [vmem:[#allocation3 + $0x40] sm:$0xff] %v2025
  %s2028 = scalar_lea.vmem %s2, 64
  %v2029 = vld [vmem:[%s2028] sm:$0xff]
  %v2030 = vld [vmem:[#allocation3] sm:$0xff]
  %v2031 = vld [vmem:[#allocation3 + $0x8] sm:$0xff]
  %v2032 = vld [vmem:[#allocation3 + $0x10] sm:$0xff]
  %v2033 = vld [vmem:[#allocation3 + $0x18] sm:$0xff]
  %v2034 = vld [vmem:[#allocation3 + $0x20] sm:$0xff]
  %v2035 = vld [vmem:[#allocation3 + $0x28] sm:$0xff]
  %v2036 = vld [vmem:[#allocation3 + $0x30] sm:$0xff]
  %v2037 = vld [vmem:[#allocation3 + $0x38] sm:$0xff]
  %v2038 = vld [vmem:[#allocation3 + $0x40] sm:$0xff]
  %v2040 = vsel %vm262, %v2029, 0
  %2042 = vmatpush.msra.mxu0 0.0
  %2043 = vmatpush.msra.mxu0 0.0
  %2044 = vmatpush.msra.mxu0 0.0
  %2045 = vmatpush.msra.mxu0 0.0
  %2046 = vmatpush.msra.mxu0 0.0
  %2047 = vmatpush.msra.mxu0 0.0
  %2048 = vmatpush.msra.mxu0 0.0
  %2049 = vmatpush.msra.mxu0 %v2038
  %2050 = vmatpush.msra.mxu0 %v2037
  %2051 = vmatpush.msra.mxu0 %v2036
  %2052 = vmatpush.msra.mxu0 %v2035
  %2053 = vmatpush.msra.mxu0 %v2034
  %2054 = vmatpush.msra.mxu0 %v2033
  %2055 = vmatpush.msra.mxu0 %v2032
  %2056 = vmatpush.msra.mxu0 %v2031
  %2057 = vmatpush.msra.mxu0 %v2030
  %2058 = vmatmul.f32.gmra.mxu0 %v2040
  %v2059 = vpop.f32.mrf.mxu0
  %v2060 = vadd.f32 0.0, %v2059
  %2061 = vdwg.mxu0
  %2062 = vadd.xlane.f32.xlu0 %v2060
  %v2063 = vpop.xlane.xlu0 %2062
  %v2064 = vmul.f32 %v2060, %v2060
  %2065 = vadd.xlane.f32.xlu0 %v2064
  %v2066 = vpop.xlane.xlu0 %2065
  %v2067 = vmul.f32 %v2063, 0.0078125
  %v2068 = vmul.f32 %v2066, 0.0078125
  %v2069 = vmul.f32 %v2067, %v2067
  %v2070 = vsub.f32 %v2068, %v2069
  %v2071 = vmax.f32 %v2070, 0.0
  %v2072 = vld [vmem:[%s3] sm:$0xff]
  %v2073 = vld [vmem:[%s4] sm:$0xff]
  %v2074 = vadd.f32 %v2071, 1e-05
  %v2075 = vrsqrt.pop %v2074
  %v2076 = vmul.f32 %v2075, %v2074
  %v2077 = vmul.f32 %v2076, %v2075
  %v2078 = vmul.f32 0.5, %v2077
  %v2079 = vsub.f32 1.5, %v2078
  %v2080 = vmul.f32 %v2075, %v2079
  %vm2081 = vweird.f32 %v2074
  %vm2082 = vweird.f32 %v2075
  %vm2083 = vmor %vm2081, %vm2082
  %v2084 = vsel %vm2083, %v2075, %v2080
  %v2085 = vmul.f32 %v2072, %v2084
  %v2086 = vmul.f32 %v2067, %v2085
  %v2087 = vsub.f32 %v2073, %v2086
  %2089 = vset.pattern.permute.xlu0 9
  %2090 = vperm.xlu0 %2089, %v2085
  %v2091 = vpop.permute.xlu0 %2090
  %v2093 = vmul.f32 %v2060, %v2091
  %2095 = vset.pattern.permute.xlu0 9
  %2096 = vperm.xlu0 %2095, %v2087
  %v2097 = vpop.permute.xlu0 %2096
  %v2099 = vadd.f32 %v2093, %v2097
  %v2100 = vmax.f32 %v2099, 0.0
  %2101 = vst [vmem:[#allocation2 + $0x8] sm:$0xff] %v2100
  %v2102 = vld [vmem:[#allocation2] sm:$0xff]
  %v2103 = vld [vmem:[#allocation2 + $0x8] sm:$0xff]
  %v2104 = vld [vmem:[%s5] sm:$0xff]
  %2106 = vrot.lane.b32.xlu0 %v2104, 119
  %v2107 = vpop.permute.xlu0 %2106
  %v2109 = vmul.f32 %v2102, %v2107
  %v2110 = vmul.f32 %v2103, %v2107
  %2113 = vrot.lane.b32.xlu0 %v2109, 9
  %v2114 = vpop.permute.xlu0 %2113
  %2115 = vrot.lane.b32.xlu0 %v2110, 9
  %v2116 = vpop.permute.xlu0 %2115
  %v2117 = vsel %vm111, %v2114, %v2116
  %2119 = vst [vmem:[#allocation3] sm:$0xff] %v2117
  %v2120 = vld [vmem:[#allocation2] sm:$0xff]
  %v2121 = vld [vmem:[#allocation2 + $0x8] sm:$0xff]
  %v2122 = vld [vmem:[%s5 + $0x8] sm:$0xff]
  %2124 = vrot.lane.b32.xlu0 %v2122, 120
  %v2125 = vpop.permute.xlu0 %2124
  %v2127 = vmul.f32 %v2120, %v2125
  %v2128 = vmul.f32 %v2121, %v2125
  %2131 = vrot.lane.b32.xlu0 %v2127, 8
  %v2132 = vpop.permute.xlu0 %2131
  %2133 = vrot.lane.b32.xlu0 %v2128, 8
  %v2134 = vpop.permute.xlu0 %2133
  %v2135 = vsel %vm130, %v2132, %v2134
  %2137 = vst [vmem:[#allocation3 + $0x8] sm:$0xff] %v2135
  %v2138 = vld [vmem:[#allocation2] sm:$0xff]
  %v2139 = vld [vmem:[#allocation2 + $0x8] sm:$0xff]
  %v2140 = vld [vmem:[%s5 + $0x10] sm:$0xff]
  %2142 = vrot.lane.b32.xlu0 %v2140, 121
  %v2143 = vpop.permute.xlu0 %2142
  %v2145 = vmul.f32 %v2138, %v2143
  %v2146 = vmul.f32 %v2139, %v2143
  %2149 = vrot.lane.b32.xlu0 %v2145, 7
  %v2150 = vpop.permute.xlu0 %2149
  %2151 = vrot.lane.b32.xlu0 %v2146, 7
  %v2152 = vpop.permute.xlu0 %2151
  %v2153 = vsel %vm149, %v2150, %v2152
  %2155 = vst [vmem:[#allocation3 + $0x10] sm:$0xff] %v2153
  %v2156 = vld [vmem:[#allocation2] sm:$0xff]
  %v2157 = vld [vmem:[#allocation2 + $0x8] sm:$0xff]
  %v2158 = vld [vmem:[%s5 + $0x18] sm:$0xff]
  %2160 = vrot.lane.b32.xlu0 %v2158, 127
  %v2161 = vpop.permute.xlu0 %2160
  %v2163 = vmul.f32 %v2156, %v2161
  %v2164 = vmul.f32 %v2157, %v2161
  %2167 = vrot.lane.b32.xlu0 %v2163, 1
  %v2168 = vpop.permute.xlu0 %2167
  %2169 = vrot.lane.b32.xlu0 %v2164, 1
  %v2170 = vpop.permute.xlu0 %2169
  %v2171 = vsel %vm168, %v2168, %v2170
  %2173 = vst [vmem:[#allocation3 + $0x18] sm:$0xff] %v2171
  %v2174 = vld [vmem:[#allocation2 + $0x8] sm:$0xff]
  %v2175 = vld [vmem:[%s5 + $0x20] sm:$0xff]
  %v2176 = vmul.f32 %v2174, %v2175
  %2177 = vst [vmem:[#allocation3 + $0x20] sm:$0xff] %v2176
  %v2178 = vld [vmem:[#allocation2 + $0x8] sm:$0xff]
  %v2179 = vld [vmem:[#allocation2 + $0x10] sm:$0xff]
  %v2180 = vld [vmem:[%s5 + $0x28] sm:$0xff]
  %2182 = vrot.lane.b32.xlu0 %v2180, 1
  %v2183 = vpop.permute.xlu0 %2182
  %v2185 = vmul.f32 %v2178, %v2183
  %v2186 = vmul.f32 %v2179, %v2183
  %2189 = vrot.lane.b32.xlu0 %v2185, 127
  %v2190 = vpop.permute.xlu0 %2189
  %2191 = vrot.lane.b32.xlu0 %v2186, 127
  %v2192 = vpop.permute.xlu0 %2191
  %v2193 = vsel %vm191, %v2190, %v2192
  %2195 = vst [vmem:[#allocation3 + $0x28] sm:$0xff] %v2193
  %v2196 = vld [vmem:[#allocation2 + $0x8] sm:$0xff]
  %v2197 = vld [vmem:[#allocation2 + $0x10] sm:$0xff]
  %v2198 = vld [vmem:[%s5 + $0x30] sm:$0xff]
  %2200 = vrot.lane.b32.xlu0 %v2198, 7
  %v2201 = vpop.permute.xlu0 %2200
  %v2203 = vmul.f32 %v2196, %v2201
  %v2204 = vmul.f32 %v2197, %v2201
  %2207 = vrot.lane.b32.xlu0 %v2203, 121
  %v2208 = vpop.permute.xlu0 %2207
  %2209 = vrot.lane.b32.xlu0 %v2204, 121
  %v2210 = vpop.permute.xlu0 %2209
  %v2211 = vsel %vm210, %v2208, %v2210
  %2213 = vst [vmem:[#allocation3 + $0x30] sm:$0xff] %v2211
  %v2214 = vld [vmem:[#allocation2 + $0x8] sm:$0xff]
  %v2215 = vld [vmem:[#allocation2 + $0x10] sm:$0xff]
  %v2216 = vld [vmem:[%s5 + $0x38] sm:$0xff]
  %2218 = vrot.lane.b32.xlu0 %v2216, 8
  %v2219 = vpop.permute.xlu0 %2218
  %v2221 = vmul.f32 %v2214, %v2219
  %v2222 = vmul.f32 %v2215, %v2219
  %2225 = vrot.lane.b32.xlu0 %v2221, 120
  %v2226 = vpop.permute.xlu0 %2225
  %2227 = vrot.lane.b32.xlu0 %v2222, 120
  %v2228 = vpop.permute.xlu0 %2227
  %v2229 = vsel %vm229, %v2226, %v2228
  %2231 = vst [vmem:[#allocation3 + $0x38] sm:$0xff] %v2229
  %v2232 = vld [vmem:[#allocation2 + $0x8] sm:$0xff]
  %v2233 = vld [vmem:[#allocation2 + $0x10] sm:$0xff]
  %v2234 = vld [vmem:[%s5 + $0x40] sm:$0xff]
  %2236 = vrot.lane.b32.xlu0 %v2234, 9
  %v2237 = vpop.permute.xlu0 %2236
  %v2239 = vmul.f32 %v2232, %v2237
  %v2240 = vmul.f32 %v2233, %v2237
  %2243 = vrot.lane.b32.xlu0 %v2239, 119
  %v2244 = vpop.permute.xlu0 %2243
  %2245 = vrot.lane.b32.xlu0 %v2240, 119
  %v2246 = vpop.permute.xlu0 %2245
  %v2247 = vsel %vm248, %v2244, %v2246
  %2249 = vst [vmem:[#allocation3 + $0x40] sm:$0xff] %v2247
  %s2250 = scalar_lea.vmem %s2, 72
  %v2251 = vld [vmem:[%s2250] sm:$0xff]
  %v2252 = vld [vmem:[#allocation3] sm:$0xff]
  %v2253 = vld [vmem:[#allocation3 + $0x8] sm:$0xff]
  %v2254 = vld [vmem:[#allocation3 + $0x10] sm:$0xff]
  %v2255 = vld [vmem:[#allocation3 + $0x18] sm:$0xff]
  %v2256 = vld [vmem:[#allocation3 + $0x20] sm:$0xff]
  %v2257 = vld [vmem:[#allocation3 + $0x28] sm:$0xff]
  %v2258 = vld [vmem:[#allocation3 + $0x30] sm:$0xff]
  %v2259 = vld [vmem:[#allocation3 + $0x38] sm:$0xff]
  %v2260 = vld [vmem:[#allocation3 + $0x40] sm:$0xff]
  %v2262 = vsel %vm262, %v2251, 0
  %2264 = vmatpush.msra.mxu0 0.0
  %2265 = vmatpush.msra.mxu0 0.0
  %2266 = vmatpush.msra.mxu0 0.0
  %2267 = vmatpush.msra.mxu0 0.0
  %2268 = vmatpush.msra.mxu0 0.0
  %2269 = vmatpush.msra.mxu0 0.0
  %2270 = vmatpush.msra.mxu0 0.0
  %2271 = vmatpush.msra.mxu0 %v2260
  %2272 = vmatpush.msra.mxu0 %v2259
  %2273 = vmatpush.msra.mxu0 %v2258
  %2274 = vmatpush.msra.mxu0 %v2257
  %2275 = vmatpush.msra.mxu0 %v2256
  %2276 = vmatpush.msra.mxu0 %v2255
  %2277 = vmatpush.msra.mxu0 %v2254
  %2278 = vmatpush.msra.mxu0 %v2253
  %2279 = vmatpush.msra.mxu0 %v2252
  %2280 = vmatmul.f32.gmra.mxu0 %v2262
  %v2281 = vpop.f32.mrf.mxu0
  %v2282 = vadd.f32 0.0, %v2281
  %2283 = vdwg.mxu0
  %2284 = vadd.xlane.f32.xlu0 %v2282
  %v2285 = vpop.xlane.xlu0 %2284
  %v2286 = vmul.f32 %v2282, %v2282
  %2287 = vadd.xlane.f32.xlu0 %v2286
  %v2288 = vpop.xlane.xlu0 %2287
  %v2289 = vmul.f32 %v2285, 0.0078125
  %v2290 = vmul.f32 %v2288, 0.0078125
  %v2291 = vmul.f32 %v2289, %v2289
  %v2292 = vsub.f32 %v2290, %v2291
  %v2293 = vmax.f32 %v2292, 0.0
  %v2294 = vld [vmem:[%s3] sm:$0xff]
  %v2295 = vld [vmem:[%s4] sm:$0xff]
  %v2296 = vadd.f32 %v2293, 1e-05
  %v2297 = vrsqrt.pop %v2296
  %v2298 = vmul.f32 %v2297, %v2296
  %v2299 = vmul.f32 %v2298, %v2297
  %v2300 = vmul.f32 0.5, %v2299
  %v2301 = vsub.f32 1.5, %v2300
  %v2302 = vmul.f32 %v2297, %v2301
  %vm2303 = vweird.f32 %v2296
  %vm2304 = vweird.f32 %v2297
  %vm2305 = vmor %vm2303, %vm2304
  %v2306 = vsel %vm2305, %v2297, %v2302
  %v2307 = vmul.f32 %v2294, %v2306
  %v2308 = vmul.f32 %v2289, %v2307
  %v2309 = vsub.f32 %v2295, %v2308
  %2311 = vset.pattern.permute.xlu0 10
  %2312 = vperm.xlu0 %2311, %v2307
  %v2313 = vpop.permute.xlu0 %2312
  %v2315 = vmul.f32 %v2282, %v2313
  %2317 = vset.pattern.permute.xlu0 10
  %2318 = vperm.xlu0 %2317, %v2309
  %v2319 = vpop.permute.xlu0 %2318
  %v2321 = vadd.f32 %v2315, %v2319
  %v2322 = vmax.f32 %v2321, 0.0
  %2323 = vst [vmem:[#allocation2 + $0x8] sm:$0xff] %v2322
  %v2324 = vld [vmem:[#allocation2] sm:$0xff]
  %v2325 = vld [vmem:[#allocation2 + $0x8] sm:$0xff]
  %v2326 = vld [vmem:[%s5] sm:$0xff]
  %2328 = vrot.lane.b32.xlu0 %v2326, 119
  %v2329 = vpop.permute.xlu0 %2328
  %v2331 = vmul.f32 %v2324, %v2329
  %v2332 = vmul.f32 %v2325, %v2329
  %2335 = vrot.lane.b32.xlu0 %v2331, 9
  %v2336 = vpop.permute.xlu0 %2335
  %2337 = vrot.lane.b32.xlu0 %v2332, 9
  %v2338 = vpop.permute.xlu0 %2337
  %v2339 = vsel %vm111, %v2336, %v2338
  %2341 = vst [vmem:[#allocation3] sm:$0xff] %v2339
  %v2342 = vld [vmem:[#allocation2] sm:$0xff]
  %v2343 = vld [vmem:[#allocation2 + $0x8] sm:$0xff]
  %v2344 = vld [vmem:[%s5 + $0x8] sm:$0xff]
  %2346 = vrot.lane.b32.xlu0 %v2344, 120
  %v2347 = vpop.permute.xlu0 %2346
  %v2349 = vmul.f32 %v2342, %v2347
  %v2350 = vmul.f32 %v2343, %v2347
  %2353 = vrot.lane.b32.xlu0 %v2349, 8
  %v2354 = vpop.permute.xlu0 %2353
  %2355 = vrot.lane.b32.xlu0 %v2350, 8
  %v2356 = vpop.permute.xlu0 %2355
  %v2357 = vsel %vm130, %v2354, %v2356
  %2359 = vst [vmem:[#allocation3 + $0x8] sm:$0xff] %v2357
  %v2360 = vld [vmem:[#allocation2] sm:$0xff]
  %v2361 = vld [vmem:[#allocation2 + $0x8] sm:$0xff]
  %v2362 = vld [vmem:[%s5 + $0x10] sm:$0xff]
  %2364 = vrot.lane.b32.xlu0 %v2362, 121
  %v2365 = vpop.permute.xlu0 %2364
  %v2367 = vmul.f32 %v2360, %v2365
  %v2368 = vmul.f32 %v2361, %v2365
  %2371 = vrot.lane.b32.xlu0 %v2367, 7
  %v2372 = vpop.permute.xlu0 %2371
  %2373 = vrot.lane.b32.xlu0 %v2368, 7
  %v2374 = vpop.permute.xlu0 %2373
  %v2375 = vsel %vm149, %v2372, %v2374
  %2377 = vst [vmem:[#allocation3 + $0x10] sm:$0xff] %v2375
  %v2378 = vld [vmem:[#allocation2] sm:$0xff]
  %v2379 = vld [vmem:[#allocation2 + $0x8] sm:$0xff]
  %v2380 = vld [vmem:[%s5 + $0x18] sm:$0xff]
  %2382 = vrot.lane.b32.xlu0 %v2380, 127
  %v2383 = vpop.permute.xlu0 %2382
  %v2385 = vmul.f32 %v2378, %v2383
  %v2386 = vmul.f32 %v2379, %v2383
  %2389 = vrot.lane.b32.xlu0 %v2385, 1
  %v2390 = vpop.permute.xlu0 %2389
  %2391 = vrot.lane.b32.xlu0 %v2386, 1
  %v2392 = vpop.permute.xlu0 %2391
  %v2393 = vsel %vm168, %v2390, %v2392
  %2395 = vst [vmem:[#allocation3 + $0x18] sm:$0xff] %v2393
  %v2396 = vld [vmem:[#allocation2 + $0x8] sm:$0xff]
  %v2397 = vld [vmem:[%s5 + $0x20] sm:$0xff]
  %v2398 = vmul.f32 %v2396, %v2397
  %2399 = vst [vmem:[#allocation3 + $0x20] sm:$0xff] %v2398
  %v2400 = vld [vmem:[#allocation2 + $0x8] sm:$0xff]
  %v2401 = vld [vmem:[#allocation2 + $0x10] sm:$0xff]
  %v2402 = vld [vmem:[%s5 + $0x28] sm:$0xff]
  %2404 = vrot.lane.b32.xlu0 %v2402, 1
  %v2405 = vpop.permute.xlu0 %2404
  %v2407 = vmul.f32 %v2400, %v2405
  %v2408 = vmul.f32 %v2401, %v2405
  %2411 = vrot.lane.b32.xlu0 %v2407, 127
  %v2412 = vpop.permute.xlu0 %2411
  %2413 = vrot.lane.b32.xlu0 %v2408, 127
  %v2414 = vpop.permute.xlu0 %2413
  %v2415 = vsel %vm191, %v2412, %v2414
  %2417 = vst [vmem:[#allocation3 + $0x28] sm:$0xff] %v2415
  %v2418 = vld [vmem:[#allocation2 + $0x8] sm:$0xff]
  %v2419 = vld [vmem:[#allocation2 + $0x10] sm:$0xff]
  %v2420 = vld [vmem:[%s5 + $0x30] sm:$0xff]
  %2422 = vrot.lane.b32.xlu0 %v2420, 7
  %v2423 = vpop.permute.xlu0 %2422
  %v2425 = vmul.f32 %v2418, %v2423
  %v2426 = vmul.f32 %v2419, %v2423
  %2429 = vrot.lane.b32.xlu0 %v2425, 121
  %v2430 = vpop.permute.xlu0 %2429
  %2431 = vrot.lane.b32.xlu0 %v2426, 121
  %v2432 = vpop.permute.xlu0 %2431
  %v2433 = vsel %vm210, %v2430, %v2432
  %2435 = vst [vmem:[#allocation3 + $0x30] sm:$0xff] %v2433
  %v2436 = vld [vmem:[#allocation2 + $0x8] sm:$0xff]
  %v2437 = vld [vmem:[#allocation2 + $0x10] sm:$0xff]
  %v2438 = vld [vmem:[%s5 + $0x38] sm:$0xff]
  %2440 = vrot.lane.b32.xlu0 %v2438, 8
  %v2441 = vpop.permute.xlu0 %2440
  %v2443 = vmul.f32 %v2436, %v2441
  %v2444 = vmul.f32 %v2437, %v2441
  %2447 = vrot.lane.b32.xlu0 %v2443, 120
  %v2448 = vpop.permute.xlu0 %2447
  %2449 = vrot.lane.b32.xlu0 %v2444, 120
  %v2450 = vpop.permute.xlu0 %2449
  %v2451 = vsel %vm229, %v2448, %v2450
  %2453 = vst [vmem:[#allocation3 + $0x38] sm:$0xff] %v2451
  %v2454 = vld [vmem:[#allocation2 + $0x8] sm:$0xff]
  %v2455 = vld [vmem:[#allocation2 + $0x10] sm:$0xff]
  %v2456 = vld [vmem:[%s5 + $0x40] sm:$0xff]
  %2458 = vrot.lane.b32.xlu0 %v2456, 9
  %v2459 = vpop.permute.xlu0 %2458
  %v2461 = vmul.f32 %v2454, %v2459
  %v2462 = vmul.f32 %v2455, %v2459
  %2465 = vrot.lane.b32.xlu0 %v2461, 119
  %v2466 = vpop.permute.xlu0 %2465
  %2467 = vrot.lane.b32.xlu0 %v2462, 119
  %v2468 = vpop.permute.xlu0 %2467
  %v2469 = vsel %vm248, %v2466, %v2468
  %2471 = vst [vmem:[#allocation3 + $0x40] sm:$0xff] %v2469
  %s2472 = scalar_lea.vmem %s2, 80
  %v2473 = vld [vmem:[%s2472] sm:$0xff]
  %v2474 = vld [vmem:[#allocation3] sm:$0xff]
  %v2475 = vld [vmem:[#allocation3 + $0x8] sm:$0xff]
  %v2476 = vld [vmem:[#allocation3 + $0x10] sm:$0xff]
  %v2477 = vld [vmem:[#allocation3 + $0x18] sm:$0xff]
  %v2478 = vld [vmem:[#allocation3 + $0x20] sm:$0xff]
  %v2479 = vld [vmem:[#allocation3 + $0x28] sm:$0xff]
  %v2480 = vld [vmem:[#allocation3 + $0x30] sm:$0xff]
  %v2481 = vld [vmem:[#allocation3 + $0x38] sm:$0xff]
  %v2482 = vld [vmem:[#allocation3 + $0x40] sm:$0xff]
  %v2484 = vsel %vm262, %v2473, 0
  %2486 = vmatpush.msra.mxu0 0.0
  %2487 = vmatpush.msra.mxu0 0.0
  %2488 = vmatpush.msra.mxu0 0.0
  %2489 = vmatpush.msra.mxu0 0.0
  %2490 = vmatpush.msra.mxu0 0.0
  %2491 = vmatpush.msra.mxu0 0.0
  %2492 = vmatpush.msra.mxu0 0.0
  %2493 = vmatpush.msra.mxu0 %v2482
  %2494 = vmatpush.msra.mxu0 %v2481
  %2495 = vmatpush.msra.mxu0 %v2480
  %2496 = vmatpush.msra.mxu0 %v2479
  %2497 = vmatpush.msra.mxu0 %v2478
  %2498 = vmatpush.msra.mxu0 %v2477
  %2499 = vmatpush.msra.mxu0 %v2476
  %2500 = vmatpush.msra.mxu0 %v2475
  %2501 = vmatpush.msra.mxu0 %v2474
  %2502 = vmatmul.f32.gmra.mxu0 %v2484
  %v2503 = vpop.f32.mrf.mxu0
  %v2504 = vadd.f32 0.0, %v2503
  %2505 = vdwg.mxu0
  %2506 = vadd.xlane.f32.xlu0 %v2504
  %v2507 = vpop.xlane.xlu0 %2506
  %v2508 = vmul.f32 %v2504, %v2504
  %2509 = vadd.xlane.f32.xlu0 %v2508
  %v2510 = vpop.xlane.xlu0 %2509
  %v2511 = vmul.f32 %v2507, 0.0078125
  %v2512 = vmul.f32 %v2510, 0.0078125
  %v2513 = vmul.f32 %v2511, %v2511
  %v2514 = vsub.f32 %v2512, %v2513
  %v2515 = vmax.f32 %v2514, 0.0
  %v2516 = vld [vmem:[%s3] sm:$0xff]
  %v2517 = vld [vmem:[%s4] sm:$0xff]
  %v2518 = vadd.f32 %v2515, 1e-05
  %v2519 = vrsqrt.pop %v2518
  %v2520 = vmul.f32 %v2519, %v2518
  %v2521 = vmul.f32 %v2520, %v2519
  %v2522 = vmul.f32 0.5, %v2521
  %v2523 = vsub.f32 1.5, %v2522
  %v2524 = vmul.f32 %v2519, %v2523
  %vm2525 = vweird.f32 %v2518
  %vm2526 = vweird.f32 %v2519
  %vm2527 = vmor %vm2525, %vm2526
  %v2528 = vsel %vm2527, %v2519, %v2524
  %v2529 = vmul.f32 %v2516, %v2528
  %v2530 = vmul.f32 %v2511, %v2529
  %v2531 = vsub.f32 %v2517, %v2530
  %2533 = vset.pattern.permute.xlu0 11
  %2534 = vperm.xlu0 %2533, %v2529
  %v2535 = vpop.permute.xlu0 %2534
  %v2537 = vmul.f32 %v2504, %v2535
  %2539 = vset.pattern.permute.xlu0 11
  %2540 = vperm.xlu0 %2539, %v2531
  %v2541 = vpop.permute.xlu0 %2540
  %v2543 = vadd.f32 %v2537, %v2541
  %v2544 = vmax.f32 %v2543, 0.0
  %2545 = vst [vmem:[%s6] sm:$0xff] %v2544
  // Predicated region
  $region26: #{boosted_conv3x3_forward.1} parent=0 // pred_check
    _
  $region27: #{boosted_conv3x3_forward.1} parent=0 // pred_check_branch
    %2547 = sbr.rel (0) target = $region29
  $region28: #{boosted_conv3x3_forward.1} parent=0 // pred_region
    _
  $region29: #{boosted_conv3x3_forward.1} parent=0 // pred_fallthru
    _
  // Predicated region
  $region30: #{boosted_conv3x3_forward.1} parent=0 // pred_check
    _
  $region31: #{boosted_conv3x3_forward.1} parent=0 // pred_check_branch
    %2549 = sbr.rel (0) target = $region33
  $region32: #{boosted_conv3x3_forward.1} parent=0 // pred_region
    _
  $region33: #{boosted_conv3x3_forward.1} parent=0 // pred_fallthru
    _

</llo_original>
